<compile_context>
chip_gen: v7x
topology: tpu7x:2x2x1
jax: 0.10.0
libtpu: 0.0.40
codegen_flags: <defaults>
</compile_context>

<pallas_src>
import jax
import jax.numpy as jnp
from jax.experimental import pallas as pl
from jax.experimental.pallas import tpu as pltpu


# ----------------------------------------------------------------------------
# Fused kernel: num_layers LSTM layers (wavefront-scheduled) + FC, single invocation (no grid).
# Ref order:
#   x        : (B, T, D_in)                      batch-major input (as given by the module)
#   wx0      : (D_in, 4H)  layer-0 input weights  (W_ih^T), gate blocks [i|f|g|o]
#   wh0      : (H,   4H)   layer-0 recurrent weights (W_hh^T)
#   b0       : (1,   4H)   layer-0 fused bias (b_ih + b_hh)
#   [whx_l   : (2H,  4H)   fused [W_ih^T ; W_hh^T] for layer l >= 1
#    b_l     : (1,   4H)]  * (num_layers - 1)
#   wfc      : (H, O), bfc : (1, O)
#   out      : (B, T, O)
# ----------------------------------------------------------------------------
def _build_fused_kernel(B, T, H, num_layers):
    def kernel(*refs):
        x_ref = refs[0]
        wx0_ref, wh0_ref, b0_ref = refs[1], refs[2], refs[3]
        idx = 4
        layer_refs = []
        for _ in range(num_layers - 1):
            layer_refs.append((refs[idx], refs[idx + 1]))
            idx += 2
        wfc_ref = refs[idx]
        bfc_ref = refs[idx + 1]
        out_ref = refs[idx + 2]

        # ---- Layer 0: hoisted, batched-over-time input projection (off the critical path) ----
        wx0 = wx0_ref[...]
        b0 = b0_ref[...]
        # One (T, D) @ (D, 4H) MXU matmul per batch row (B is tiny); fused bias included.
        xp_b = [
            jnp.dot(x_ref[b], wx0, preferred_element_type=jnp.float32) + b0
            for b in range(B)
        ]                                            # B x (T, 4H)
        # Per-step (B, 4H) pre-activations, assembled from static 1-row slices.  Pure sublane
        # copies, precomputable off the recurrence critical path.
        xp_t = [
            jnp.concatenate([xp_b[b][t:t + 1, :] for b in range(B)], axis=0)
            for t in range(T)
        ]                                            # T x (B, 4H)

        wh0 = wh0_ref[...]                           # (H, 4H), loop-invariant
        whx = [(w_ref[...], bb_ref[...]) for (w_ref, bb_ref) in layer_refs]
        wfc = wfc_ref[...]
        bfc = bfc_ref[...]

        def cell(gates, c_prev):
            # gates: (B, 4H), lane groups of H in PyTorch order [i, f, g, o].
            i_g = jax.nn.sigmoid(gates[:, 0 * H:1 * H])
            f_g = jax.nn.sigmoid(gates[:, 1 * H:2 * H])
            g_g = jnp.tanh(gates[:, 2 * H:3 * H])
            o_g = jax.nn.sigmoid(gates[:, 3 * H:4 * H])
            c_new = f_g * c_prev + i_g * g_g
            h_new = o_g * jnp.tanh(c_new)
            return h_new, c_new

        h = [jnp.zeros((B, H), jnp.float32) for _ in range(num_layers)]
        c = [jnp.zeros((B, H), jnp.float32) for _ in range(num_layers)]
        below = [[None] * T for _ in range(num_layers)]   # below[l][t] = h of layer l at step t

        # ---- Wavefront over (layer, time): serial chain is T + L - 1 cells, not T * L ----
        for w in range(T + num_layers - 1):
            for l in range(num_layers):
                t = w - l
                if t < 0 or t >= T:
                    continue
                if l == 0:
                    # Single lane-dense recurrent matmul: (B,H) @ (H,4H).
                    gates = xp_t[t] + jnp.dot(
                        h[0], wh0, preferred_element_type=jnp.float32)
                else:
                    # Fused [x_t ; h_{t-1}] @ (2H, 4H): one MXU op per step.
                    wl, bl = whx[l - 1]
                    z = jnp.concatenate([below[l - 1][t], h[l]], axis=1)   # (B, 2H)
                    gates = jnp.dot(z, wl, preferred_element_type=jnp.float32) + bl
                h[l], c[l] = cell(gates, c[l])
                if l < num_layers - 1:
                    below[l][t] = h[l]                      # consumed by layer l+1 next wavefront
                else:
                    # Final Linear applied as soon as the last layer's h_t exists: keeps live
                    # ranges short and overlaps FC matmuls with the remaining recurrence.
                    res_t = jnp.dot(h[l], wfc, preferred_element_type=jnp.float32) + bfc
                    out_ref[:, t, :] = res_t

    return kernel


# ----------------------------------------------------------------------------
# One-time parameter re-layout (hoisted out of the per-call path)
# ----------------------------------------------------------------------------
def prepare_params(params):
    """Convert PyTorch-convention LSTM/FC params into the kernel's fused lane-dense layout.

    Call once at setup; the returned arrays are reused by every forward call, so no weight
    transposes / reshapes / bias adds appear on the per-call XLA path.
    """
    lstm = params["lstm"]
    H = lstm[0][1].shape[1]
    prepared = {"layer0": None, "layers": [], "fc": None}
    for idx, (w_ih, w_hh, b_ih, b_hh) in enumerate(lstm):
        wx = jnp.asarray(w_ih, jnp.float32).T            # (D_l, 4H), gate blocks [i|f|g|o]
        wh = jnp.asarray(w_hh, jnp.float32).T            # (H, 4H)
        b = (jnp.asarray(b_ih, jnp.float32)
             + jnp.asarray(b_hh, jnp.float32)).reshape(1, 4 * H)
        if idx == 0:
            prepared["layer0"] = (wx, wh, b)
        else:
            prepared["layers"].append((jnp.concatenate([wx, wh], axis=0), b))  # (2H, 4H)
    prepared["fc"] = (
        jnp.asarray(params["fc_w"], jnp.float32).T,      # (H, O)
        jnp.asarray(params["fc_b"], jnp.float32).reshape(1, -1),
    )
    return prepared


# ----------------------------------------------------------------------------
# MusicRNN forward (single fused Pallas call) and pure-JAX reference
# ----------------------------------------------------------------------------
def music_rnn_forward(x_btd, prepared):
    """x_btd: (B, T, input_size) -> (B, T, output_size), matching MusicRNN.forward."""
    B, T, _ = x_btd.shape
    wx0, wh0, b0 = prepared["layer0"]
    H = wh0.shape[0]
    num_layers = 1 + len(prepared["layers"])
    wfc, bfc = prepared["fc"]
    O = wfc.shape[1]

    inputs = [x_btd.astype(jnp.float32), wx0, wh0, b0]
    for (whx_l, b_l) in prepared["layers"]:
        inputs += [whx_l, b_l]
    inputs += [wfc, bfc]

    kernel = _build_fused_kernel(B, T, H, num_layers)

    return pl.pallas_call(
        kernel,
        out_shape=jax.ShapeDtypeStruct((B, T, O), jnp.float32),
        in_specs=[pl.BlockSpec(memory_space=pltpu.MemorySpace.VMEM)] * len(inputs),
        out_specs=pl.BlockSpec(memory_space=pltpu.MemorySpace.VMEM),
    )(*inputs)


def music_rnn_reference(x_btd, params):
    """Pure-JAX reference (lax.scan), PyTorch LSTM semantics."""
    x = jnp.transpose(x_btd, (1, 0, 2)).astype(jnp.float32)    # (T, B, D)
    for (w_ih, w_hh, b_ih, b_hh) in params["lstm"]:
        B = x.shape[1]
        H = w_hh.shape[1]
        h0 = jnp.zeros((B, H), jnp.float32)
        c0 = jnp.zeros((B, H), jnp.float32)

        def step(carry, x_t):
            h, c = carry
            gates = x_t @ w_ih.T + h @ w_hh.T + b_ih + b_hh
            i = jax.nn.sigmoid(gates[:, 0 * H:1 * H])
            f = jax.nn.sigmoid(gates[:, 1 * H:2 * H])
            g = jnp.tanh(gates[:, 2 * H:3 * H])
            o = jax.nn.sigmoid(gates[:, 3 * H:4 * H])
            c = f * c + i * g
            h = o * jnp.tanh(c)
            return (h, c), h

        _, x = jax.lax.scan(step, (h0, c0), x)
    out = x @ params["fc_w"].T + params["fc_b"]                # (T, B, O)
    return jnp.transpose(out, (1, 0, 2))


def init_params(key, input_size, hidden_size, num_layers, output_size):
    """Deterministic init mirroring PyTorch's U(-1/sqrt(H), 1/sqrt(H)) default."""
    bound = 1.0 / jnp.sqrt(jnp.float32(hidden_size))
    params = {"lstm": []}
    for layer in range(num_layers):
        d_in = input_size if layer == 0 else hidden_size
        key, k1, k2, k3, k4 = jax.random.split(key, 5)
        w_ih = jax.random.uniform(k1, (4 * hidden_size, d_in), jnp.float32, -bound, bound)
        w_hh = jax.random.uniform(k2, (4 * hidden_size, hidden_size), jnp.float32, -bound, bound)
        b_ih = jax.random.uniform(k3, (4 * hidden_size,), jnp.float32, -bound, bound)
        b_hh = jax.random.uniform(k4, (4 * hidden_size,), jnp.float32, -bound, bound)
        params["lstm"].append((w_ih, w_hh, b_ih, b_hh))
    key, k5, k6 = jax.random.split(key, 3)
    params["fc_w"] = jax.random.uniform(k5, (output_size, hidden_size), jnp.float32, -bound, bound)
    params["fc_b"] = jax.random.uniform(k6, (output_size,), jnp.float32, -bound, bound)
    return params


if __name__ == "__main__":
    # Small shapes consistent with the module: (batch, seq, input_size)
    B, T = 2, 8
    INPUT_SIZE, HIDDEN_SIZE, NUM_LAYERS, OUTPUT_SIZE = 16, 32, 2, 16

    key = jax.random.PRNGKey(0)
    key, xk = jax.random.split(key)
    x = jax.random.normal(xk, (B, T, INPUT_SIZE), jnp.float32)
    params = init_params(key, INPUT_SIZE, HIDDEN_SIZE, NUM_LAYERS, OUTPUT_SIZE)

    # One-time weight re-layout, hoisted out of the per-call path.
    prepared = jax.tree_util.tree_map(jax.block_until_ready, prepare_params(params))

    fwd = jax.jit(music_rnn_forward)
    out = jax.block_until_ready(fwd(x, prepared))
    assert out.shape == (B, T, OUTPUT_SIZE), out.shape

    ref = jax.block_until_ready(music_rnn_reference(x, params))
    assert jnp.allclose(out, ref, atol=1e-4, rtol=1e-4), float(jnp.max(jnp.abs(out - ref)))

    print("KERNEL_OK")
</pallas_src>

<mosaic_0001>
module attributes {stable_mosaic.version = 11 : i64} {
  func.func @kernel(%arg0: memref<2x8x16xf32, #tpu.memory_space<vmem>>, %arg1: memref<16x128xf32, #tpu.memory_space<vmem>>, %arg2: memref<32x128xf32, #tpu.memory_space<vmem>>, %arg3: memref<1x128xf32, #tpu.memory_space<vmem>>, %arg4: memref<64x128xf32, #tpu.memory_space<vmem>>, %arg5: memref<1x128xf32, #tpu.memory_space<vmem>>, %arg6: memref<32x16xf32, #tpu.memory_space<vmem>>, %arg7: memref<1x16xf32, #tpu.memory_space<vmem>>, %arg8: memref<2x8x16xf32, #tpu.memory_space<vmem>>) attributes {dimension_semantics = [], scalar_prefetch = 0 : i64, scratch_operands = 0 : i64, tpu.core_type = #tpu.core_type<tc>} {
    %c0 = arith.constant 0 : index
    %c0_0 = arith.constant 0 : index
    %0 = vector.load %arg1[%c0, %c0_0] : memref<16x128xf32, #tpu.memory_space<vmem>>, vector<16x128xf32>
    %c0_1 = arith.constant 0 : index
    %c0_2 = arith.constant 0 : index
    %1 = vector.load %arg3[%c0_1, %c0_2] : memref<1x128xf32, #tpu.memory_space<vmem>>, vector<1x128xf32>
    %c0_3 = arith.constant 0 : index
    %c0_4 = arith.constant 0 : index
    %c0_5 = arith.constant 0 : index
    %2 = vector.load %arg0[%c0_3, %c0_4, %c0_5] : memref<2x8x16xf32, #tpu.memory_space<vmem>>, vector<1x8x16xf32>
    %3 = vector.shape_cast %2 : vector<1x8x16xf32> to vector<8x16xf32>
    %cst = arith.constant dense<0.000000e+00> : vector<8x128xf32>
    %4 = tpu.matmul %3, %0, %cst {dimension_numbers = #tpu.dot_dimension_numbers<[1], [0], [0], [1], [0, 0, 1, 1], [], []>} : vector<8x16xf32>, vector<16x128xf32>, vector<8x128xf32> -> vector<8x128xf32>
    %5 = vector.broadcast %1 : vector<1x128xf32> to vector<8x128xf32>
    %6 = arith.addf %4, %5 : vector<8x128xf32>
    %c1 = arith.constant 1 : index
    %c0_6 = arith.constant 0 : index
    %c0_7 = arith.constant 0 : index
    %7 = vector.load %arg0[%c1, %c0_6, %c0_7] : memref<2x8x16xf32, #tpu.memory_space<vmem>>, vector<1x8x16xf32>
    %8 = vector.shape_cast %7 : vector<1x8x16xf32> to vector<8x16xf32>
    %cst_8 = arith.constant dense<0.000000e+00> : vector<8x128xf32>
    %9 = tpu.matmul %8, %0, %cst_8 {dimension_numbers = #tpu.dot_dimension_numbers<[1], [0], [0], [1], [0, 0, 1, 1], [], []>} : vector<8x16xf32>, vector<16x128xf32>, vector<8x128xf32> -> vector<8x128xf32>
    %10 = vector.broadcast %1 : vector<1x128xf32> to vector<8x128xf32>
    %11 = arith.addf %9, %10 : vector<8x128xf32>
    %12 = vector.extract_strided_slice %6 {offsets = [0, 0], sizes = [1, 128], strides = [1, 1]} : vector<8x128xf32> to vector<1x128xf32>
    %13 = vector.extract_strided_slice %11 {offsets = [0, 0], sizes = [1, 128], strides = [1, 1]} : vector<8x128xf32> to vector<1x128xf32>
    %14 = tpu.concatenate %12, %13 in 0 : vector<1x128xf32>, vector<1x128xf32> -> vector<2x128xf32>
    %15 = vector.extract_strided_slice %6 {offsets = [1, 0], sizes = [1, 128], strides = [1, 1]} : vector<8x128xf32> to vector<1x128xf32>
    %16 = vector.extract_strided_slice %11 {offsets = [1, 0], sizes = [1, 128], strides = [1, 1]} : vector<8x128xf32> to vector<1x128xf32>
    %17 = tpu.concatenate %15, %16 in 0 : vector<1x128xf32>, vector<1x128xf32> -> vector<2x128xf32>
    %18 = vector.extract_strided_slice %6 {offsets = [2, 0], sizes = [1, 128], strides = [1, 1]} : vector<8x128xf32> to vector<1x128xf32>
    %19 = vector.extract_strided_slice %11 {offsets = [2, 0], sizes = [1, 128], strides = [1, 1]} : vector<8x128xf32> to vector<1x128xf32>
    %20 = tpu.concatenate %18, %19 in 0 : vector<1x128xf32>, vector<1x128xf32> -> vector<2x128xf32>
    %21 = vector.extract_strided_slice %6 {offsets = [3, 0], sizes = [1, 128], strides = [1, 1]} : vector<8x128xf32> to vector<1x128xf32>
    %22 = vector.extract_strided_slice %11 {offsets = [3, 0], sizes = [1, 128], strides = [1, 1]} : vector<8x128xf32> to vector<1x128xf32>
    %23 = tpu.concatenate %21, %22 in 0 : vector<1x128xf32>, vector<1x128xf32> -> vector<2x128xf32>
    %24 = vector.extract_strided_slice %6 {offsets = [4, 0], sizes = [1, 128], strides = [1, 1]} : vector<8x128xf32> to vector<1x128xf32>
    %25 = vector.extract_strided_slice %11 {offsets = [4, 0], sizes = [1, 128], strides = [1, 1]} : vector<8x128xf32> to vector<1x128xf32>
    %26 = tpu.concatenate %24, %25 in 0 : vector<1x128xf32>, vector<1x128xf32> -> vector<2x128xf32>
    %27 = vector.extract_strided_slice %6 {offsets = [5, 0], sizes = [1, 128], strides = [1, 1]} : vector<8x128xf32> to vector<1x128xf32>
    %28 = vector.extract_strided_slice %11 {offsets = [5, 0], sizes = [1, 128], strides = [1, 1]} : vector<8x128xf32> to vector<1x128xf32>
    %29 = tpu.concatenate %27, %28 in 0 : vector<1x128xf32>, vector<1x128xf32> -> vector<2x128xf32>
    %30 = vector.extract_strided_slice %6 {offsets = [6, 0], sizes = [1, 128], strides = [1, 1]} : vector<8x128xf32> to vector<1x128xf32>
    %31 = vector.extract_strided_slice %11 {offsets = [6, 0], sizes = [1, 128], strides = [1, 1]} : vector<8x128xf32> to vector<1x128xf32>
    %32 = tpu.concatenate %30, %31 in 0 : vector<1x128xf32>, vector<1x128xf32> -> vector<2x128xf32>
    %33 = vector.extract_strided_slice %6 {offsets = [7, 0], sizes = [1, 128], strides = [1, 1]} : vector<8x128xf32> to vector<1x128xf32>
    %34 = vector.extract_strided_slice %11 {offsets = [7, 0], sizes = [1, 128], strides = [1, 1]} : vector<8x128xf32> to vector<1x128xf32>
    %35 = tpu.concatenate %33, %34 in 0 : vector<1x128xf32>, vector<1x128xf32> -> vector<2x128xf32>
    %c0_9 = arith.constant 0 : index
    %c0_10 = arith.constant 0 : index
    %36 = vector.load %arg2[%c0_9, %c0_10] : memref<32x128xf32, #tpu.memory_space<vmem>>, vector<32x128xf32>
    %c0_11 = arith.constant 0 : index
    %c0_12 = arith.constant 0 : index
    %37 = vector.load %arg4[%c0_11, %c0_12] : memref<64x128xf32, #tpu.memory_space<vmem>>, vector<64x128xf32>
    %c0_13 = arith.constant 0 : index
    %c0_14 = arith.constant 0 : index
    %38 = vector.load %arg5[%c0_13, %c0_14] : memref<1x128xf32, #tpu.memory_space<vmem>>, vector<1x128xf32>
    %c0_15 = arith.constant 0 : index
    %c0_16 = arith.constant 0 : index
    %39 = vector.load %arg6[%c0_15, %c0_16] : memref<32x16xf32, #tpu.memory_space<vmem>>, vector<32x16xf32>
    %c0_17 = arith.constant 0 : index
    %c0_18 = arith.constant 0 : index
    %40 = vector.load %arg7[%c0_17, %c0_18] : memref<1x16xf32, #tpu.memory_space<vmem>>, vector<1x16xf32>
    %cst_19 = arith.constant 0.000000e+00 : f32
    %41 = vector.broadcast %cst_19 : f32 to vector<2x32xf32>
    %cst_20 = arith.constant 0.000000e+00 : f32
    %42 = vector.broadcast %cst_20 : f32 to vector<2x32xf32>
    %cst_21 = arith.constant 0.000000e+00 : f32
    %43 = vector.broadcast %cst_21 : f32 to vector<2x32xf32>
    %cst_22 = arith.constant 0.000000e+00 : f32
    %44 = vector.broadcast %cst_22 : f32 to vector<2x32xf32>
    %cst_23 = arith.constant dense<0.000000e+00> : vector<2x128xf32>
    %45 = tpu.matmul %41, %36, %cst_23 {dimension_numbers = #tpu.dot_dimension_numbers<[1], [0], [0], [1], [0, 0, 1, 1], [], []>} : vector<2x32xf32>, vector<32x128xf32>, vector<2x128xf32> -> vector<2x128xf32>
    %46 = arith.addf %14, %45 : vector<2x128xf32>
    %47 = vector.extract_strided_slice %46 {offsets = [0, 0], sizes = [2, 32], strides = [1, 1]} : vector<2x128xf32> to vector<2x32xf32>
    %48 = arith.negf %47 : vector<2x32xf32>
    %49 = math.exp %48 : vector<2x32xf32>
    %cst_24 = arith.constant 1.000000e+00 : f32
    %50 = vector.broadcast %cst_24 : f32 to vector<2x32xf32>
    %51 = arith.addf %50, %49 : vector<2x32xf32>
    %52 = arith.divf %50, %51 : vector<2x32xf32>
    %53 = vector.extract_strided_slice %46 {offsets = [0, 32], sizes = [2, 32], strides = [1, 1]} : vector<2x128xf32> to vector<2x32xf32>
    %54 = arith.negf %53 : vector<2x32xf32>
    %55 = math.exp %54 : vector<2x32xf32>
    %cst_25 = arith.constant 1.000000e+00 : f32
    %56 = vector.broadcast %cst_25 : f32 to vector<2x32xf32>
    %57 = arith.addf %56, %55 : vector<2x32xf32>
    %58 = arith.divf %56, %57 : vector<2x32xf32>
    %59 = vector.extract_strided_slice %46 {offsets = [0, 64], sizes = [2, 32], strides = [1, 1]} : vector<2x128xf32> to vector<2x32xf32>
    %60 = math.tanh %59 : vector<2x32xf32>
    %61 = vector.extract_strided_slice %46 {offsets = [0, 96], sizes = [2, 32], strides = [1, 1]} : vector<2x128xf32> to vector<2x32xf32>
    %62 = arith.negf %61 : vector<2x32xf32>
    %63 = math.exp %62 : vector<2x32xf32>
    %cst_26 = arith.constant 1.000000e+00 : f32
    %64 = vector.broadcast %cst_26 : f32 to vector<2x32xf32>
    %65 = arith.addf %64, %63 : vector<2x32xf32>
    %66 = arith.divf %64, %65 : vector<2x32xf32>
    %67 = arith.mulf %58, %43 : vector<2x32xf32>
    %68 = arith.mulf %52, %60 : vector<2x32xf32>
    %69 = arith.addf %67, %68 : vector<2x32xf32>
    %70 = math.tanh %69 : vector<2x32xf32>
    %71 = arith.mulf %66, %70 : vector<2x32xf32>
    %cst_27 = arith.constant dense<0.000000e+00> : vector<2x128xf32>
    %72 = tpu.matmul %71, %36, %cst_27 {dimension_numbers = #tpu.dot_dimension_numbers<[1], [0], [0], [1], [0, 0, 1, 1], [], []>} : vector<2x32xf32>, vector<32x128xf32>, vector<2x128xf32> -> vector<2x128xf32>
    %73 = arith.addf %17, %72 : vector<2x128xf32>
    %74 = vector.extract_strided_slice %73 {offsets = [0, 0], sizes = [2, 32], strides = [1, 1]} : vector<2x128xf32> to vector<2x32xf32>
    %75 = arith.negf %74 : vector<2x32xf32>
    %76 = math.exp %75 : vector<2x32xf32>
    %cst_28 = arith.constant 1.000000e+00 : f32
    %77 = vector.broadcast %cst_28 : f32 to vector<2x32xf32>
    %78 = arith.addf %77, %76 : vector<2x32xf32>
    %79 = arith.divf %77, %78 : vector<2x32xf32>
    %80 = vector.extract_strided_slice %73 {offsets = [0, 32], sizes = [2, 32], strides = [1, 1]} : vector<2x128xf32> to vector<2x32xf32>
    %81 = arith.negf %80 : vector<2x32xf32>
    %82 = math.exp %81 : vector<2x32xf32>
    %cst_29 = arith.constant 1.000000e+00 : f32
    %83 = vector.broadcast %cst_29 : f32 to vector<2x32xf32>
    %84 = arith.addf %83, %82 : vector<2x32xf32>
    %85 = arith.divf %83, %84 : vector<2x32xf32>
    %86 = vector.extract_strided_slice %73 {offsets = [0, 64], sizes = [2, 32], strides = [1, 1]} : vector<2x128xf32> to vector<2x32xf32>
    %87 = math.tanh %86 : vector<2x32xf32>
    %88 = vector.extract_strided_slice %73 {offsets = [0, 96], sizes = [2, 32], strides = [1, 1]} : vector<2x128xf32> to vector<2x32xf32>
    %89 = arith.negf %88 : vector<2x32xf32>
    %90 = math.exp %89 : vector<2x32xf32>
    %cst_30 = arith.constant 1.000000e+00 : f32
    %91 = vector.broadcast %cst_30 : f32 to vector<2x32xf32>
    %92 = arith.addf %91, %90 : vector<2x32xf32>
    %93 = arith.divf %91, %92 : vector<2x32xf32>
    %94 = arith.mulf %85, %69 : vector<2x32xf32>
    %95 = arith.mulf %79, %87 : vector<2x32xf32>
    %96 = arith.addf %94, %95 : vector<2x32xf32>
    %97 = math.tanh %96 : vector<2x32xf32>
    %98 = arith.mulf %93, %97 : vector<2x32xf32>
    %99 = tpu.concatenate %71, %42 in 1 : vector<2x32xf32>, vector<2x32xf32> -> vector<2x64xf32>
    %cst_31 = arith.constant dense<0.000000e+00> : vector<2x128xf32>
    %100 = tpu.matmul %99, %37, %cst_31 {dimension_numbers = #tpu.dot_dimension_numbers<[1], [0], [0], [1], [0, 0, 1, 1], [], []>} : vector<2x64xf32>, vector<64x128xf32>, vector<2x128xf32> -> vector<2x128xf32>
    %101 = vector.broadcast %38 : vector<1x128xf32> to vector<2x128xf32>
    %102 = arith.addf %100, %101 : vector<2x128xf32>
    %103 = vector.extract_strided_slice %102 {offsets = [0, 0], sizes = [2, 32], strides = [1, 1]} : vector<2x128xf32> to vector<2x32xf32>
    %104 = arith.negf %103 : vector<2x32xf32>
    %105 = math.exp %104 : vector<2x32xf32>
    %cst_32 = arith.constant 1.000000e+00 : f32
    %106 = vector.broadcast %cst_32 : f32 to vector<2x32xf32>
    %107 = arith.addf %106, %105 : vector<2x32xf32>
    %108 = arith.divf %106, %107 : vector<2x32xf32>
    %109 = vector.extract_strided_slice %102 {offsets = [0, 32], sizes = [2, 32], strides = [1, 1]} : vector<2x128xf32> to vector<2x32xf32>
    %110 = arith.negf %109 : vector<2x32xf32>
    %111 = math.exp %110 : vector<2x32xf32>
    %cst_33 = arith.constant 1.000000e+00 : f32
    %112 = vector.broadcast %cst_33 : f32 to vector<2x32xf32>
    %113 = arith.addf %112, %111 : vector<2x32xf32>
    %114 = arith.divf %112, %113 : vector<2x32xf32>
    %115 = vector.extract_strided_slice %102 {offsets = [0, 64], sizes = [2, 32], strides = [1, 1]} : vector<2x128xf32> to vector<2x32xf32>
    %116 = math.tanh %115 : vector<2x32xf32>
    %117 = vector.extract_strided_slice %102 {offsets = [0, 96], sizes = [2, 32], strides = [1, 1]} : vector<2x128xf32> to vector<2x32xf32>
    %118 = arith.negf %117 : vector<2x32xf32>
    %119 = math.exp %118 : vector<2x32xf32>
    %cst_34 = arith.constant 1.000000e+00 : f32
    %120 = vector.broadcast %cst_34 : f32 to vector<2x32xf32>
    %121 = arith.addf %120, %119 : vector<2x32xf32>
    %122 = arith.divf %120, %121 : vector<2x32xf32>
    %123 = arith.mulf %114, %44 : vector<2x32xf32>
    %124 = arith.mulf %108, %116 : vector<2x32xf32>
    %125 = arith.addf %123, %124 : vector<2x32xf32>
    %126 = math.tanh %125 : vector<2x32xf32>
    %127 = arith.mulf %122, %126 : vector<2x32xf32>
    %cst_35 = arith.constant dense<0.000000e+00> : vector<2x16xf32>
    %128 = tpu.matmul %127, %39, %cst_35 {dimension_numbers = #tpu.dot_dimension_numbers<[1], [0], [0], [1], [0, 0, 1, 1], [], []>} : vector<2x32xf32>, vector<32x16xf32>, vector<2x16xf32> -> vector<2x16xf32>
    %129 = vector.broadcast %40 : vector<1x16xf32> to vector<2x16xf32>
    %130 = arith.addf %128, %129 : vector<2x16xf32>
    %c0_36 = arith.constant 0 : index
    %c0_37 = arith.constant 0 : index
    %c0_38 = arith.constant 0 : index
    %131 = vector.load %arg8[%c0_36, %c0_37, %c0_38] : memref<2x8x16xf32, #tpu.memory_space<vmem>>, vector<2x1x16xf32>
    %132 = vector.shape_cast %131 : vector<2x1x16xf32> to vector<2x16xf32>
    %133 = vector.shape_cast %130 : vector<2x16xf32> to vector<2x1x16xf32>
    tpu.vector_store %arg8[%c0_36, %c0_37, %c0_38], %133 {strides = array<i32>} : memref<2x8x16xf32, #tpu.memory_space<vmem>>, vector<2x1x16xf32>,
    %cst_39 = arith.constant dense<0.000000e+00> : vector<2x128xf32>
    %134 = tpu.matmul %98, %36, %cst_39 {dimension_numbers = #tpu.dot_dimension_numbers<[1], [0], [0], [1], [0, 0, 1, 1], [], []>} : vector<2x32xf32>, vector<32x128xf32>, vector<2x128xf32> -> vector<2x128xf32>
    %135 = arith.addf %20, %134 : vector<2x128xf32>
    %136 = vector.extract_strided_slice %135 {offsets = [0, 0], sizes = [2, 32], strides = [1, 1]} : vector<2x128xf32> to vector<2x32xf32>
    %137 = arith.negf %136 : vector<2x32xf32>
    %138 = math.exp %137 : vector<2x32xf32>
    %cst_40 = arith.constant 1.000000e+00 : f32
    %139 = vector.broadcast %cst_40 : f32 to vector<2x32xf32>
    %140 = arith.addf %139, %138 : vector<2x32xf32>
    %141 = arith.divf %139, %140 : vector<2x32xf32>
    %142 = vector.extract_strided_slice %135 {offsets = [0, 32], sizes = [2, 32], strides = [1, 1]} : vector<2x128xf32> to vector<2x32xf32>
    %143 = arith.negf %142 : vector<2x32xf32>
    %144 = math.exp %143 : vector<2x32xf32>
    %cst_41 = arith.constant 1.000000e+00 : f32
    %145 = vector.broadcast %cst_41 : f32 to vector<2x32xf32>
    %146 = arith.addf %145, %144 : vector<2x32xf32>
    %147 = arith.divf %145, %146 : vector<2x32xf32>
    %148 = vector.extract_strided_slice %135 {offsets = [0, 64], sizes = [2, 32], strides = [1, 1]} : vector<2x128xf32> to vector<2x32xf32>
    %149 = math.tanh %148 : vector<2x32xf32>
    %150 = vector.extract_strided_slice %135 {offsets = [0, 96], sizes = [2, 32], strides = [1, 1]} : vector<2x128xf32> to vector<2x32xf32>
    %151 = arith.negf %150 : vector<2x32xf32>
    %152 = math.exp %151 : vector<2x32xf32>
    %cst_42 = arith.constant 1.000000e+00 : f32
    %153 = vector.broadcast %cst_42 : f32 to vector<2x32xf32>
    %154 = arith.addf %153, %152 : vector<2x32xf32>
    %155 = arith.divf %153, %154 : vector<2x32xf32>
    %156 = arith.mulf %147, %96 : vector<2x32xf32>
    %157 = arith.mulf %141, %149 : vector<2x32xf32>
    %158 = arith.addf %156, %157 : vector<2x32xf32>
    %159 = math.tanh %158 : vector<2x32xf32>
    %160 = arith.mulf %155, %159 : vector<2x32xf32>
    %161 = tpu.concatenate %98, %127 in 1 : vector<2x32xf32>, vector<2x32xf32> -> vector<2x64xf32>
    %cst_43 = arith.constant dense<0.000000e+00> : vector<2x128xf32>
    %162 = tpu.matmul %161, %37, %cst_43 {dimension_numbers = #tpu.dot_dimension_numbers<[1], [0], [0], [1], [0, 0, 1, 1], [], []>} : vector<2x64xf32>, vector<64x128xf32>, vector<2x128xf32> -> vector<2x128xf32>
    %163 = vector.broadcast %38 : vector<1x128xf32> to vector<2x128xf32>
    %164 = arith.addf %162, %163 : vector<2x128xf32>
    %165 = vector.extract_strided_slice %164 {offsets = [0, 0], sizes = [2, 32], strides = [1, 1]} : vector<2x128xf32> to vector<2x32xf32>
    %166 = arith.negf %165 : vector<2x32xf32>
    %167 = math.exp %166 : vector<2x32xf32>
    %cst_44 = arith.constant 1.000000e+00 : f32
    %168 = vector.broadcast %cst_44 : f32 to vector<2x32xf32>
    %169 = arith.addf %168, %167 : vector<2x32xf32>
    %170 = arith.divf %168, %169 : vector<2x32xf32>
    %171 = vector.extract_strided_slice %164 {offsets = [0, 32], sizes = [2, 32], strides = [1, 1]} : vector<2x128xf32> to vector<2x32xf32>
    %172 = arith.negf %171 : vector<2x32xf32>
    %173 = math.exp %172 : vector<2x32xf32>
    %cst_45 = arith.constant 1.000000e+00 : f32
    %174 = vector.broadcast %cst_45 : f32 to vector<2x32xf32>
    %175 = arith.addf %174, %173 : vector<2x32xf32>
    %176 = arith.divf %174, %175 : vector<2x32xf32>
    %177 = vector.extract_strided_slice %164 {offsets = [0, 64], sizes = [2, 32], strides = [1, 1]} : vector<2x128xf32> to vector<2x32xf32>
    %178 = math.tanh %177 : vector<2x32xf32>
    %179 = vector.extract_strided_slice %164 {offsets = [0, 96], sizes = [2, 32], strides = [1, 1]} : vector<2x128xf32> to vector<2x32xf32>
    %180 = arith.negf %179 : vector<2x32xf32>
    %181 = math.exp %180 : vector<2x32xf32>
    %cst_46 = arith.constant 1.000000e+00 : f32
    %182 = vector.broadcast %cst_46 : f32 to vector<2x32xf32>
    %183 = arith.addf %182, %181 : vector<2x32xf32>
    %184 = arith.divf %182, %183 : vector<2x32xf32>
    %185 = arith.mulf %176, %125 : vector<2x32xf32>
    %186 = arith.mulf %170, %178 : vector<2x32xf32>
    %187 = arith.addf %185, %186 : vector<2x32xf32>
    %188 = math.tanh %187 : vector<2x32xf32>
    %189 = arith.mulf %184, %188 : vector<2x32xf32>
    %cst_47 = arith.constant dense<0.000000e+00> : vector<2x16xf32>
    %190 = tpu.matmul %189, %39, %cst_47 {dimension_numbers = #tpu.dot_dimension_numbers<[1], [0], [0], [1], [0, 0, 1, 1], [], []>} : vector<2x32xf32>, vector<32x16xf32>, vector<2x16xf32> -> vector<2x16xf32>
    %191 = vector.broadcast %40 : vector<1x16xf32> to vector<2x16xf32>
    %192 = arith.addf %190, %191 : vector<2x16xf32>
    %c0_48 = arith.constant 0 : index
    %c1_49 = arith.constant 1 : index
    %c0_50 = arith.constant 0 : index
    %193 = vector.load %arg8[%c0_48, %c1_49, %c0_50] : memref<2x8x16xf32, #tpu.memory_space<vmem>>, vector<2x1x16xf32>
    %194 = vector.shape_cast %193 : vector<2x1x16xf32> to vector<2x16xf32>
    %195 = vector.shape_cast %192 : vector<2x16xf32> to vector<2x1x16xf32>
    tpu.vector_store %arg8[%c0_48, %c1_49, %c0_50], %195 {strides = array<i32>} : memref<2x8x16xf32, #tpu.memory_space<vmem>>, vector<2x1x16xf32>,
    %cst_51 = arith.constant dense<0.000000e+00> : vector<2x128xf32>
    %196 = tpu.matmul %160, %36, %cst_51 {dimension_numbers = #tpu.dot_dimension_numbers<[1], [0], [0], [1], [0, 0, 1, 1], [], []>} : vector<2x32xf32>, vector<32x128xf32>, vector<2x128xf32> -> vector<2x128xf32>
    %197 = arith.addf %23, %196 : vector<2x128xf32>
    %198 = vector.extract_strided_slice %197 {offsets = [0, 0], sizes = [2, 32], strides = [1, 1]} : vector<2x128xf32> to vector<2x32xf32>
    %199 = arith.negf %198 : vector<2x32xf32>
    %200 = math.exp %199 : vector<2x32xf32>
    %cst_52 = arith.constant 1.000000e+00 : f32
    %201 = vector.broadcast %cst_52 : f32 to vector<2x32xf32>
    %202 = arith.addf %201, %200 : vector<2x32xf32>
    %203 = arith.divf %201, %202 : vector<2x32xf32>
    %204 = vector.extract_strided_slice %197 {offsets = [0, 32], sizes = [2, 32], strides = [1, 1]} : vector<2x128xf32> to vector<2x32xf32>
    %205 = arith.negf %204 : vector<2x32xf32>
    %206 = math.exp %205 : vector<2x32xf32>
    %cst_53 = arith.constant 1.000000e+00 : f32
    %207 = vector.broadcast %cst_53 : f32 to vector<2x32xf32>
    %208 = arith.addf %207, %206 : vector<2x32xf32>
    %209 = arith.divf %207, %208 : vector<2x32xf32>
    %210 = vector.extract_strided_slice %197 {offsets = [0, 64], sizes = [2, 32], strides = [1, 1]} : vector<2x128xf32> to vector<2x32xf32>
    %211 = math.tanh %210 : vector<2x32xf32>
    %212 = vector.extract_strided_slice %197 {offsets = [0, 96], sizes = [2, 32], strides = [1, 1]} : vector<2x128xf32> to vector<2x32xf32>
    %213 = arith.negf %212 : vector<2x32xf32>
    %214 = math.exp %213 : vector<2x32xf32>
    %cst_54 = arith.constant 1.000000e+00 : f32
    %215 = vector.broadcast %cst_54 : f32 to vector<2x32xf32>
    %216 = arith.addf %215, %214 : vector<2x32xf32>
    %217 = arith.divf %215, %216 : vector<2x32xf32>
    %218 = arith.mulf %209, %158 : vector<2x32xf32>
    %219 = arith.mulf %203, %211 : vector<2x32xf32>
    %220 = arith.addf %218, %219 : vector<2x32xf32>
    %221 = math.tanh %220 : vector<2x32xf32>
    %222 = arith.mulf %217, %221 : vector<2x32xf32>
    %223 = tpu.concatenate %160, %189 in 1 : vector<2x32xf32>, vector<2x32xf32> -> vector<2x64xf32>
    %cst_55 = arith.constant dense<0.000000e+00> : vector<2x128xf32>
    %224 = tpu.matmul %223, %37, %cst_55 {dimension_numbers = #tpu.dot_dimension_numbers<[1], [0], [0], [1], [0, 0, 1, 1], [], []>} : vector<2x64xf32>, vector<64x128xf32>, vector<2x128xf32> -> vector<2x128xf32>
    %225 = vector.broadcast %38 : vector<1x128xf32> to vector<2x128xf32>
    %226 = arith.addf %224, %225 : vector<2x128xf32>
    %227 = vector.extract_strided_slice %226 {offsets = [0, 0], sizes = [2, 32], strides = [1, 1]} : vector<2x128xf32> to vector<2x32xf32>
    %228 = arith.negf %227 : vector<2x32xf32>
    %229 = math.exp %228 : vector<2x32xf32>
    %cst_56 = arith.constant 1.000000e+00 : f32
    %230 = vector.broadcast %cst_56 : f32 to vector<2x32xf32>
    %231 = arith.addf %230, %229 : vector<2x32xf32>
    %232 = arith.divf %230, %231 : vector<2x32xf32>
    %233 = vector.extract_strided_slice %226 {offsets = [0, 32], sizes = [2, 32], strides = [1, 1]} : vector<2x128xf32> to vector<2x32xf32>
    %234 = arith.negf %233 : vector<2x32xf32>
    %235 = math.exp %234 : vector<2x32xf32>
    %cst_57 = arith.constant 1.000000e+00 : f32
    %236 = vector.broadcast %cst_57 : f32 to vector<2x32xf32>
    %237 = arith.addf %236, %235 : vector<2x32xf32>
    %238 = arith.divf %236, %237 : vector<2x32xf32>
    %239 = vector.extract_strided_slice %226 {offsets = [0, 64], sizes = [2, 32], strides = [1, 1]} : vector<2x128xf32> to vector<2x32xf32>
    %240 = math.tanh %239 : vector<2x32xf32>
    %241 = vector.extract_strided_slice %226 {offsets = [0, 96], sizes = [2, 32], strides = [1, 1]} : vector<2x128xf32> to vector<2x32xf32>
    %242 = arith.negf %241 : vector<2x32xf32>
    %243 = math.exp %242 : vector<2x32xf32>
    %cst_58 = arith.constant 1.000000e+00 : f32
    %244 = vector.broadcast %cst_58 : f32 to vector<2x32xf32>
    %245 = arith.addf %244, %243 : vector<2x32xf32>
    %246 = arith.divf %244, %245 : vector<2x32xf32>
    %247 = arith.mulf %238, %187 : vector<2x32xf32>
    %248 = arith.mulf %232, %240 : vector<2x32xf32>
    %249 = arith.addf %247, %248 : vector<2x32xf32>
    %250 = math.tanh %249 : vector<2x32xf32>
    %251 = arith.mulf %246, %250 : vector<2x32xf32>
    %cst_59 = arith.constant dense<0.000000e+00> : vector<2x16xf32>
    %252 = tpu.matmul %251, %39, %cst_59 {dimension_numbers = #tpu.dot_dimension_numbers<[1], [0], [0], [1], [0, 0, 1, 1], [], []>} : vector<2x32xf32>, vector<32x16xf32>, vector<2x16xf32> -> vector<2x16xf32>
    %253 = vector.broadcast %40 : vector<1x16xf32> to vector<2x16xf32>
    %254 = arith.addf %252, %253 : vector<2x16xf32>
    %c0_60 = arith.constant 0 : index
    %c2 = arith.constant 2 : index
    %c0_61 = arith.constant 0 : index
    %255 = vector.load %arg8[%c0_60, %c2, %c0_61] : memref<2x8x16xf32, #tpu.memory_space<vmem>>, vector<2x1x16xf32>
    %256 = vector.shape_cast %255 : vector<2x1x16xf32> to vector<2x16xf32>
    %257 = vector.shape_cast %254 : vector<2x16xf32> to vector<2x1x16xf32>
    tpu.vector_store %arg8[%c0_60, %c2, %c0_61], %257 {strides = array<i32>} : memref<2x8x16xf32, #tpu.memory_space<vmem>>, vector<2x1x16xf32>,
    %cst_62 = arith.constant dense<0.000000e+00> : vector<2x128xf32>
    %258 = tpu.matmul %222, %36, %cst_62 {dimension_numbers = #tpu.dot_dimension_numbers<[1], [0], [0], [1], [0, 0, 1, 1], [], []>} : vector<2x32xf32>, vector<32x128xf32>, vector<2x128xf32> -> vector<2x128xf32>
    %259 = arith.addf %26, %258 : vector<2x128xf32>
    %260 = vector.extract_strided_slice %259 {offsets = [0, 0], sizes = [2, 32], strides = [1, 1]} : vector<2x128xf32> to vector<2x32xf32>
    %261 = arith.negf %260 : vector<2x32xf32>
    %262 = math.exp %261 : vector<2x32xf32>
    %cst_63 = arith.constant 1.000000e+00 : f32
    %263 = vector.broadcast %cst_63 : f32 to vector<2x32xf32>
    %264 = arith.addf %263, %262 : vector<2x32xf32>
    %265 = arith.divf %263, %264 : vector<2x32xf32>
    %266 = vector.extract_strided_slice %259 {offsets = [0, 32], sizes = [2, 32], strides = [1, 1]} : vector<2x128xf32> to vector<2x32xf32>
    %267 = arith.negf %266 : vector<2x32xf32>
    %268 = math.exp %267 : vector<2x32xf32>
    %cst_64 = arith.constant 1.000000e+00 : f32
    %269 = vector.broadcast %cst_64 : f32 to vector<2x32xf32>
    %270 = arith.addf %269, %268 : vector<2x32xf32>
    %271 = arith.divf %269, %270 : vector<2x32xf32>
    %272 = vector.extract_strided_slice %259 {offsets = [0, 64], sizes = [2, 32], strides = [1, 1]} : vector<2x128xf32> to vector<2x32xf32>
    %273 = math.tanh %272 : vector<2x32xf32>
    %274 = vector.extract_strided_slice %259 {offsets = [0, 96], sizes = [2, 32], strides = [1, 1]} : vector<2x128xf32> to vector<2x32xf32>
    %275 = arith.negf %274 : vector<2x32xf32>
    %276 = math.exp %275 : vector<2x32xf32>
    %cst_65 = arith.constant 1.000000e+00 : f32
    %277 = vector.broadcast %cst_65 : f32 to vector<2x32xf32>
    %278 = arith.addf %277, %276 : vector<2x32xf32>
    %279 = arith.divf %277, %278 : vector<2x32xf32>
    %280 = arith.mulf %271, %220 : vector<2x32xf32>
    %281 = arith.mulf %265, %273 : vector<2x32xf32>
    %282 = arith.addf %280, %281 : vector<2x32xf32>
    %283 = math.tanh %282 : vector<2x32xf32>
    %284 = arith.mulf %279, %283 : vector<2x32xf32>
    %285 = tpu.concatenate %222, %251 in 1 : vector<2x32xf32>, vector<2x32xf32> -> vector<2x64xf32>
    %cst_66 = arith.constant dense<0.000000e+00> : vector<2x128xf32>
    %286 = tpu.matmul %285, %37, %cst_66 {dimension_numbers = #tpu.dot_dimension_numbers<[1], [0], [0], [1], [0, 0, 1, 1], [], []>} : vector<2x64xf32>, vector<64x128xf32>, vector<2x128xf32> -> vector<2x128xf32>
    %287 = vector.broadcast %38 : vector<1x128xf32> to vector<2x128xf32>
    %288 = arith.addf %286, %287 : vector<2x128xf32>
    %289 = vector.extract_strided_slice %288 {offsets = [0, 0], sizes = [2, 32], strides = [1, 1]} : vector<2x128xf32> to vector<2x32xf32>
    %290 = arith.negf %289 : vector<2x32xf32>
    %291 = math.exp %290 : vector<2x32xf32>
    %cst_67 = arith.constant 1.000000e+00 : f32
    %292 = vector.broadcast %cst_67 : f32 to vector<2x32xf32>
    %293 = arith.addf %292, %291 : vector<2x32xf32>
    %294 = arith.divf %292, %293 : vector<2x32xf32>
    %295 = vector.extract_strided_slice %288 {offsets = [0, 32], sizes = [2, 32], strides = [1, 1]} : vector<2x128xf32> to vector<2x32xf32>
    %296 = arith.negf %295 : vector<2x32xf32>
    %297 = math.exp %296 : vector<2x32xf32>
    %cst_68 = arith.constant 1.000000e+00 : f32
    %298 = vector.broadcast %cst_68 : f32 to vector<2x32xf32>
    %299 = arith.addf %298, %297 : vector<2x32xf32>
    %300 = arith.divf %298, %299 : vector<2x32xf32>
    %301 = vector.extract_strided_slice %288 {offsets = [0, 64], sizes = [2, 32], strides = [1, 1]} : vector<2x128xf32> to vector<2x32xf32>
    %302 = math.tanh %301 : vector<2x32xf32>
    %303 = vector.extract_strided_slice %288 {offsets = [0, 96], sizes = [2, 32], strides = [1, 1]} : vector<2x128xf32> to vector<2x32xf32>
    %304 = arith.negf %303 : vector<2x32xf32>
    %305 = math.exp %304 : vector<2x32xf32>
    %cst_69 = arith.constant 1.000000e+00 : f32
    %306 = vector.broadcast %cst_69 : f32 to vector<2x32xf32>
    %307 = arith.addf %306, %305 : vector<2x32xf32>
    %308 = arith.divf %306, %307 : vector<2x32xf32>
    %309 = arith.mulf %300, %249 : vector<2x32xf32>
    %310 = arith.mulf %294, %302 : vector<2x32xf32>
    %311 = arith.addf %309, %310 : vector<2x32xf32>
    %312 = math.tanh %311 : vector<2x32xf32>
    %313 = arith.mulf %308, %312 : vector<2x32xf32>
    %cst_70 = arith.constant dense<0.000000e+00> : vector<2x16xf32>
    %314 = tpu.matmul %313, %39, %cst_70 {dimension_numbers = #tpu.dot_dimension_numbers<[1], [0], [0], [1], [0, 0, 1, 1], [], []>} : vector<2x32xf32>, vector<32x16xf32>, vector<2x16xf32> -> vector<2x16xf32>
    %315 = vector.broadcast %40 : vector<1x16xf32> to vector<2x16xf32>
    %316 = arith.addf %314, %315 : vector<2x16xf32>
    %c0_71 = arith.constant 0 : index
    %c3 = arith.constant 3 : index
    %c0_72 = arith.constant 0 : index
    %317 = vector.load %arg8[%c0_71, %c3, %c0_72] : memref<2x8x16xf32, #tpu.memory_space<vmem>>, vector<2x1x16xf32>
    %318 = vector.shape_cast %317 : vector<2x1x16xf32> to vector<2x16xf32>
    %319 = vector.shape_cast %316 : vector<2x16xf32> to vector<2x1x16xf32>
    tpu.vector_store %arg8[%c0_71, %c3, %c0_72], %319 {strides = array<i32>} : memref<2x8x16xf32, #tpu.memory_space<vmem>>, vector<2x1x16xf32>,
    %cst_73 = arith.constant dense<0.000000e+00> : vector<2x128xf32>
    %320 = tpu.matmul %284, %36, %cst_73 {dimension_numbers = #tpu.dot_dimension_numbers<[1], [0], [0], [1], [0, 0, 1, 1], [], []>} : vector<2x32xf32>, vector<32x128xf32>, vector<2x128xf32> -> vector<2x128xf32>
    %321 = arith.addf %29, %320 : vector<2x128xf32>
    %322 = vector.extract_strided_slice %321 {offsets = [0, 0], sizes = [2, 32], strides = [1, 1]} : vector<2x128xf32> to vector<2x32xf32>
    %323 = arith.negf %322 : vector<2x32xf32>
    %324 = math.exp %323 : vector<2x32xf32>
    %cst_74 = arith.constant 1.000000e+00 : f32
    %325 = vector.broadcast %cst_74 : f32 to vector<2x32xf32>
    %326 = arith.addf %325, %324 : vector<2x32xf32>
    %327 = arith.divf %325, %326 : vector<2x32xf32>
    %328 = vector.extract_strided_slice %321 {offsets = [0, 32], sizes = [2, 32], strides = [1, 1]} : vector<2x128xf32> to vector<2x32xf32>
    %329 = arith.negf %328 : vector<2x32xf32>
    %330 = math.exp %329 : vector<2x32xf32>
    %cst_75 = arith.constant 1.000000e+00 : f32
    %331 = vector.broadcast %cst_75 : f32 to vector<2x32xf32>
    %332 = arith.addf %331, %330 : vector<2x32xf32>
    %333 = arith.divf %331, %332 : vector<2x32xf32>
    %334 = vector.extract_strided_slice %321 {offsets = [0, 64], sizes = [2, 32], strides = [1, 1]} : vector<2x128xf32> to vector<2x32xf32>
    %335 = math.tanh %334 : vector<2x32xf32>
    %336 = vector.extract_strided_slice %321 {offsets = [0, 96], sizes = [2, 32], strides = [1, 1]} : vector<2x128xf32> to vector<2x32xf32>
    %337 = arith.negf %336 : vector<2x32xf32>
    %338 = math.exp %337 : vector<2x32xf32>
    %cst_76 = arith.constant 1.000000e+00 : f32
    %339 = vector.broadcast %cst_76 : f32 to vector<2x32xf32>
    %340 = arith.addf %339, %338 : vector<2x32xf32>
    %341 = arith.divf %339, %340 : vector<2x32xf32>
    %342 = arith.mulf %333, %282 : vector<2x32xf32>
    %343 = arith.mulf %327, %335 : vector<2x32xf32>
    %344 = arith.addf %342, %343 : vector<2x32xf32>
    %345 = math.tanh %344 : vector<2x32xf32>
    %346 = arith.mulf %341, %345 : vector<2x32xf32>
    %347 = tpu.concatenate %284, %313 in 1 : vector<2x32xf32>, vector<2x32xf32> -> vector<2x64xf32>
    %cst_77 = arith.constant dense<0.000000e+00> : vector<2x128xf32>
    %348 = tpu.matmul %347, %37, %cst_77 {dimension_numbers = #tpu.dot_dimension_numbers<[1], [0], [0], [1], [0, 0, 1, 1], [], []>} : vector<2x64xf32>, vector<64x128xf32>, vector<2x128xf32> -> vector<2x128xf32>
    %349 = vector.broadcast %38 : vector<1x128xf32> to vector<2x128xf32>
    %350 = arith.addf %348, %349 : vector<2x128xf32>
    %351 = vector.extract_strided_slice %350 {offsets = [0, 0], sizes = [2, 32], strides = [1, 1]} : vector<2x128xf32> to vector<2x32xf32>
    %352 = arith.negf %351 : vector<2x32xf32>
    %353 = math.exp %352 : vector<2x32xf32>
    %cst_78 = arith.constant 1.000000e+00 : f32
    %354 = vector.broadcast %cst_78 : f32 to vector<2x32xf32>
    %355 = arith.addf %354, %353 : vector<2x32xf32>
    %356 = arith.divf %354, %355 : vector<2x32xf32>
    %357 = vector.extract_strided_slice %350 {offsets = [0, 32], sizes = [2, 32], strides = [1, 1]} : vector<2x128xf32> to vector<2x32xf32>
    %358 = arith.negf %357 : vector<2x32xf32>
    %359 = math.exp %358 : vector<2x32xf32>
    %cst_79 = arith.constant 1.000000e+00 : f32
    %360 = vector.broadcast %cst_79 : f32 to vector<2x32xf32>
    %361 = arith.addf %360, %359 : vector<2x32xf32>
    %362 = arith.divf %360, %361 : vector<2x32xf32>
    %363 = vector.extract_strided_slice %350 {offsets = [0, 64], sizes = [2, 32], strides = [1, 1]} : vector<2x128xf32> to vector<2x32xf32>
    %364 = math.tanh %363 : vector<2x32xf32>
    %365 = vector.extract_strided_slice %350 {offsets = [0, 96], sizes = [2, 32], strides = [1, 1]} : vector<2x128xf32> to vector<2x32xf32>
    %366 = arith.negf %365 : vector<2x32xf32>
    %367 = math.exp %366 : vector<2x32xf32>
    %cst_80 = arith.constant 1.000000e+00 : f32
    %368 = vector.broadcast %cst_80 : f32 to vector<2x32xf32>
    %369 = arith.addf %368, %367 : vector<2x32xf32>
    %370 = arith.divf %368, %369 : vector<2x32xf32>
    %371 = arith.mulf %362, %311 : vector<2x32xf32>
    %372 = arith.mulf %356, %364 : vector<2x32xf32>
    %373 = arith.addf %371, %372 : vector<2x32xf32>
    %374 = math.tanh %373 : vector<2x32xf32>
    %375 = arith.mulf %370, %374 : vector<2x32xf32>
    %cst_81 = arith.constant dense<0.000000e+00> : vector<2x16xf32>
    %376 = tpu.matmul %375, %39, %cst_81 {dimension_numbers = #tpu.dot_dimension_numbers<[1], [0], [0], [1], [0, 0, 1, 1], [], []>} : vector<2x32xf32>, vector<32x16xf32>, vector<2x16xf32> -> vector<2x16xf32>
    %377 = vector.broadcast %40 : vector<1x16xf32> to vector<2x16xf32>
    %378 = arith.addf %376, %377 : vector<2x16xf32>
    %c0_82 = arith.constant 0 : index
    %c4 = arith.constant 4 : index
    %c0_83 = arith.constant 0 : index
    %379 = vector.load %arg8[%c0_82, %c4, %c0_83] : memref<2x8x16xf32, #tpu.memory_space<vmem>>, vector<2x1x16xf32>
    %380 = vector.shape_cast %379 : vector<2x1x16xf32> to vector<2x16xf32>
    %381 = vector.shape_cast %378 : vector<2x16xf32> to vector<2x1x16xf32>
    tpu.vector_store %arg8[%c0_82, %c4, %c0_83], %381 {strides = array<i32>} : memref<2x8x16xf32, #tpu.memory_space<vmem>>, vector<2x1x16xf32>,
    %cst_84 = arith.constant dense<0.000000e+00> : vector<2x128xf32>
    %382 = tpu.matmul %346, %36, %cst_84 {dimension_numbers = #tpu.dot_dimension_numbers<[1], [0], [0], [1], [0, 0, 1, 1], [], []>} : vector<2x32xf32>, vector<32x128xf32>, vector<2x128xf32> -> vector<2x128xf32>
    %383 = arith.addf %32, %382 : vector<2x128xf32>
    %384 = vector.extract_strided_slice %383 {offsets = [0, 0], sizes = [2, 32], strides = [1, 1]} : vector<2x128xf32> to vector<2x32xf32>
    %385 = arith.negf %384 : vector<2x32xf32>
    %386 = math.exp %385 : vector<2x32xf32>
    %cst_85 = arith.constant 1.000000e+00 : f32
    %387 = vector.broadcast %cst_85 : f32 to vector<2x32xf32>
    %388 = arith.addf %387, %386 : vector<2x32xf32>
    %389 = arith.divf %387, %388 : vector<2x32xf32>
    %390 = vector.extract_strided_slice %383 {offsets = [0, 32], sizes = [2, 32], strides = [1, 1]} : vector<2x128xf32> to vector<2x32xf32>
    %391 = arith.negf %390 : vector<2x32xf32>
    %392 = math.exp %391 : vector<2x32xf32>
    %cst_86 = arith.constant 1.000000e+00 : f32
    %393 = vector.broadcast %cst_86 : f32 to vector<2x32xf32>
    %394 = arith.addf %393, %392 : vector<2x32xf32>
    %395 = arith.divf %393, %394 : vector<2x32xf32>
    %396 = vector.extract_strided_slice %383 {offsets = [0, 64], sizes = [2, 32], strides = [1, 1]} : vector<2x128xf32> to vector<2x32xf32>
    %397 = math.tanh %396 : vector<2x32xf32>
    %398 = vector.extract_strided_slice %383 {offsets = [0, 96], sizes = [2, 32], strides = [1, 1]} : vector<2x128xf32> to vector<2x32xf32>
    %399 = arith.negf %398 : vector<2x32xf32>
    %400 = math.exp %399 : vector<2x32xf32>
    %cst_87 = arith.constant 1.000000e+00 : f32
    %401 = vector.broadcast %cst_87 : f32 to vector<2x32xf32>
    %402 = arith.addf %401, %400 : vector<2x32xf32>
    %403 = arith.divf %401, %402 : vector<2x32xf32>
    %404 = arith.mulf %395, %344 : vector<2x32xf32>
    %405 = arith.mulf %389, %397 : vector<2x32xf32>
    %406 = arith.addf %404, %405 : vector<2x32xf32>
    %407 = math.tanh %406 : vector<2x32xf32>
    %408 = arith.mulf %403, %407 : vector<2x32xf32>
    %409 = tpu.concatenate %346, %375 in 1 : vector<2x32xf32>, vector<2x32xf32> -> vector<2x64xf32>
    %cst_88 = arith.constant dense<0.000000e+00> : vector<2x128xf32>
    %410 = tpu.matmul %409, %37, %cst_88 {dimension_numbers = #tpu.dot_dimension_numbers<[1], [0], [0], [1], [0, 0, 1, 1], [], []>} : vector<2x64xf32>, vector<64x128xf32>, vector<2x128xf32> -> vector<2x128xf32>
    %411 = vector.broadcast %38 : vector<1x128xf32> to vector<2x128xf32>
    %412 = arith.addf %410, %411 : vector<2x128xf32>
    %413 = vector.extract_strided_slice %412 {offsets = [0, 0], sizes = [2, 32], strides = [1, 1]} : vector<2x128xf32> to vector<2x32xf32>
    %414 = arith.negf %413 : vector<2x32xf32>
    %415 = math.exp %414 : vector<2x32xf32>
    %cst_89 = arith.constant 1.000000e+00 : f32
    %416 = vector.broadcast %cst_89 : f32 to vector<2x32xf32>
    %417 = arith.addf %416, %415 : vector<2x32xf32>
    %418 = arith.divf %416, %417 : vector<2x32xf32>
    %419 = vector.extract_strided_slice %412 {offsets = [0, 32], sizes = [2, 32], strides = [1, 1]} : vector<2x128xf32> to vector<2x32xf32>
    %420 = arith.negf %419 : vector<2x32xf32>
    %421 = math.exp %420 : vector<2x32xf32>
    %cst_90 = arith.constant 1.000000e+00 : f32
    %422 = vector.broadcast %cst_90 : f32 to vector<2x32xf32>
    %423 = arith.addf %422, %421 : vector<2x32xf32>
    %424 = arith.divf %422, %423 : vector<2x32xf32>
    %425 = vector.extract_strided_slice %412 {offsets = [0, 64], sizes = [2, 32], strides = [1, 1]} : vector<2x128xf32> to vector<2x32xf32>
    %426 = math.tanh %425 : vector<2x32xf32>
    %427 = vector.extract_strided_slice %412 {offsets = [0, 96], sizes = [2, 32], strides = [1, 1]} : vector<2x128xf32> to vector<2x32xf32>
    %428 = arith.negf %427 : vector<2x32xf32>
    %429 = math.exp %428 : vector<2x32xf32>
    %cst_91 = arith.constant 1.000000e+00 : f32
    %430 = vector.broadcast %cst_91 : f32 to vector<2x32xf32>
    %431 = arith.addf %430, %429 : vector<2x32xf32>
    %432 = arith.divf %430, %431 : vector<2x32xf32>
    %433 = arith.mulf %424, %373 : vector<2x32xf32>
    %434 = arith.mulf %418, %426 : vector<2x32xf32>
    %435 = arith.addf %433, %434 : vector<2x32xf32>
    %436 = math.tanh %435 : vector<2x32xf32>
    %437 = arith.mulf %432, %436 : vector<2x32xf32>
    %cst_92 = arith.constant dense<0.000000e+00> : vector<2x16xf32>
    %438 = tpu.matmul %437, %39, %cst_92 {dimension_numbers = #tpu.dot_dimension_numbers<[1], [0], [0], [1], [0, 0, 1, 1], [], []>} : vector<2x32xf32>, vector<32x16xf32>, vector<2x16xf32> -> vector<2x16xf32>
    %439 = vector.broadcast %40 : vector<1x16xf32> to vector<2x16xf32>
    %440 = arith.addf %438, %439 : vector<2x16xf32>
    %c0_93 = arith.constant 0 : index
    %c5 = arith.constant 5 : index
    %c0_94 = arith.constant 0 : index
    %441 = vector.load %arg8[%c0_93, %c5, %c0_94] : memref<2x8x16xf32, #tpu.memory_space<vmem>>, vector<2x1x16xf32>
    %442 = vector.shape_cast %441 : vector<2x1x16xf32> to vector<2x16xf32>
    %443 = vector.shape_cast %440 : vector<2x16xf32> to vector<2x1x16xf32>
    tpu.vector_store %arg8[%c0_93, %c5, %c0_94], %443 {strides = array<i32>} : memref<2x8x16xf32, #tpu.memory_space<vmem>>, vector<2x1x16xf32>,
    %cst_95 = arith.constant dense<0.000000e+00> : vector<2x128xf32>
    %444 = tpu.matmul %408, %36, %cst_95 {dimension_numbers = #tpu.dot_dimension_numbers<[1], [0], [0], [1], [0, 0, 1, 1], [], []>} : vector<2x32xf32>, vector<32x128xf32>, vector<2x128xf32> -> vector<2x128xf32>
    %445 = arith.addf %35, %444 : vector<2x128xf32>
    %446 = vector.extract_strided_slice %445 {offsets = [0, 0], sizes = [2, 32], strides = [1, 1]} : vector<2x128xf32> to vector<2x32xf32>
    %447 = arith.negf %446 : vector<2x32xf32>
    %448 = math.exp %447 : vector<2x32xf32>
    %cst_96 = arith.constant 1.000000e+00 : f32
    %449 = vector.broadcast %cst_96 : f32 to vector<2x32xf32>
    %450 = arith.addf %449, %448 : vector<2x32xf32>
    %451 = arith.divf %449, %450 : vector<2x32xf32>
    %452 = vector.extract_strided_slice %445 {offsets = [0, 32], sizes = [2, 32], strides = [1, 1]} : vector<2x128xf32> to vector<2x32xf32>
    %453 = arith.negf %452 : vector<2x32xf32>
    %454 = math.exp %453 : vector<2x32xf32>
    %cst_97 = arith.constant 1.000000e+00 : f32
    %455 = vector.broadcast %cst_97 : f32 to vector<2x32xf32>
    %456 = arith.addf %455, %454 : vector<2x32xf32>
    %457 = arith.divf %455, %456 : vector<2x32xf32>
    %458 = vector.extract_strided_slice %445 {offsets = [0, 64], sizes = [2, 32], strides = [1, 1]} : vector<2x128xf32> to vector<2x32xf32>
    %459 = math.tanh %458 : vector<2x32xf32>
    %460 = vector.extract_strided_slice %445 {offsets = [0, 96], sizes = [2, 32], strides = [1, 1]} : vector<2x128xf32> to vector<2x32xf32>
    %461 = arith.negf %460 : vector<2x32xf32>
    %462 = math.exp %461 : vector<2x32xf32>
    %cst_98 = arith.constant 1.000000e+00 : f32
    %463 = vector.broadcast %cst_98 : f32 to vector<2x32xf32>
    %464 = arith.addf %463, %462 : vector<2x32xf32>
    %465 = arith.divf %463, %464 : vector<2x32xf32>
    %466 = arith.mulf %457, %406 : vector<2x32xf32>
    %467 = arith.mulf %451, %459 : vector<2x32xf32>
    %468 = arith.addf %466, %467 : vector<2x32xf32>
    %469 = math.tanh %468 : vector<2x32xf32>
    %470 = arith.mulf %465, %469 : vector<2x32xf32>
    %471 = tpu.concatenate %408, %437 in 1 : vector<2x32xf32>, vector<2x32xf32> -> vector<2x64xf32>
    %cst_99 = arith.constant dense<0.000000e+00> : vector<2x128xf32>
    %472 = tpu.matmul %471, %37, %cst_99 {dimension_numbers = #tpu.dot_dimension_numbers<[1], [0], [0], [1], [0, 0, 1, 1], [], []>} : vector<2x64xf32>, vector<64x128xf32>, vector<2x128xf32> -> vector<2x128xf32>
    %473 = vector.broadcast %38 : vector<1x128xf32> to vector<2x128xf32>
    %474 = arith.addf %472, %473 : vector<2x128xf32>
    %475 = vector.extract_strided_slice %474 {offsets = [0, 0], sizes = [2, 32], strides = [1, 1]} : vector<2x128xf32> to vector<2x32xf32>
    %476 = arith.negf %475 : vector<2x32xf32>
    %477 = math.exp %476 : vector<2x32xf32>
    %cst_100 = arith.constant 1.000000e+00 : f32
    %478 = vector.broadcast %cst_100 : f32 to vector<2x32xf32>
    %479 = arith.addf %478, %477 : vector<2x32xf32>
    %480 = arith.divf %478, %479 : vector<2x32xf32>
    %481 = vector.extract_strided_slice %474 {offsets = [0, 32], sizes = [2, 32], strides = [1, 1]} : vector<2x128xf32> to vector<2x32xf32>
    %482 = arith.negf %481 : vector<2x32xf32>
    %483 = math.exp %482 : vector<2x32xf32>
    %cst_101 = arith.constant 1.000000e+00 : f32
    %484 = vector.broadcast %cst_101 : f32 to vector<2x32xf32>
    %485 = arith.addf %484, %483 : vector<2x32xf32>
    %486 = arith.divf %484, %485 : vector<2x32xf32>
    %487 = vector.extract_strided_slice %474 {offsets = [0, 64], sizes = [2, 32], strides = [1, 1]} : vector<2x128xf32> to vector<2x32xf32>
    %488 = math.tanh %487 : vector<2x32xf32>
    %489 = vector.extract_strided_slice %474 {offsets = [0, 96], sizes = [2, 32], strides = [1, 1]} : vector<2x128xf32> to vector<2x32xf32>
    %490 = arith.negf %489 : vector<2x32xf32>
    %491 = math.exp %490 : vector<2x32xf32>
    %cst_102 = arith.constant 1.000000e+00 : f32
    %492 = vector.broadcast %cst_102 : f32 to vector<2x32xf32>
    %493 = arith.addf %492, %491 : vector<2x32xf32>
    %494 = arith.divf %492, %493 : vector<2x32xf32>
    %495 = arith.mulf %486, %435 : vector<2x32xf32>
    %496 = arith.mulf %480, %488 : vector<2x32xf32>
    %497 = arith.addf %495, %496 : vector<2x32xf32>
    %498 = math.tanh %497 : vector<2x32xf32>
    %499 = arith.mulf %494, %498 : vector<2x32xf32>
    %cst_103 = arith.constant dense<0.000000e+00> : vector<2x16xf32>
    %500 = tpu.matmul %499, %39, %cst_103 {dimension_numbers = #tpu.dot_dimension_numbers<[1], [0], [0], [1], [0, 0, 1, 1], [], []>} : vector<2x32xf32>, vector<32x16xf32>, vector<2x16xf32> -> vector<2x16xf32>
    %501 = vector.broadcast %40 : vector<1x16xf32> to vector<2x16xf32>
    %502 = arith.addf %500, %501 : vector<2x16xf32>
    %c0_104 = arith.constant 0 : index
    %c6 = arith.constant 6 : index
    %c0_105 = arith.constant 0 : index
    %503 = vector.load %arg8[%c0_104, %c6, %c0_105] : memref<2x8x16xf32, #tpu.memory_space<vmem>>, vector<2x1x16xf32>
    %504 = vector.shape_cast %503 : vector<2x1x16xf32> to vector<2x16xf32>
    %505 = vector.shape_cast %502 : vector<2x16xf32> to vector<2x1x16xf32>
    tpu.vector_store %arg8[%c0_104, %c6, %c0_105], %505 {strides = array<i32>} : memref<2x8x16xf32, #tpu.memory_space<vmem>>, vector<2x1x16xf32>,
    %506 = tpu.concatenate %470, %499 in 1 : vector<2x32xf32>, vector<2x32xf32> -> vector<2x64xf32>
    %cst_106 = arith.constant dense<0.000000e+00> : vector<2x128xf32>
    %507 = tpu.matmul %506, %37, %cst_106 {dimension_numbers = #tpu.dot_dimension_numbers<[1], [0], [0], [1], [0, 0, 1, 1], [], []>} : vector<2x64xf32>, vector<64x128xf32>, vector<2x128xf32> -> vector<2x128xf32>
    %508 = vector.broadcast %38 : vector<1x128xf32> to vector<2x128xf32>
    %509 = arith.addf %507, %508 : vector<2x128xf32>
    %510 = vector.extract_strided_slice %509 {offsets = [0, 0], sizes = [2, 32], strides = [1, 1]} : vector<2x128xf32> to vector<2x32xf32>
    %511 = arith.negf %510 : vector<2x32xf32>
    %512 = math.exp %511 : vector<2x32xf32>
    %cst_107 = arith.constant 1.000000e+00 : f32
    %513 = vector.broadcast %cst_107 : f32 to vector<2x32xf32>
    %514 = arith.addf %513, %512 : vector<2x32xf32>
    %515 = arith.divf %513, %514 : vector<2x32xf32>
    %516 = vector.extract_strided_slice %509 {offsets = [0, 32], sizes = [2, 32], strides = [1, 1]} : vector<2x128xf32> to vector<2x32xf32>
    %517 = arith.negf %516 : vector<2x32xf32>
    %518 = math.exp %517 : vector<2x32xf32>
    %cst_108 = arith.constant 1.000000e+00 : f32
    %519 = vector.broadcast %cst_108 : f32 to vector<2x32xf32>
    %520 = arith.addf %519, %518 : vector<2x32xf32>
    %521 = arith.divf %519, %520 : vector<2x32xf32>
    %522 = vector.extract_strided_slice %509 {offsets = [0, 64], sizes = [2, 32], strides = [1, 1]} : vector<2x128xf32> to vector<2x32xf32>
    %523 = math.tanh %522 : vector<2x32xf32>
    %524 = vector.extract_strided_slice %509 {offsets = [0, 96], sizes = [2, 32], strides = [1, 1]} : vector<2x128xf32> to vector<2x32xf32>
    %525 = arith.negf %524 : vector<2x32xf32>
    %526 = math.exp %525 : vector<2x32xf32>
    %cst_109 = arith.constant 1.000000e+00 : f32
    %527 = vector.broadcast %cst_109 : f32 to vector<2x32xf32>
    %528 = arith.addf %527, %526 : vector<2x32xf32>
    %529 = arith.divf %527, %528 : vector<2x32xf32>
    %530 = arith.mulf %521, %497 : vector<2x32xf32>
    %531 = arith.mulf %515, %523 : vector<2x32xf32>
    %532 = arith.addf %530, %531 : vector<2x32xf32>
    %533 = math.tanh %532 : vector<2x32xf32>
    %534 = arith.mulf %529, %533 : vector<2x32xf32>
    %cst_110 = arith.constant dense<0.000000e+00> : vector<2x16xf32>
    %535 = tpu.matmul %534, %39, %cst_110 {dimension_numbers = #tpu.dot_dimension_numbers<[1], [0], [0], [1], [0, 0, 1, 1], [], []>} : vector<2x32xf32>, vector<32x16xf32>, vector<2x16xf32> -> vector<2x16xf32>
    %536 = vector.broadcast %40 : vector<1x16xf32> to vector<2x16xf32>
    %537 = arith.addf %535, %536 : vector<2x16xf32>
    %c0_111 = arith.constant 0 : index
    %c7 = arith.constant 7 : index
    %c0_112 = arith.constant 0 : index
    %538 = vector.load %arg8[%c0_111, %c7, %c0_112] : memref<2x8x16xf32, #tpu.memory_space<vmem>>, vector<2x1x16xf32>
    %539 = vector.shape_cast %538 : vector<2x1x16xf32> to vector<2x16xf32>
    %540 = vector.shape_cast %537 : vector<2x16xf32> to vector<2x1x16xf32>
    tpu.vector_store %arg8[%c0_111, %c7, %c0_112], %540 {strides = array<i32>} : memref<2x8x16xf32, #tpu.memory_space<vmem>>, vector<2x1x16xf32>,
    return
  }
}

</mosaic_0001>

<llo_original>
// kernel: music_rnn_forward.1
$region0: #{music_rnn_forward.1}
  #allocation0 [shape = 'u32[]', space=smem, size = 0x4, offset = 0x4, fixed_abs, tag = 'smem constant byte address 0x4 - core index']
  #allocation1 [shape = 'u32[144,128]{1,0:T(1,128)}', space=vmem, size = 0x12000, scoped, tag = 'internal scratch']
  %s0 = inlined_call_operand.hbm [shape: f32[2,8,16], index: 0, kind: input, shape index: {}]
  %s1 = inlined_call_operand.hbm [shape: f32[16,128], index: 1, kind: input, shape index: {}]
  %s2 = inlined_call_operand.hbm [shape: f32[32,128], index: 2, kind: input, shape index: {}]
  %s3 = inlined_call_operand.vmem [shape: f32[1,128], index: 3, kind: input, shape index: {}]
  %s4 = inlined_call_operand.vmem [shape: f32[64,128], index: 4, kind: input, shape index: {}]
  %s5 = inlined_call_operand.vmem [shape: f32[1,128], index: 5, kind: input, shape index: {}]
  %s6 = inlined_call_operand.vmem [shape: f32[32,16], index: 6, kind: input, shape index: {}]
  %s7 = inlined_call_operand.vmem [shape: f32[1,16], index: 7, kind: input, shape index: {}]
  %s8 = inlined_call_operand.hbm [shape: f32[2,8,16], index: 8, kind: output, shape index: {}]
  %s9 = sld [smem:[#allocation0]]
  $region54: #{music_rnn_forward.1} parent=0
    _
  %s11 = ssub.s32 1, %s9
  %s12 = scalar_select 0, %s11, %s9
  $region1: #{music_rnn_forward.1} parent=0
    #allocation2 [shape = 'u8[8192]{0}', space=vmem, size = 0x2000, scoped, tag = 'input window, operand 0, single buffered']
    #allocation3 [shape = 's32[1]{0}', space=sflag, size = 0x4, scoped, tag = 'scoped memory for music_rnn_forward.1']
    #allocation4 [shape = 's32[1]{0}', space=sflag, size = 0x4, scoped, tag = 'scoped memory for music_rnn_forward.1']
    #allocation5 [shape = 'u8[8192]{0}', space=vmem, size = 0x2000, scoped, tag = 'input window, operand 1, single buffered']
    #allocation6 [shape = 's32[1]{0}', space=sflag, size = 0x4, scoped, tag = 'scoped memory for music_rnn_forward.1']
    #allocation7 [shape = 'u8[16384]{0}', space=vmem, size = 0x4000, scoped, tag = 'input window, operand 2, single buffered']
    #allocation8 [shape = 'u8[8192]{0}', space=vmem, size = 0x2000, scoped, tag = 'output window, operand 0, single buffered']
    %13 = vsyncpa [#allocation3], 0
    %14 = vsyncpa [#allocation6], 0
    %15 = vsyncpa [#allocation4], 0
    // Predicated region
    $region2: #{music_rnn_forward.1} parent=1 // pred_check
      _
    $region3: #{music_rnn_forward.1} parent=1 // pred_check_branch
      %17 = sbr.rel (0) target = $region5
    $region4: #{music_rnn_forward.1} parent=1 // pred_region
      %s19 = ssub.s32 256, 256
      %20 = vsyncadd [#allocation3], %s19
      %s21 = sshll.u32 [#allocation2], 4
      %s22 = int_to_ptr.vmem [resolvable:$true] %s21
      %27 = dma.hbm_to_vmem [thread:$0]  %s0, 256, %s22, [#allocation3], 128, 128, 8
    $region5: #{music_rnn_forward.1} parent=1 // pred_fallthru
      _
    // Predicated region
    $region6: #{music_rnn_forward.1} parent=1 // pred_check
      _
    $region7: #{music_rnn_forward.1} parent=1 // pred_check_branch
      %29 = sbr.rel (0) target = $region9
    $region8: #{music_rnn_forward.1} parent=1 // pred_region
      %s31 = ssub.s32 256, 256
      %32 = vsyncadd [#allocation6], %s31
      %s33 = sshll.u32 [#allocation5], 4
      %s34 = int_to_ptr.vmem [resolvable:$true] %s33
      %39 = dma.hbm_to_vmem [thread:$0]  %s1, 256, %s34, [#allocation6], 128, 128, 8
    $region9: #{music_rnn_forward.1} parent=1 // pred_fallthru
      _
    // Predicated region
    $region10: #{music_rnn_forward.1} parent=1 // pred_check
      _
    $region11: #{music_rnn_forward.1} parent=1 // pred_check_branch
      %41 = sbr.rel (0) target = $region13
    $region12: #{music_rnn_forward.1} parent=1 // pred_region
      %s43 = ssub.s32 512, 512
      %44 = vsyncadd [#allocation6], %s43
      %s45 = sshll.u32 [#allocation7], 4
      %s46 = int_to_ptr.vmem [resolvable:$true] %s45
      %51 = dma.hbm_to_vmem [thread:$0]  %s2, 512, %s46, [#allocation6], 128, 128, 8
    $region13: #{music_rnn_forward.1} parent=1 // pred_fallthru
      _
    // Predicated region
    $region14: #{music_rnn_forward.1} parent=1 // pred_check
      _
    $region15: #{music_rnn_forward.1} parent=1 // pred_check_branch
      %53 = sbr.rel (0) target = $region17
    $region16: #{music_rnn_forward.1} parent=1 // pred_region
      _
    $region17: #{music_rnn_forward.1} parent=1 // pred_fallthru
      _
    // Predicated region
    $region18: #{music_rnn_forward.1} parent=1 // pred_check
      _
    $region19: #{music_rnn_forward.1} parent=1 // pred_check_branch
      %55 = sbr.rel (0) target = $region21
    $region20: #{music_rnn_forward.1} parent=1 // pred_region
      _
    $region21: #{music_rnn_forward.1} parent=1 // pred_fallthru
      _
    // Predicated region
    $region22: #{music_rnn_forward.1} parent=1 // pred_check
      _
    $region23: #{music_rnn_forward.1} parent=1 // pred_check_branch
      %57 = sbr.rel (0) target = $region25
    $region24: #{music_rnn_forward.1} parent=1 // pred_region
      _
    $region25: #{music_rnn_forward.1} parent=1 // pred_fallthru
      _
    // Predicated region
    $region26: #{music_rnn_forward.1} parent=1 // pred_check
      _
    $region27: #{music_rnn_forward.1} parent=1 // pred_check_branch
      %59 = sbr.rel (0) target = $region29
    $region28: #{music_rnn_forward.1} parent=1 // pred_region
      _
    $region29: #{music_rnn_forward.1} parent=1 // pred_fallthru
      _
    // Predicated region
    $region30: #{music_rnn_forward.1} parent=1 // pred_check
      _
    $region31: #{music_rnn_forward.1} parent=1 // pred_check_branch
      %61 = sbr.rel (0) target = $region33
    $region32: #{music_rnn_forward.1} parent=1 // pred_region
      _
    $region33: #{music_rnn_forward.1} parent=1 // pred_fallthru
      _
    // Predicated region
    $region34: #{music_rnn_forward.1} parent=1 // pred_check
      _
    $region35: #{music_rnn_forward.1} parent=1 // pred_check_branch
      %63 = sbr.rel (0) target = $region37
    $region36: #{music_rnn_forward.1} parent=1 // pred_region
      %64 = dma.done [#allocation3], 256
    $region37: #{music_rnn_forward.1} parent=1 // pred_fallthru
      _
    // Predicated region
    $region38: #{music_rnn_forward.1} parent=1 // pred_check
      _
    $region39: #{music_rnn_forward.1} parent=1 // pred_check_branch
      %66 = sbr.rel (0) target = $region41
    $region40: #{music_rnn_forward.1} parent=1 // pred_region
      %67 = dma.done [#allocation6], 256
    $region41: #{music_rnn_forward.1} parent=1 // pred_fallthru
      _
    // Predicated region
    $region42: #{music_rnn_forward.1} parent=1 // pred_check
      _
    $region43: #{music_rnn_forward.1} parent=1 // pred_check_branch
      %69 = sbr.rel (0) target = $region45
    $region44: #{music_rnn_forward.1} parent=1 // pred_region
      %70 = dma.done [#allocation6], 512
    $region45: #{music_rnn_forward.1} parent=1 // pred_fallthru
      _
    %v71 = vld [vmem:[#allocation5] sm:$0xff]
    %v72 = vld [vmem:[#allocation5 + $0x8] sm:$0xff]
    %v73 = vld [vmem:[%s3] sm:$0x1]
    %v74 = vld [vmem:[#allocation2] sm:$0xff]
    %v76 = vlaneseq
    %v77 = vshrl.u32 %v76, 7
    %v78 = vsub.s32 0, %v77
    %v79 = vrot.slane %v73, %v78
    %vm81 = vcmask 130048
    %v83 = vsel %vm81, %v74, 0
    %85 = vmatprep.subr.mxu0 0.0
    %86 = vmatpush1.msra.mxu0 %v71
    %87 = vmatprep.subr.mxu0 0.0
    %88 = vmatpush1.msra.mxu0 %v72
    %89 = vmatprep.subr.mxu0 0.0
    %90 = vmatpush1.msra.mxu0 0.0
    %91 = vmatprep.subr.mxu0 0.0
    %92 = vmatpush1.msra.mxu0 0.0
    %93 = vmatprep.subr.mxu0 0.0
    %94 = vmatpush1.msra.mxu0 0.0
    %95 = vmatprep.subr.mxu0 0.0
    %96 = vmatpush1.msra.mxu0 0.0
    %97 = vmatprep.subr.mxu0 0.0
    %98 = vmatpush1.msra.mxu0 0.0
    %99 = vmatprep.subr.mxu0 0.0
    %100 = vmatpush1.msra.mxu0 0.0
    %101 = vmatprep.subr.mxu0 0.0
    %102 = vmatpush1.msra.mxu0 0.0
    %103 = vmatprep.subr.mxu0 0.0
    %104 = vmatpush1.msra.mxu0 0.0
    %105 = vmatprep.subr.mxu0 0.0
    %106 = vmatpush1.msra.mxu0 0.0
    %107 = vmatprep.subr.mxu0 0.0
    %108 = vmatpush1.msra.mxu0 0.0
    %109 = vmatprep.subr.mxu0 0.0
    %110 = vmatpush1.msra.mxu0 0.0
    %111 = vmatprep.subr.mxu0 0.0
    %112 = vmatpush1.msra.mxu0 0.0
    %113 = vmatprep.subr.mxu0 0.0
    %114 = vmatpush1.msra.mxu0 0.0
    %115 = vmatprep.subr.mxu0 0.0
    %116 = vmatpush1.msra.mxu0 0.0
    %117 = vmatprep.subr.mxu0 0.0
    %118 = vmatpush1.msra.mxu0 0.0
    %119 = vmatprep.subr.mxu0 0.0
    %120 = vmatpush1.msra.mxu0 0.0
    %121 = vmatprep.subr.mxu0 0.0
    %122 = vmatpush1.msra.mxu0 0.0
    %123 = vmatprep.subr.mxu0 0.0
    %124 = vmatpush1.msra.mxu0 0.0
    %125 = vmatprep.subr.mxu0 0.0
    %126 = vmatpush1.msra.mxu0 0.0
    %127 = vmatprep.subr.mxu0 0.0
    %128 = vmatpush1.msra.mxu0 0.0
    %129 = vmatprep.subr.mxu0 0.0
    %130 = vmatpush1.msra.mxu0 0.0
    %131 = vmatprep.subr.mxu0 0.0
    %132 = vmatpush1.msra.mxu0 0.0
    %133 = vmatprep.subr.mxu0 0.0
    %134 = vmatpush1.msra.mxu0 0.0
    %135 = vmatprep.subr.mxu0 0.0
    %136 = vmatpush1.msra.mxu0 0.0
    %137 = vmatprep.subr.mxu0 0.0
    %138 = vmatpush1.msra.mxu0 0.0
    %139 = vmatprep.subr.mxu0 0.0
    %140 = vmatpush1.msra.mxu0 0.0
    %141 = vmatprep.subr.mxu0 0.0
    %142 = vmatpush1.msra.mxu0 0.0
    %143 = vmatprep.subr.mxu0 0.0
    %144 = vmatpush1.msra.mxu0 0.0
    %145 = vmatprep.subr.mxu0 0.0
    %146 = vmatpush1.msra.mxu0 0.0
    %147 = vmatprep.subr.mxu0 0.0
    %148 = vmatpush1.msra.mxu0 0.0
    %149 = vmatprep.mubr.f32.mxu0 0.0
    %150 = vmatmul.mubr.f32.gmra.mrb[0].mxu0 %v83
    %v151 = vpop.f32.mrb[0].mxu0
    %v152 = vadd.f32 %v79, %v151
    %v153 = vpop.f32.mrb[0].mxu0
    %154 = vdwg.mxu0
    %s155 = scalar_lea.vmem [#allocation2], 8
    %v156 = vld [vmem:[%s155] sm:$0xff]
    %v158 = vsel %vm81, %v156, 0
    %160 = vmatprep.subr.mxu0 0.0
    %161 = vmatpush1.msra.mxu0 %v71
    %162 = vmatprep.subr.mxu0 0.0
    %163 = vmatpush1.msra.mxu0 %v72
    %164 = vmatprep.subr.mxu0 0.0
    %165 = vmatpush1.msra.mxu0 0.0
    %166 = vmatprep.subr.mxu0 0.0
    %167 = vmatpush1.msra.mxu0 0.0
    %168 = vmatprep.subr.mxu0 0.0
    %169 = vmatpush1.msra.mxu0 0.0
    %170 = vmatprep.subr.mxu0 0.0
    %171 = vmatpush1.msra.mxu0 0.0
    %172 = vmatprep.subr.mxu0 0.0
    %173 = vmatpush1.msra.mxu0 0.0
    %174 = vmatprep.subr.mxu0 0.0
    %175 = vmatpush1.msra.mxu0 0.0
    %176 = vmatprep.subr.mxu0 0.0
    %177 = vmatpush1.msra.mxu0 0.0
    %178 = vmatprep.subr.mxu0 0.0
    %179 = vmatpush1.msra.mxu0 0.0
    %180 = vmatprep.subr.mxu0 0.0
    %181 = vmatpush1.msra.mxu0 0.0
    %182 = vmatprep.subr.mxu0 0.0
    %183 = vmatpush1.msra.mxu0 0.0
    %184 = vmatprep.subr.mxu0 0.0
    %185 = vmatpush1.msra.mxu0 0.0
    %186 = vmatprep.subr.mxu0 0.0
    %187 = vmatpush1.msra.mxu0 0.0
    %188 = vmatprep.subr.mxu0 0.0
    %189 = vmatpush1.msra.mxu0 0.0
    %190 = vmatprep.subr.mxu0 0.0
    %191 = vmatpush1.msra.mxu0 0.0
    %192 = vmatprep.subr.mxu0 0.0
    %193 = vmatpush1.msra.mxu0 0.0
    %194 = vmatprep.subr.mxu0 0.0
    %195 = vmatpush1.msra.mxu0 0.0
    %196 = vmatprep.subr.mxu0 0.0
    %197 = vmatpush1.msra.mxu0 0.0
    %198 = vmatprep.subr.mxu0 0.0
    %199 = vmatpush1.msra.mxu0 0.0
    %200 = vmatprep.subr.mxu0 0.0
    %201 = vmatpush1.msra.mxu0 0.0
    %202 = vmatprep.subr.mxu0 0.0
    %203 = vmatpush1.msra.mxu0 0.0
    %204 = vmatprep.subr.mxu0 0.0
    %205 = vmatpush1.msra.mxu0 0.0
    %206 = vmatprep.subr.mxu0 0.0
    %207 = vmatpush1.msra.mxu0 0.0
    %208 = vmatprep.subr.mxu0 0.0
    %209 = vmatpush1.msra.mxu0 0.0
    %210 = vmatprep.subr.mxu0 0.0
    %211 = vmatpush1.msra.mxu0 0.0
    %212 = vmatprep.subr.mxu0 0.0
    %213 = vmatpush1.msra.mxu0 0.0
    %214 = vmatprep.subr.mxu0 0.0
    %215 = vmatpush1.msra.mxu0 0.0
    %216 = vmatprep.subr.mxu0 0.0
    %217 = vmatpush1.msra.mxu0 0.0
    %218 = vmatprep.subr.mxu0 0.0
    %219 = vmatpush1.msra.mxu0 0.0
    %220 = vmatprep.subr.mxu0 0.0
    %221 = vmatpush1.msra.mxu0 0.0
    %222 = vmatprep.subr.mxu0 0.0
    %223 = vmatpush1.msra.mxu0 0.0
    %224 = vmatprep.mubr.f32.mxu0 0.0
    %225 = vmatmul.mubr.f32.gmra.mrb[0].mxu0 %v158
    %v226 = vpop.f32.mrb[0].mxu0
    %v227 = vadd.f32 %v79, %v226
    %v228 = vpop.f32.mrb[0].mxu0
    %229 = vdwg.mxu0
    %v231 = vrot.slane %v227, 7
    %vm233 = vcmask 1040384
    %v234 = vsel %vm233, %v152, %v231
    %v236 = vrot.slane %v152, 1
    %v238 = vsel %vm233, %v236, %v227
    %v239 = vrot.slane %v152, 2
    %v241 = vrot.slane %v227, 1
    %v243 = vsel %vm233, %v239, %v241
    %v244 = vrot.slane %v152, 3
    %v246 = vrot.slane %v227, 2
    %v248 = vsel %vm233, %v244, %v246
    %v249 = vrot.slane %v152, 4
    %v251 = vrot.slane %v227, 3
    %v253 = vsel %vm233, %v249, %v251
    %v254 = vrot.slane %v152, 5
    %v256 = vrot.slane %v227, 4
    %v258 = vsel %vm233, %v254, %v256
    %v259 = vrot.slane %v152, 6
    %v261 = vrot.slane %v227, 5
    %v263 = vsel %vm233, %v259, %v261
    %v264 = vrot.slane %v152, 7
    %v266 = vrot.slane %v227, 6
    %v268 = vsel %vm233, %v264, %v266
    %v269 = vld [vmem:[#allocation7] sm:$0xff]
    %v270 = vld [vmem:[#allocation7 + $0x8] sm:$0xff]
    %v271 = vld [vmem:[#allocation7 + $0x10] sm:$0xff]
    %v272 = vld [vmem:[#allocation7 + $0x18] sm:$0xff]
    %v273 = vld [vmem:[%s4] sm:$0xff]
    %v274 = vld [vmem:[%s4 + $0x8] sm:$0xff]
    %v275 = vld [vmem:[%s4 + $0x10] sm:$0xff]
    %v276 = vld [vmem:[%s4 + $0x18] sm:$0xff]
    %v277 = vld [vmem:[%s4 + $0x20] sm:$0xff]
    %v278 = vld [vmem:[%s4 + $0x28] sm:$0xff]
    %v279 = vld [vmem:[%s4 + $0x30] sm:$0xff]
    %v280 = vld [vmem:[%s4 + $0x38] sm:$0xff]
    %v281 = vld [vmem:[%s5] sm:$0x1]
    %v282 = vld [vmem:[%s6] sm:$0xff]
    %v283 = vld [vmem:[%s6 + $0x8] sm:$0xff]
    %v284 = vld [vmem:[%s6 + $0x10] sm:$0xff]
    %v285 = vld [vmem:[%s6 + $0x18] sm:$0xff]
    %v286 = vld [vmem:[%s7] sm:$0x1]
    %vm287 = vcmask 261120
    %v289 = vsel %vm287, 0.0, 0
    %291 = vmatprep.subr.mxu0 0.0
    %292 = vmatpush1.msra.mxu0 %v269
    %293 = vmatprep.subr.mxu0 0.0
    %294 = vmatpush1.msra.mxu0 %v270
    %295 = vmatprep.subr.mxu0 0.0
    %296 = vmatpush1.msra.mxu0 %v271
    %297 = vmatprep.subr.mxu0 0.0
    %298 = vmatpush1.msra.mxu0 %v272
    %299 = vmatprep.subr.mxu0 0.0
    %300 = vmatpush1.msra.mxu0 0.0
    %301 = vmatprep.subr.mxu0 0.0
    %302 = vmatpush1.msra.mxu0 0.0
    %303 = vmatprep.subr.mxu0 0.0
    %304 = vmatpush1.msra.mxu0 0.0
    %305 = vmatprep.subr.mxu0 0.0
    %306 = vmatpush1.msra.mxu0 0.0
    %307 = vmatprep.subr.mxu0 0.0
    %308 = vmatpush1.msra.mxu0 0.0
    %309 = vmatprep.subr.mxu0 0.0
    %310 = vmatpush1.msra.mxu0 0.0
    %311 = vmatprep.subr.mxu0 0.0
    %312 = vmatpush1.msra.mxu0 0.0
    %313 = vmatprep.subr.mxu0 0.0
    %314 = vmatpush1.msra.mxu0 0.0
    %315 = vmatprep.subr.mxu0 0.0
    %316 = vmatpush1.msra.mxu0 0.0
    %317 = vmatprep.subr.mxu0 0.0
    %318 = vmatpush1.msra.mxu0 0.0
    %319 = vmatprep.subr.mxu0 0.0
    %320 = vmatpush1.msra.mxu0 0.0
    %321 = vmatprep.subr.mxu0 0.0
    %322 = vmatpush1.msra.mxu0 0.0
    %323 = vmatprep.subr.mxu0 0.0
    %324 = vmatpush1.msra.mxu0 0.0
    %325 = vmatprep.subr.mxu0 0.0
    %326 = vmatpush1.msra.mxu0 0.0
    %327 = vmatprep.subr.mxu0 0.0
    %328 = vmatpush1.msra.mxu0 0.0
    %329 = vmatprep.subr.mxu0 0.0
    %330 = vmatpush1.msra.mxu0 0.0
    %331 = vmatprep.subr.mxu0 0.0
    %332 = vmatpush1.msra.mxu0 0.0
    %333 = vmatprep.subr.mxu0 0.0
    %334 = vmatpush1.msra.mxu0 0.0
    %335 = vmatprep.subr.mxu0 0.0
    %336 = vmatpush1.msra.mxu0 0.0
    %337 = vmatprep.subr.mxu0 0.0
    %338 = vmatpush1.msra.mxu0 0.0
    %339 = vmatprep.subr.mxu0 0.0
    %340 = vmatpush1.msra.mxu0 0.0
    %341 = vmatprep.subr.mxu0 0.0
    %342 = vmatpush1.msra.mxu0 0.0
    %343 = vmatprep.subr.mxu0 0.0
    %344 = vmatpush1.msra.mxu0 0.0
    %345 = vmatprep.subr.mxu0 0.0
    %346 = vmatpush1.msra.mxu0 0.0
    %347 = vmatprep.subr.mxu0 0.0
    %348 = vmatpush1.msra.mxu0 0.0
    %349 = vmatprep.subr.mxu0 0.0
    %350 = vmatpush1.msra.mxu0 0.0
    %351 = vmatprep.subr.mxu0 0.0
    %352 = vmatpush1.msra.mxu0 0.0
    %353 = vmatprep.subr.mxu0 0.0
    %354 = vmatpush1.msra.mxu0 0.0
    %355 = vmatprep.mubr.f32.mxu0 0.0
    %356 = vmatmul.mubr.f32.gmra.mrb[0].mxu0 %v289
    %v357 = vpop.f32.mrb[0].mxu0
    %v358 = vadd.f32 0.0, %v357
    %v359 = vpop.f32.mrb[0].mxu0
    %360 = vdwg.mxu0
    %v361 = vadd.f32 %v234, %v358
    %v362 = vxor.u32 %v361, 2147483648
    %v363 = vmul.f32 %v362, 1.442695
    %v364 = vpow.pop %v363
    %v365 = vadd.f32 %v364, 1.0
    %v366 = vrcp.pop %v365
    %v367 = vmul.f32 1.0, %v366
    %v368 = vtanh.pop %v361
    %v369 = vmul.f32 %v367, 0.0
    %371 = vrot.lane.b32.xlu0 %v368, 64
    %v372 = vpop.permute.xlu0 %371
    %v374 = vmul.f32 %v367, %v372
    %376 = vrot.lane.b32.xlu0 %v374, 32
    %v377 = vpop.permute.xlu0 %376
    %v379 = vadd.f32 %v369, %v377
    %v380 = vtanh.pop %v379
    %382 = vrot.lane.b32.xlu0 %v380, 64
    %v383 = vpop.permute.xlu0 %382
    %v385 = vmul.f32 %v367, %v383
    %387 = vrot.lane.b32.xlu0 %v385, 32
    %v388 = vpop.permute.xlu0 %387
    %v389 = vsel %vm287, %v388, 0
    %391 = vmatprep.subr.mxu0 0.0
    %392 = vmatpush1.msra.mxu0 %v269
    %393 = vmatprep.subr.mxu0 0.0
    %394 = vmatpush1.msra.mxu0 %v270
    %395 = vmatprep.subr.mxu0 0.0
    %396 = vmatpush1.msra.mxu0 %v271
    %397 = vmatprep.subr.mxu0 0.0
    %398 = vmatpush1.msra.mxu0 %v272
    %399 = vmatprep.subr.mxu0 0.0
    %400 = vmatpush1.msra.mxu0 0.0
    %401 = vmatprep.subr.mxu0 0.0
    %402 = vmatpush1.msra.mxu0 0.0
    %403 = vmatprep.subr.mxu0 0.0
    %404 = vmatpush1.msra.mxu0 0.0
    %405 = vmatprep.subr.mxu0 0.0
    %406 = vmatpush1.msra.mxu0 0.0
    %407 = vmatprep.subr.mxu0 0.0
    %408 = vmatpush1.msra.mxu0 0.0
    %409 = vmatprep.subr.mxu0 0.0
    %410 = vmatpush1.msra.mxu0 0.0
    %411 = vmatprep.subr.mxu0 0.0
    %412 = vmatpush1.msra.mxu0 0.0
    %413 = vmatprep.subr.mxu0 0.0
    %414 = vmatpush1.msra.mxu0 0.0
    %415 = vmatprep.subr.mxu0 0.0
    %416 = vmatpush1.msra.mxu0 0.0
    %417 = vmatprep.subr.mxu0 0.0
    %418 = vmatpush1.msra.mxu0 0.0
    %419 = vmatprep.subr.mxu0 0.0
    %420 = vmatpush1.msra.mxu0 0.0
    %421 = vmatprep.subr.mxu0 0.0
    %422 = vmatpush1.msra.mxu0 0.0
    %423 = vmatprep.subr.mxu0 0.0
    %424 = vmatpush1.msra.mxu0 0.0
    %425 = vmatprep.subr.mxu0 0.0
    %426 = vmatpush1.msra.mxu0 0.0
    %427 = vmatprep.subr.mxu0 0.0
    %428 = vmatpush1.msra.mxu0 0.0
    %429 = vmatprep.subr.mxu0 0.0
    %430 = vmatpush1.msra.mxu0 0.0
    %431 = vmatprep.subr.mxu0 0.0
    %432 = vmatpush1.msra.mxu0 0.0
    %433 = vmatprep.subr.mxu0 0.0
    %434 = vmatpush1.msra.mxu0 0.0
    %435 = vmatprep.subr.mxu0 0.0
    %436 = vmatpush1.msra.mxu0 0.0
    %437 = vmatprep.subr.mxu0 0.0
    %438 = vmatpush1.msra.mxu0 0.0
    %439 = vmatprep.subr.mxu0 0.0
    %440 = vmatpush1.msra.mxu0 0.0
    %441 = vmatprep.subr.mxu0 0.0
    %442 = vmatpush1.msra.mxu0 0.0
    %443 = vmatprep.subr.mxu0 0.0
    %444 = vmatpush1.msra.mxu0 0.0
    %445 = vmatprep.subr.mxu0 0.0
    %446 = vmatpush1.msra.mxu0 0.0
    %447 = vmatprep.subr.mxu0 0.0
    %448 = vmatpush1.msra.mxu0 0.0
    %449 = vmatprep.subr.mxu0 0.0
    %450 = vmatpush1.msra.mxu0 0.0
    %451 = vmatprep.subr.mxu0 0.0
    %452 = vmatpush1.msra.mxu0 0.0
    %453 = vmatprep.subr.mxu0 0.0
    %454 = vmatpush1.msra.mxu0 0.0
    %455 = vmatprep.mubr.f32.mxu0 0.0
    %456 = vmatmul.mubr.f32.gmra.mrb[0].mxu0 %v389
    %v457 = vpop.f32.mrb[0].mxu0
    %v458 = vadd.f32 0.0, %v457
    %v459 = vpop.f32.mrb[0].mxu0
    %460 = vdwg.mxu0
    %v461 = vadd.f32 %v238, %v458
    %v462 = vxor.u32 %v461, 2147483648
    %v463 = vmul.f32 %v462, 1.442695
    %v464 = vpow.pop %v463
    %v465 = vadd.f32 %v464, 1.0
    %v466 = vrcp.pop %v465
    %v467 = vmul.f32 1.0, %v466
    %v468 = vtanh.pop %v461
    %v469 = vmul.f32 %v467, %v379
    %471 = vrot.lane.b32.xlu0 %v468, 64
    %v472 = vpop.permute.xlu0 %471
    %v474 = vmul.f32 %v467, %v472
    %476 = vrot.lane.b32.xlu0 %v474, 32
    %v477 = vpop.permute.xlu0 %476
    %v479 = vadd.f32 %v469, %v477
    %v480 = vtanh.pop %v479
    %482 = vrot.lane.b32.xlu0 %v480, 64
    %v483 = vpop.permute.xlu0 %482
    %v485 = vmul.f32 %v467, %v483
    %v487 = vsel %vm287, %v388, 0.0
    %v489 = vlaneseq
    %v490 = vshrl.u32 %v489, 7
    %v491 = vsub.s32 0, %v490
    %v492 = vrot.slane %v281, %v491
    %vm494 = vcmask 523264
    %v496 = vsel %vm494, %v487, 0
    %498 = vmatprep.subr.mxu0 0.0
    %499 = vmatpush1.msra.mxu0 %v273
    %500 = vmatprep.subr.mxu0 0.0
    %501 = vmatpush1.msra.mxu0 %v274
    %502 = vmatprep.subr.mxu0 0.0
    %503 = vmatpush1.msra.mxu0 %v275
    %504 = vmatprep.subr.mxu0 0.0
    %505 = vmatpush1.msra.mxu0 %v276
    %506 = vmatprep.subr.mxu0 0.0
    %507 = vmatpush1.msra.mxu0 %v277
    %508 = vmatprep.subr.mxu0 0.0
    %509 = vmatpush1.msra.mxu0 %v278
    %510 = vmatprep.subr.mxu0 0.0
    %511 = vmatpush1.msra.mxu0 %v279
    %512 = vmatprep.subr.mxu0 0.0
    %513 = vmatpush1.msra.mxu0 %v280
    %514 = vmatprep.subr.mxu0 0.0
    %515 = vmatpush1.msra.mxu0 0.0
    %516 = vmatprep.subr.mxu0 0.0
    %517 = vmatpush1.msra.mxu0 0.0
    %518 = vmatprep.subr.mxu0 0.0
    %519 = vmatpush1.msra.mxu0 0.0
    %520 = vmatprep.subr.mxu0 0.0
    %521 = vmatpush1.msra.mxu0 0.0
    %522 = vmatprep.subr.mxu0 0.0
    %523 = vmatpush1.msra.mxu0 0.0
    %524 = vmatprep.subr.mxu0 0.0
    %525 = vmatpush1.msra.mxu0 0.0
    %526 = vmatprep.subr.mxu0 0.0
    %527 = vmatpush1.msra.mxu0 0.0
    %528 = vmatprep.subr.mxu0 0.0
    %529 = vmatpush1.msra.mxu0 0.0
    %530 = vmatprep.subr.mxu0 0.0
    %531 = vmatpush1.msra.mxu0 0.0
    %532 = vmatprep.subr.mxu0 0.0
    %533 = vmatpush1.msra.mxu0 0.0
    %534 = vmatprep.subr.mxu0 0.0
    %535 = vmatpush1.msra.mxu0 0.0
    %536 = vmatprep.subr.mxu0 0.0
    %537 = vmatpush1.msra.mxu0 0.0
    %538 = vmatprep.subr.mxu0 0.0
    %539 = vmatpush1.msra.mxu0 0.0
    %540 = vmatprep.subr.mxu0 0.0
    %541 = vmatpush1.msra.mxu0 0.0
    %542 = vmatprep.subr.mxu0 0.0
    %543 = vmatpush1.msra.mxu0 0.0
    %544 = vmatprep.subr.mxu0 0.0
    %545 = vmatpush1.msra.mxu0 0.0
    %546 = vmatprep.subr.mxu0 0.0
    %547 = vmatpush1.msra.mxu0 0.0
    %548 = vmatprep.subr.mxu0 0.0
    %549 = vmatpush1.msra.mxu0 0.0
    %550 = vmatprep.subr.mxu0 0.0
    %551 = vmatpush1.msra.mxu0 0.0
    %552 = vmatprep.subr.mxu0 0.0
    %553 = vmatpush1.msra.mxu0 0.0
    %554 = vmatprep.subr.mxu0 0.0
    %555 = vmatpush1.msra.mxu0 0.0
    %556 = vmatprep.subr.mxu0 0.0
    %557 = vmatpush1.msra.mxu0 0.0
    %558 = vmatprep.subr.mxu0 0.0
    %559 = vmatpush1.msra.mxu0 0.0
    %560 = vmatprep.subr.mxu0 0.0
    %561 = vmatpush1.msra.mxu0 0.0
    %562 = vmatprep.mubr.f32.mxu0 0.0
    %563 = vmatmul.mubr.f32.gmra.mrb[0].mxu0 %v496
    %v564 = vpop.f32.mrb[0].mxu0
    %v565 = vadd.f32 %v492, %v564
    %v566 = vpop.f32.mrb[0].mxu0
    %567 = vdwg.mxu0
    %v568 = vxor.u32 %v565, 2147483648
    %v569 = vmul.f32 %v568, 1.442695
    %v570 = vpow.pop %v569
    %v571 = vadd.f32 %v570, 1.0
    %v572 = vrcp.pop %v571
    %v573 = vmul.f32 1.0, %v572
    %v574 = vtanh.pop %v565
    %v575 = vmul.f32 %v573, 0.0
    %577 = vrot.lane.b32.xlu0 %v574, 64
    %v578 = vpop.permute.xlu0 %577
    %v580 = vmul.f32 %v573, %v578
    %582 = vrot.lane.b32.xlu0 %v580, 32
    %v583 = vpop.permute.xlu0 %582
    %v585 = vadd.f32 %v575, %v583
    %v586 = vtanh.pop %v585
    %588 = vrot.lane.b32.xlu0 %v586, 64
    %v589 = vpop.permute.xlu0 %588
    %v591 = vmul.f32 %v573, %v589
    %v593 = vlaneseq
    %v594 = vshrl.u32 %v593, 7
    %v595 = vsub.s32 0, %v594
    %v596 = vrot.slane %v286, %v595
    %599 = vrot.lane.b32.xlu0 %v591, 32
    %v600 = vpop.permute.xlu0 %599
    %v601 = vsel %vm287, %v600, 0
    %603 = vmatprep.subr.mxu0 0.0
    %604 = vmatpush1.msra.mxu0 %v282
    %605 = vmatprep.subr.mxu0 0.0
    %606 = vmatpush1.msra.mxu0 %v283
    %607 = vmatprep.subr.mxu0 0.0
    %608 = vmatpush1.msra.mxu0 %v284
    %609 = vmatprep.subr.mxu0 0.0
    %610 = vmatpush1.msra.mxu0 %v285
    %611 = vmatprep.subr.mxu0 0.0
    %612 = vmatpush1.msra.mxu0 0.0
    %613 = vmatprep.subr.mxu0 0.0
    %614 = vmatpush1.msra.mxu0 0.0
    %615 = vmatprep.subr.mxu0 0.0
    %616 = vmatpush1.msra.mxu0 0.0
    %617 = vmatprep.subr.mxu0 0.0
    %618 = vmatpush1.msra.mxu0 0.0
    %619 = vmatprep.subr.mxu0 0.0
    %620 = vmatpush1.msra.mxu0 0.0
    %621 = vmatprep.subr.mxu0 0.0
    %622 = vmatpush1.msra.mxu0 0.0
    %623 = vmatprep.subr.mxu0 0.0
    %624 = vmatpush1.msra.mxu0 0.0
    %625 = vmatprep.subr.mxu0 0.0
    %626 = vmatpush1.msra.mxu0 0.0
    %627 = vmatprep.subr.mxu0 0.0
    %628 = vmatpush1.msra.mxu0 0.0
    %629 = vmatprep.subr.mxu0 0.0
    %630 = vmatpush1.msra.mxu0 0.0
    %631 = vmatprep.subr.mxu0 0.0
    %632 = vmatpush1.msra.mxu0 0.0
    %633 = vmatprep.subr.mxu0 0.0
    %634 = vmatpush1.msra.mxu0 0.0
    %635 = vmatprep.subr.mxu0 0.0
    %636 = vmatpush1.msra.mxu0 0.0
    %637 = vmatprep.subr.mxu0 0.0
    %638 = vmatpush1.msra.mxu0 0.0
    %639 = vmatprep.subr.mxu0 0.0
    %640 = vmatpush1.msra.mxu0 0.0
    %641 = vmatprep.subr.mxu0 0.0
    %642 = vmatpush1.msra.mxu0 0.0
    %643 = vmatprep.subr.mxu0 0.0
    %644 = vmatpush1.msra.mxu0 0.0
    %645 = vmatprep.subr.mxu0 0.0
    %646 = vmatpush1.msra.mxu0 0.0
    %647 = vmatprep.subr.mxu0 0.0
    %648 = vmatpush1.msra.mxu0 0.0
    %649 = vmatprep.subr.mxu0 0.0
    %650 = vmatpush1.msra.mxu0 0.0
    %651 = vmatprep.subr.mxu0 0.0
    %652 = vmatpush1.msra.mxu0 0.0
    %653 = vmatprep.subr.mxu0 0.0
    %654 = vmatpush1.msra.mxu0 0.0
    %655 = vmatprep.subr.mxu0 0.0
    %656 = vmatpush1.msra.mxu0 0.0
    %657 = vmatprep.subr.mxu0 0.0
    %658 = vmatpush1.msra.mxu0 0.0
    %659 = vmatprep.subr.mxu0 0.0
    %660 = vmatpush1.msra.mxu0 0.0
    %661 = vmatprep.subr.mxu0 0.0
    %662 = vmatpush1.msra.mxu0 0.0
    %663 = vmatprep.subr.mxu0 0.0
    %664 = vmatpush1.msra.mxu0 0.0
    %665 = vmatprep.subr.mxu0 0.0
    %666 = vmatpush1.msra.mxu0 0.0
    %667 = vmatprep.mubr.f32.mxu0 0.0
    %668 = vmatmul.mubr.f32.gmra.mrb[0].mxu0 %v601
    %v669 = vpop.f32.mrb[0].mxu0
    %v670 = vadd.f32 %v596, %v669
    %v671 = vpop.f32.mrb[0].mxu0
    %672 = vdwg.mxu0
    %v675 = vunpack.c.l.s4 1966171168
    %v676 = vunpack.c.0.s8 %v675
    %v677 = vlaneseq
    %v678 = vshrl.u32 %v677, 7
    %v679 = vsub.s32 %v676, %v678
    %v680 = vrot.slane %v670, %v679
    %v681 = vcombine.high %v680, %v680
    %v683 = vunpack.c.l.s4 1966171168
    %v684 = vunpack.c.0.s8 %v683
    %v685 = vlaneseq
    %v686 = vshrl.u32 %v685, 7
    %v687 = vsub.s32 %v684, %v686
    %v688 = vrot.slane %v680, %v687
    %v690 = vunpack.c.l.s4 1966171168
    %v691 = vunpack.c.0.s8 %v690
    %v692 = vlaneseq
    %v693 = vshrl.u32 %v692, 7
    %v694 = vsub.s32 %v691, %v693
    %v695 = vrot.slane %v681, %v694
    %vm698 = vcmask 122880
    %699 = vst.msk [vmem:[#allocation8] sm:$0x1] %vm698, %v688
    %700 = vst.msk [vmem:[#allocation8 + $0x8] sm:$0x1] %vm698, %v695
    %702 = vrot.lane.b32.xlu0 %v485, 32
    %v703 = vpop.permute.xlu0 %702
    %v704 = vsel %vm287, %v703, 0
    %706 = vmatprep.subr.mxu0 0.0
    %707 = vmatpush1.msra.mxu0 %v269
    %708 = vmatprep.subr.mxu0 0.0
    %709 = vmatpush1.msra.mxu0 %v270
    %710 = vmatprep.subr.mxu0 0.0
    %711 = vmatpush1.msra.mxu0 %v271
    %712 = vmatprep.subr.mxu0 0.0
    %713 = vmatpush1.msra.mxu0 %v272
    %714 = vmatprep.subr.mxu0 0.0
    %715 = vmatpush1.msra.mxu0 0.0
    %716 = vmatprep.subr.mxu0 0.0
    %717 = vmatpush1.msra.mxu0 0.0
    %718 = vmatprep.subr.mxu0 0.0
    %719 = vmatpush1.msra.mxu0 0.0
    %720 = vmatprep.subr.mxu0 0.0
    %721 = vmatpush1.msra.mxu0 0.0
    %722 = vmatprep.subr.mxu0 0.0
    %723 = vmatpush1.msra.mxu0 0.0
    %724 = vmatprep.subr.mxu0 0.0
    %725 = vmatpush1.msra.mxu0 0.0
    %726 = vmatprep.subr.mxu0 0.0
    %727 = vmatpush1.msra.mxu0 0.0
    %728 = vmatprep.subr.mxu0 0.0
    %729 = vmatpush1.msra.mxu0 0.0
    %730 = vmatprep.subr.mxu0 0.0
    %731 = vmatpush1.msra.mxu0 0.0
    %732 = vmatprep.subr.mxu0 0.0
    %733 = vmatpush1.msra.mxu0 0.0
    %734 = vmatprep.subr.mxu0 0.0
    %735 = vmatpush1.msra.mxu0 0.0
    %736 = vmatprep.subr.mxu0 0.0
    %737 = vmatpush1.msra.mxu0 0.0
    %738 = vmatprep.subr.mxu0 0.0
    %739 = vmatpush1.msra.mxu0 0.0
    %740 = vmatprep.subr.mxu0 0.0
    %741 = vmatpush1.msra.mxu0 0.0
    %742 = vmatprep.subr.mxu0 0.0
    %743 = vmatpush1.msra.mxu0 0.0
    %744 = vmatprep.subr.mxu0 0.0
    %745 = vmatpush1.msra.mxu0 0.0
    %746 = vmatprep.subr.mxu0 0.0
    %747 = vmatpush1.msra.mxu0 0.0
    %748 = vmatprep.subr.mxu0 0.0
    %749 = vmatpush1.msra.mxu0 0.0
    %750 = vmatprep.subr.mxu0 0.0
    %751 = vmatpush1.msra.mxu0 0.0
    %752 = vmatprep.subr.mxu0 0.0
    %753 = vmatpush1.msra.mxu0 0.0
    %754 = vmatprep.subr.mxu0 0.0
    %755 = vmatpush1.msra.mxu0 0.0
    %756 = vmatprep.subr.mxu0 0.0
    %757 = vmatpush1.msra.mxu0 0.0
    %758 = vmatprep.subr.mxu0 0.0
    %759 = vmatpush1.msra.mxu0 0.0
    %760 = vmatprep.subr.mxu0 0.0
    %761 = vmatpush1.msra.mxu0 0.0
    %762 = vmatprep.subr.mxu0 0.0
    %763 = vmatpush1.msra.mxu0 0.0
    %764 = vmatprep.subr.mxu0 0.0
    %765 = vmatpush1.msra.mxu0 0.0
    %766 = vmatprep.subr.mxu0 0.0
    %767 = vmatpush1.msra.mxu0 0.0
    %768 = vmatprep.subr.mxu0 0.0
    %769 = vmatpush1.msra.mxu0 0.0
    %770 = vmatprep.mubr.f32.mxu0 0.0
    %771 = vmatmul.mubr.f32.gmra.mrb[0].mxu0 %v704
    %v772 = vpop.f32.mrb[0].mxu0
    %v773 = vadd.f32 0.0, %v772
    %v774 = vpop.f32.mrb[0].mxu0
    %775 = vdwg.mxu0
    %v776 = vadd.f32 %v243, %v773
    %v777 = vxor.u32 %v776, 2147483648
    %v778 = vmul.f32 %v777, 1.442695
    %v779 = vpow.pop %v778
    %v780 = vadd.f32 %v779, 1.0
    %v781 = vrcp.pop %v780
    %v782 = vmul.f32 1.0, %v781
    %v783 = vtanh.pop %v776
    %v784 = vmul.f32 %v782, %v479
    %786 = vrot.lane.b32.xlu0 %v783, 64
    %v787 = vpop.permute.xlu0 %786
    %v789 = vmul.f32 %v782, %v787
    %791 = vrot.lane.b32.xlu0 %v789, 32
    %v792 = vpop.permute.xlu0 %791
    %v794 = vadd.f32 %v784, %v792
    %v795 = vtanh.pop %v794
    %797 = vrot.lane.b32.xlu0 %v795, 64
    %v798 = vpop.permute.xlu0 %797
    %v800 = vmul.f32 %v782, %v798
    %802 = vrot.lane.b32.xlu0 %v591, 64
    %v803 = vpop.permute.xlu0 %802
    %v805 = vsel %vm287, %v703, %v803
    %v807 = vsel %vm494, %v805, 0
    %809 = vmatprep.subr.mxu0 0.0
    %810 = vmatpush1.msra.mxu0 %v273
    %811 = vmatprep.subr.mxu0 0.0
    %812 = vmatpush1.msra.mxu0 %v274
    %813 = vmatprep.subr.mxu0 0.0
    %814 = vmatpush1.msra.mxu0 %v275
    %815 = vmatprep.subr.mxu0 0.0
    %816 = vmatpush1.msra.mxu0 %v276
    %817 = vmatprep.subr.mxu0 0.0
    %818 = vmatpush1.msra.mxu0 %v277
    %819 = vmatprep.subr.mxu0 0.0
    %820 = vmatpush1.msra.mxu0 %v278
    %821 = vmatprep.subr.mxu0 0.0
    %822 = vmatpush1.msra.mxu0 %v279
    %823 = vmatprep.subr.mxu0 0.0
    %824 = vmatpush1.msra.mxu0 %v280
    %825 = vmatprep.subr.mxu0 0.0
    %826 = vmatpush1.msra.mxu0 0.0
    %827 = vmatprep.subr.mxu0 0.0
    %828 = vmatpush1.msra.mxu0 0.0
    %829 = vmatprep.subr.mxu0 0.0
    %830 = vmatpush1.msra.mxu0 0.0
    %831 = vmatprep.subr.mxu0 0.0
    %832 = vmatpush1.msra.mxu0 0.0
    %833 = vmatprep.subr.mxu0 0.0
    %834 = vmatpush1.msra.mxu0 0.0
    %835 = vmatprep.subr.mxu0 0.0
    %836 = vmatpush1.msra.mxu0 0.0
    %837 = vmatprep.subr.mxu0 0.0
    %838 = vmatpush1.msra.mxu0 0.0
    %839 = vmatprep.subr.mxu0 0.0
    %840 = vmatpush1.msra.mxu0 0.0
    %841 = vmatprep.subr.mxu0 0.0
    %842 = vmatpush1.msra.mxu0 0.0
    %843 = vmatprep.subr.mxu0 0.0
    %844 = vmatpush1.msra.mxu0 0.0
    %845 = vmatprep.subr.mxu0 0.0
    %846 = vmatpush1.msra.mxu0 0.0
    %847 = vmatprep.subr.mxu0 0.0
    %848 = vmatpush1.msra.mxu0 0.0
    %849 = vmatprep.subr.mxu0 0.0
    %850 = vmatpush1.msra.mxu0 0.0
    %851 = vmatprep.subr.mxu0 0.0
    %852 = vmatpush1.msra.mxu0 0.0
    %853 = vmatprep.subr.mxu0 0.0
    %854 = vmatpush1.msra.mxu0 0.0
    %855 = vmatprep.subr.mxu0 0.0
    %856 = vmatpush1.msra.mxu0 0.0
    %857 = vmatprep.subr.mxu0 0.0
    %858 = vmatpush1.msra.mxu0 0.0
    %859 = vmatprep.subr.mxu0 0.0
    %860 = vmatpush1.msra.mxu0 0.0
    %861 = vmatprep.subr.mxu0 0.0
    %862 = vmatpush1.msra.mxu0 0.0
    %863 = vmatprep.subr.mxu0 0.0
    %864 = vmatpush1.msra.mxu0 0.0
    %865 = vmatprep.subr.mxu0 0.0
    %866 = vmatpush1.msra.mxu0 0.0
    %867 = vmatprep.subr.mxu0 0.0
    %868 = vmatpush1.msra.mxu0 0.0
    %869 = vmatprep.subr.mxu0 0.0
    %870 = vmatpush1.msra.mxu0 0.0
    %871 = vmatprep.subr.mxu0 0.0
    %872 = vmatpush1.msra.mxu0 0.0
    %873 = vmatprep.mubr.f32.mxu0 0.0
    %874 = vmatmul.mubr.f32.gmra.mrb[0].mxu0 %v807
    %v875 = vpop.f32.mrb[0].mxu0
    %v876 = vadd.f32 %v492, %v875
    %v877 = vpop.f32.mrb[0].mxu0
    %878 = vdwg.mxu0
    %v879 = vxor.u32 %v876, 2147483648
    %v880 = vmul.f32 %v879, 1.442695
    %v881 = vpow.pop %v880
    %v882 = vadd.f32 %v881, 1.0
    %v883 = vrcp.pop %v882
    %v884 = vmul.f32 1.0, %v883
    %v885 = vtanh.pop %v876
    %v886 = vmul.f32 %v884, %v585
    %888 = vrot.lane.b32.xlu0 %v885, 64
    %v889 = vpop.permute.xlu0 %888
    %v891 = vmul.f32 %v884, %v889
    %893 = vrot.lane.b32.xlu0 %v891, 32
    %v894 = vpop.permute.xlu0 %893
    %v896 = vadd.f32 %v886, %v894
    %v897 = vtanh.pop %v896
    %899 = vrot.lane.b32.xlu0 %v897, 64
    %v900 = vpop.permute.xlu0 %899
    %v902 = vmul.f32 %v884, %v900
    %904 = vrot.lane.b32.xlu0 %v902, 32
    %v905 = vpop.permute.xlu0 %904
    %v906 = vsel %vm287, %v905, 0
    %908 = vmatprep.subr.mxu0 0.0
    %909 = vmatpush1.msra.mxu0 %v282
    %910 = vmatprep.subr.mxu0 0.0
    %911 = vmatpush1.msra.mxu0 %v283
    %912 = vmatprep.subr.mxu0 0.0
    %913 = vmatpush1.msra.mxu0 %v284
    %914 = vmatprep.subr.mxu0 0.0
    %915 = vmatpush1.msra.mxu0 %v285
    %916 = vmatprep.subr.mxu0 0.0
    %917 = vmatpush1.msra.mxu0 0.0
    %918 = vmatprep.subr.mxu0 0.0
    %919 = vmatpush1.msra.mxu0 0.0
    %920 = vmatprep.subr.mxu0 0.0
    %921 = vmatpush1.msra.mxu0 0.0
    %922 = vmatprep.subr.mxu0 0.0
    %923 = vmatpush1.msra.mxu0 0.0
    %924 = vmatprep.subr.mxu0 0.0
    %925 = vmatpush1.msra.mxu0 0.0
    %926 = vmatprep.subr.mxu0 0.0
    %927 = vmatpush1.msra.mxu0 0.0
    %928 = vmatprep.subr.mxu0 0.0
    %929 = vmatpush1.msra.mxu0 0.0
    %930 = vmatprep.subr.mxu0 0.0
    %931 = vmatpush1.msra.mxu0 0.0
    %932 = vmatprep.subr.mxu0 0.0
    %933 = vmatpush1.msra.mxu0 0.0
    %934 = vmatprep.subr.mxu0 0.0
    %935 = vmatpush1.msra.mxu0 0.0
    %936 = vmatprep.subr.mxu0 0.0
    %937 = vmatpush1.msra.mxu0 0.0
    %938 = vmatprep.subr.mxu0 0.0
    %939 = vmatpush1.msra.mxu0 0.0
    %940 = vmatprep.subr.mxu0 0.0
    %941 = vmatpush1.msra.mxu0 0.0
    %942 = vmatprep.subr.mxu0 0.0
    %943 = vmatpush1.msra.mxu0 0.0
    %944 = vmatprep.subr.mxu0 0.0
    %945 = vmatpush1.msra.mxu0 0.0
    %946 = vmatprep.subr.mxu0 0.0
    %947 = vmatpush1.msra.mxu0 0.0
    %948 = vmatprep.subr.mxu0 0.0
    %949 = vmatpush1.msra.mxu0 0.0
    %950 = vmatprep.subr.mxu0 0.0
    %951 = vmatpush1.msra.mxu0 0.0
    %952 = vmatprep.subr.mxu0 0.0
    %953 = vmatpush1.msra.mxu0 0.0
    %954 = vmatprep.subr.mxu0 0.0
    %955 = vmatpush1.msra.mxu0 0.0
    %956 = vmatprep.subr.mxu0 0.0
    %957 = vmatpush1.msra.mxu0 0.0
    %958 = vmatprep.subr.mxu0 0.0
    %959 = vmatpush1.msra.mxu0 0.0
    %960 = vmatprep.subr.mxu0 0.0
    %961 = vmatpush1.msra.mxu0 0.0
    %962 = vmatprep.subr.mxu0 0.0
    %963 = vmatpush1.msra.mxu0 0.0
    %964 = vmatprep.subr.mxu0 0.0
    %965 = vmatpush1.msra.mxu0 0.0
    %966 = vmatprep.subr.mxu0 0.0
    %967 = vmatpush1.msra.mxu0 0.0
    %968 = vmatprep.subr.mxu0 0.0
    %969 = vmatpush1.msra.mxu0 0.0
    %970 = vmatprep.subr.mxu0 0.0
    %971 = vmatpush1.msra.mxu0 0.0
    %972 = vmatprep.mubr.f32.mxu0 0.0
    %973 = vmatmul.mubr.f32.gmra.mrb[0].mxu0 %v906
    %v974 = vpop.f32.mrb[0].mxu0
    %v975 = vadd.f32 %v596, %v974
    %v976 = vpop.f32.mrb[0].mxu0
    %977 = vdwg.mxu0
    %v980 = vunpack.c.l.s4 1966171168
    %v981 = vunpack.c.0.s8 %v980
    %v982 = vlaneseq
    %v983 = vshrl.u32 %v982, 7
    %v984 = vsub.s32 %v981, %v983
    %v985 = vrot.slane %v975, %v984
    %v986 = vcombine.high %v985, %v985
    %v988 = vunpack.c.l.s4 1966171168
    %v989 = vunpack.c.0.s8 %v988
    %v990 = vlaneseq
    %v991 = vshrl.u32 %v990, 7
    %v992 = vsub.s32 %v989, %v991
    %v993 = vrot.slane %v985, %v992
    %v995 = vunpack.c.l.s4 1966171168
    %v996 = vunpack.c.0.s8 %v995
    %v997 = vlaneseq
    %v998 = vshrl.u32 %v997, 7
    %v999 = vsub.s32 %v996, %v998
    %v1000 = vrot.slane %v986, %v999
    %1003 = vst.msk [vmem:[#allocation8 + $0x1] sm:$0x1] %vm698, %v993
    %1004 = vst.msk [vmem:[#allocation8 + $0x9] sm:$0x1] %vm698, %v1000
    %1006 = vrot.lane.b32.xlu0 %v800, 32
    %v1007 = vpop.permute.xlu0 %1006
    %v1008 = vsel %vm287, %v1007, 0
    %1010 = vmatprep.subr.mxu0 0.0
    %1011 = vmatpush1.msra.mxu0 %v269
    %1012 = vmatprep.subr.mxu0 0.0
    %1013 = vmatpush1.msra.mxu0 %v270
    %1014 = vmatprep.subr.mxu0 0.0
    %1015 = vmatpush1.msra.mxu0 %v271
    %1016 = vmatprep.subr.mxu0 0.0
    %1017 = vmatpush1.msra.mxu0 %v272
    %1018 = vmatprep.subr.mxu0 0.0
    %1019 = vmatpush1.msra.mxu0 0.0
    %1020 = vmatprep.subr.mxu0 0.0
    %1021 = vmatpush1.msra.mxu0 0.0
    %1022 = vmatprep.subr.mxu0 0.0
    %1023 = vmatpush1.msra.mxu0 0.0
    %1024 = vmatprep.subr.mxu0 0.0
    %1025 = vmatpush1.msra.mxu0 0.0
    %1026 = vmatprep.subr.mxu0 0.0
    %1027 = vmatpush1.msra.mxu0 0.0
    %1028 = vmatprep.subr.mxu0 0.0
    %1029 = vmatpush1.msra.mxu0 0.0
    %1030 = vmatprep.subr.mxu0 0.0
    %1031 = vmatpush1.msra.mxu0 0.0
    %1032 = vmatprep.subr.mxu0 0.0
    %1033 = vmatpush1.msra.mxu0 0.0
    %1034 = vmatprep.subr.mxu0 0.0
    %1035 = vmatpush1.msra.mxu0 0.0
    %1036 = vmatprep.subr.mxu0 0.0
    %1037 = vmatpush1.msra.mxu0 0.0
    %1038 = vmatprep.subr.mxu0 0.0
    %1039 = vmatpush1.msra.mxu0 0.0
    %1040 = vmatprep.subr.mxu0 0.0
    %1041 = vmatpush1.msra.mxu0 0.0
    %1042 = vmatprep.subr.mxu0 0.0
    %1043 = vmatpush1.msra.mxu0 0.0
    %1044 = vmatprep.subr.mxu0 0.0
    %1045 = vmatpush1.msra.mxu0 0.0
    %1046 = vmatprep.subr.mxu0 0.0
    %1047 = vmatpush1.msra.mxu0 0.0
    %1048 = vmatprep.subr.mxu0 0.0
    %1049 = vmatpush1.msra.mxu0 0.0
    %1050 = vmatprep.subr.mxu0 0.0
    %1051 = vmatpush1.msra.mxu0 0.0
    %1052 = vmatprep.subr.mxu0 0.0
    %1053 = vmatpush1.msra.mxu0 0.0
    %1054 = vmatprep.subr.mxu0 0.0
    %1055 = vmatpush1.msra.mxu0 0.0
    %1056 = vmatprep.subr.mxu0 0.0
    %1057 = vmatpush1.msra.mxu0 0.0
    %1058 = vmatprep.subr.mxu0 0.0
    %1059 = vmatpush1.msra.mxu0 0.0
    %1060 = vmatprep.subr.mxu0 0.0
    %1061 = vmatpush1.msra.mxu0 0.0
    %1062 = vmatprep.subr.mxu0 0.0
    %1063 = vmatpush1.msra.mxu0 0.0
    %1064 = vmatprep.subr.mxu0 0.0
    %1065 = vmatpush1.msra.mxu0 0.0
    %1066 = vmatprep.subr.mxu0 0.0
    %1067 = vmatpush1.msra.mxu0 0.0
    %1068 = vmatprep.subr.mxu0 0.0
    %1069 = vmatpush1.msra.mxu0 0.0
    %1070 = vmatprep.subr.mxu0 0.0
    %1071 = vmatpush1.msra.mxu0 0.0
    %1072 = vmatprep.subr.mxu0 0.0
    %1073 = vmatpush1.msra.mxu0 0.0
    %1074 = vmatprep.mubr.f32.mxu0 0.0
    %1075 = vmatmul.mubr.f32.gmra.mrb[0].mxu0 %v1008
    %v1076 = vpop.f32.mrb[0].mxu0
    %v1077 = vadd.f32 0.0, %v1076
    %v1078 = vpop.f32.mrb[0].mxu0
    %1079 = vdwg.mxu0
    %v1080 = vadd.f32 %v248, %v1077
    %v1081 = vxor.u32 %v1080, 2147483648
    %v1082 = vmul.f32 %v1081, 1.442695
    %v1083 = vpow.pop %v1082
    %v1084 = vadd.f32 %v1083, 1.0
    %v1085 = vrcp.pop %v1084
    %v1086 = vmul.f32 1.0, %v1085
    %v1087 = vtanh.pop %v1080
    %v1088 = vmul.f32 %v1086, %v794
    %1090 = vrot.lane.b32.xlu0 %v1087, 64
    %v1091 = vpop.permute.xlu0 %1090
    %v1093 = vmul.f32 %v1086, %v1091
    %1095 = vrot.lane.b32.xlu0 %v1093, 32
    %v1096 = vpop.permute.xlu0 %1095
    %v1098 = vadd.f32 %v1088, %v1096
    %v1099 = vtanh.pop %v1098
    %1101 = vrot.lane.b32.xlu0 %v1099, 64
    %v1102 = vpop.permute.xlu0 %1101
    %v1104 = vmul.f32 %v1086, %v1102
    %1106 = vrot.lane.b32.xlu0 %v902, 64
    %v1107 = vpop.permute.xlu0 %1106
    %v1109 = vsel %vm287, %v1007, %v1107
    %v1111 = vsel %vm494, %v1109, 0
    %1113 = vmatprep.subr.mxu0 0.0
    %1114 = vmatpush1.msra.mxu0 %v273
    %1115 = vmatprep.subr.mxu0 0.0
    %1116 = vmatpush1.msra.mxu0 %v274
    %1117 = vmatprep.subr.mxu0 0.0
    %1118 = vmatpush1.msra.mxu0 %v275
    %1119 = vmatprep.subr.mxu0 0.0
    %1120 = vmatpush1.msra.mxu0 %v276
    %1121 = vmatprep.subr.mxu0 0.0
    %1122 = vmatpush1.msra.mxu0 %v277
    %1123 = vmatprep.subr.mxu0 0.0
    %1124 = vmatpush1.msra.mxu0 %v278
    %1125 = vmatprep.subr.mxu0 0.0
    %1126 = vmatpush1.msra.mxu0 %v279
    %1127 = vmatprep.subr.mxu0 0.0
    %1128 = vmatpush1.msra.mxu0 %v280
    %1129 = vmatprep.subr.mxu0 0.0
    %1130 = vmatpush1.msra.mxu0 0.0
    %1131 = vmatprep.subr.mxu0 0.0
    %1132 = vmatpush1.msra.mxu0 0.0
    %1133 = vmatprep.subr.mxu0 0.0
    %1134 = vmatpush1.msra.mxu0 0.0
    %1135 = vmatprep.subr.mxu0 0.0
    %1136 = vmatpush1.msra.mxu0 0.0
    %1137 = vmatprep.subr.mxu0 0.0
    %1138 = vmatpush1.msra.mxu0 0.0
    %1139 = vmatprep.subr.mxu0 0.0
    %1140 = vmatpush1.msra.mxu0 0.0
    %1141 = vmatprep.subr.mxu0 0.0
    %1142 = vmatpush1.msra.mxu0 0.0
    %1143 = vmatprep.subr.mxu0 0.0
    %1144 = vmatpush1.msra.mxu0 0.0
    %1145 = vmatprep.subr.mxu0 0.0
    %1146 = vmatpush1.msra.mxu0 0.0
    %1147 = vmatprep.subr.mxu0 0.0
    %1148 = vmatpush1.msra.mxu0 0.0
    %1149 = vmatprep.subr.mxu0 0.0
    %1150 = vmatpush1.msra.mxu0 0.0
    %1151 = vmatprep.subr.mxu0 0.0
    %1152 = vmatpush1.msra.mxu0 0.0
    %1153 = vmatprep.subr.mxu0 0.0
    %1154 = vmatpush1.msra.mxu0 0.0
    %1155 = vmatprep.subr.mxu0 0.0
    %1156 = vmatpush1.msra.mxu0 0.0
    %1157 = vmatprep.subr.mxu0 0.0
    %1158 = vmatpush1.msra.mxu0 0.0
    %1159 = vmatprep.subr.mxu0 0.0
    %1160 = vmatpush1.msra.mxu0 0.0
    %1161 = vmatprep.subr.mxu0 0.0
    %1162 = vmatpush1.msra.mxu0 0.0
    %1163 = vmatprep.subr.mxu0 0.0
    %1164 = vmatpush1.msra.mxu0 0.0
    %1165 = vmatprep.subr.mxu0 0.0
    %1166 = vmatpush1.msra.mxu0 0.0
    %1167 = vmatprep.subr.mxu0 0.0
    %1168 = vmatpush1.msra.mxu0 0.0
    %1169 = vmatprep.subr.mxu0 0.0
    %1170 = vmatpush1.msra.mxu0 0.0
    %1171 = vmatprep.subr.mxu0 0.0
    %1172 = vmatpush1.msra.mxu0 0.0
    %1173 = vmatprep.subr.mxu0 0.0
    %1174 = vmatpush1.msra.mxu0 0.0
    %1175 = vmatprep.subr.mxu0 0.0
    %1176 = vmatpush1.msra.mxu0 0.0
    %1177 = vmatprep.mubr.f32.mxu0 0.0
    %1178 = vmatmul.mubr.f32.gmra.mrb[0].mxu0 %v1111
    %v1179 = vpop.f32.mrb[0].mxu0
    %v1180 = vadd.f32 %v492, %v1179
    %v1181 = vpop.f32.mrb[0].mxu0
    %1182 = vdwg.mxu0
    %v1183 = vxor.u32 %v1180, 2147483648
    %v1184 = vmul.f32 %v1183, 1.442695
    %v1185 = vpow.pop %v1184
    %v1186 = vadd.f32 %v1185, 1.0
    %v1187 = vrcp.pop %v1186
    %v1188 = vmul.f32 1.0, %v1187
    %v1189 = vtanh.pop %v1180
    %v1190 = vmul.f32 %v1188, %v896
    %1192 = vrot.lane.b32.xlu0 %v1189, 64
    %v1193 = vpop.permute.xlu0 %1192
    %v1195 = vmul.f32 %v1188, %v1193
    %1197 = vrot.lane.b32.xlu0 %v1195, 32
    %v1198 = vpop.permute.xlu0 %1197
    %v1200 = vadd.f32 %v1190, %v1198
    %v1201 = vtanh.pop %v1200
    %1203 = vrot.lane.b32.xlu0 %v1201, 64
    %v1204 = vpop.permute.xlu0 %1203
    %v1206 = vmul.f32 %v1188, %v1204
    %1208 = vrot.lane.b32.xlu0 %v1206, 32
    %v1209 = vpop.permute.xlu0 %1208
    %v1210 = vsel %vm287, %v1209, 0
    %1212 = vmatprep.subr.mxu0 0.0
    %1213 = vmatpush1.msra.mxu0 %v282
    %1214 = vmatprep.subr.mxu0 0.0
    %1215 = vmatpush1.msra.mxu0 %v283
    %1216 = vmatprep.subr.mxu0 0.0
    %1217 = vmatpush1.msra.mxu0 %v284
    %1218 = vmatprep.subr.mxu0 0.0
    %1219 = vmatpush1.msra.mxu0 %v285
    %1220 = vmatprep.subr.mxu0 0.0
    %1221 = vmatpush1.msra.mxu0 0.0
    %1222 = vmatprep.subr.mxu0 0.0
    %1223 = vmatpush1.msra.mxu0 0.0
    %1224 = vmatprep.subr.mxu0 0.0
    %1225 = vmatpush1.msra.mxu0 0.0
    %1226 = vmatprep.subr.mxu0 0.0
    %1227 = vmatpush1.msra.mxu0 0.0
    %1228 = vmatprep.subr.mxu0 0.0
    %1229 = vmatpush1.msra.mxu0 0.0
    %1230 = vmatprep.subr.mxu0 0.0
    %1231 = vmatpush1.msra.mxu0 0.0
    %1232 = vmatprep.subr.mxu0 0.0
    %1233 = vmatpush1.msra.mxu0 0.0
    %1234 = vmatprep.subr.mxu0 0.0
    %1235 = vmatpush1.msra.mxu0 0.0
    %1236 = vmatprep.subr.mxu0 0.0
    %1237 = vmatpush1.msra.mxu0 0.0
    %1238 = vmatprep.subr.mxu0 0.0
    %1239 = vmatpush1.msra.mxu0 0.0
    %1240 = vmatprep.subr.mxu0 0.0
    %1241 = vmatpush1.msra.mxu0 0.0
    %1242 = vmatprep.subr.mxu0 0.0
    %1243 = vmatpush1.msra.mxu0 0.0
    %1244 = vmatprep.subr.mxu0 0.0
    %1245 = vmatpush1.msra.mxu0 0.0
    %1246 = vmatprep.subr.mxu0 0.0
    %1247 = vmatpush1.msra.mxu0 0.0
    %1248 = vmatprep.subr.mxu0 0.0
    %1249 = vmatpush1.msra.mxu0 0.0
    %1250 = vmatprep.subr.mxu0 0.0
    %1251 = vmatpush1.msra.mxu0 0.0
    %1252 = vmatprep.subr.mxu0 0.0
    %1253 = vmatpush1.msra.mxu0 0.0
    %1254 = vmatprep.subr.mxu0 0.0
    %1255 = vmatpush1.msra.mxu0 0.0
    %1256 = vmatprep.subr.mxu0 0.0
    %1257 = vmatpush1.msra.mxu0 0.0
    %1258 = vmatprep.subr.mxu0 0.0
    %1259 = vmatpush1.msra.mxu0 0.0
    %1260 = vmatprep.subr.mxu0 0.0
    %1261 = vmatpush1.msra.mxu0 0.0
    %1262 = vmatprep.subr.mxu0 0.0
    %1263 = vmatpush1.msra.mxu0 0.0
    %1264 = vmatprep.subr.mxu0 0.0
    %1265 = vmatpush1.msra.mxu0 0.0
    %1266 = vmatprep.subr.mxu0 0.0
    %1267 = vmatpush1.msra.mxu0 0.0
    %1268 = vmatprep.subr.mxu0 0.0
    %1269 = vmatpush1.msra.mxu0 0.0
    %1270 = vmatprep.subr.mxu0 0.0
    %1271 = vmatpush1.msra.mxu0 0.0
    %1272 = vmatprep.subr.mxu0 0.0
    %1273 = vmatpush1.msra.mxu0 0.0
    %1274 = vmatprep.subr.mxu0 0.0
    %1275 = vmatpush1.msra.mxu0 0.0
    %1276 = vmatprep.mubr.f32.mxu0 0.0
    %1277 = vmatmul.mubr.f32.gmra.mrb[0].mxu0 %v1210
    %v1278 = vpop.f32.mrb[0].mxu0
    %v1279 = vadd.f32 %v596, %v1278
    %v1280 = vpop.f32.mrb[0].mxu0
    %1281 = vdwg.mxu0
    %v1284 = vunpack.c.l.s4 1966171168
    %v1285 = vunpack.c.0.s8 %v1284
    %v1286 = vlaneseq
    %v1287 = vshrl.u32 %v1286, 7
    %v1288 = vsub.s32 %v1285, %v1287
    %v1289 = vrot.slane %v1279, %v1288
    %v1290 = vcombine.high %v1289, %v1289
    %v1292 = vunpack.c.l.s4 1966171168
    %v1293 = vunpack.c.0.s8 %v1292
    %v1294 = vlaneseq
    %v1295 = vshrl.u32 %v1294, 7
    %v1296 = vsub.s32 %v1293, %v1295
    %v1297 = vrot.slane %v1289, %v1296
    %v1299 = vunpack.c.l.s4 1966171168
    %v1300 = vunpack.c.0.s8 %v1299
    %v1301 = vlaneseq
    %v1302 = vshrl.u32 %v1301, 7
    %v1303 = vsub.s32 %v1300, %v1302
    %v1304 = vrot.slane %v1290, %v1303
    %1307 = vst.msk [vmem:[#allocation8 + $0x2] sm:$0x1] %vm698, %v1297
    %1308 = vst.msk [vmem:[#allocation8 + $0xa] sm:$0x1] %vm698, %v1304
    %1310 = vrot.lane.b32.xlu0 %v1104, 32
    %v1311 = vpop.permute.xlu0 %1310
    %v1312 = vsel %vm287, %v1311, 0
    %1314 = vmatprep.subr.mxu0 0.0
    %1315 = vmatpush1.msra.mxu0 %v269
    %1316 = vmatprep.subr.mxu0 0.0
    %1317 = vmatpush1.msra.mxu0 %v270
    %1318 = vmatprep.subr.mxu0 0.0
    %1319 = vmatpush1.msra.mxu0 %v271
    %1320 = vmatprep.subr.mxu0 0.0
    %1321 = vmatpush1.msra.mxu0 %v272
    %1322 = vmatprep.subr.mxu0 0.0
    %1323 = vmatpush1.msra.mxu0 0.0
    %1324 = vmatprep.subr.mxu0 0.0
    %1325 = vmatpush1.msra.mxu0 0.0
    %1326 = vmatprep.subr.mxu0 0.0
    %1327 = vmatpush1.msra.mxu0 0.0
    %1328 = vmatprep.subr.mxu0 0.0
    %1329 = vmatpush1.msra.mxu0 0.0
    %1330 = vmatprep.subr.mxu0 0.0
    %1331 = vmatpush1.msra.mxu0 0.0
    %1332 = vmatprep.subr.mxu0 0.0
    %1333 = vmatpush1.msra.mxu0 0.0
    %1334 = vmatprep.subr.mxu0 0.0
    %1335 = vmatpush1.msra.mxu0 0.0
    %1336 = vmatprep.subr.mxu0 0.0
    %1337 = vmatpush1.msra.mxu0 0.0
    %1338 = vmatprep.subr.mxu0 0.0
    %1339 = vmatpush1.msra.mxu0 0.0
    %1340 = vmatprep.subr.mxu0 0.0
    %1341 = vmatpush1.msra.mxu0 0.0
    %1342 = vmatprep.subr.mxu0 0.0
    %1343 = vmatpush1.msra.mxu0 0.0
    %1344 = vmatprep.subr.mxu0 0.0
    %1345 = vmatpush1.msra.mxu0 0.0
    %1346 = vmatprep.subr.mxu0 0.0
    %1347 = vmatpush1.msra.mxu0 0.0
    %1348 = vmatprep.subr.mxu0 0.0
    %1349 = vmatpush1.msra.mxu0 0.0
    %1350 = vmatprep.subr.mxu0 0.0
    %1351 = vmatpush1.msra.mxu0 0.0
    %1352 = vmatprep.subr.mxu0 0.0
    %1353 = vmatpush1.msra.mxu0 0.0
    %1354 = vmatprep.subr.mxu0 0.0
    %1355 = vmatpush1.msra.mxu0 0.0
    %1356 = vmatprep.subr.mxu0 0.0
    %1357 = vmatpush1.msra.mxu0 0.0
    %1358 = vmatprep.subr.mxu0 0.0
    %1359 = vmatpush1.msra.mxu0 0.0
    %1360 = vmatprep.subr.mxu0 0.0
    %1361 = vmatpush1.msra.mxu0 0.0
    %1362 = vmatprep.subr.mxu0 0.0
    %1363 = vmatpush1.msra.mxu0 0.0
    %1364 = vmatprep.subr.mxu0 0.0
    %1365 = vmatpush1.msra.mxu0 0.0
    %1366 = vmatprep.subr.mxu0 0.0
    %1367 = vmatpush1.msra.mxu0 0.0
    %1368 = vmatprep.subr.mxu0 0.0
    %1369 = vmatpush1.msra.mxu0 0.0
    %1370 = vmatprep.subr.mxu0 0.0
    %1371 = vmatpush1.msra.mxu0 0.0
    %1372 = vmatprep.subr.mxu0 0.0
    %1373 = vmatpush1.msra.mxu0 0.0
    %1374 = vmatprep.subr.mxu0 0.0
    %1375 = vmatpush1.msra.mxu0 0.0
    %1376 = vmatprep.subr.mxu0 0.0
    %1377 = vmatpush1.msra.mxu0 0.0
    %1378 = vmatprep.mubr.f32.mxu0 0.0
    %1379 = vmatmul.mubr.f32.gmra.mrb[0].mxu0 %v1312
    %v1380 = vpop.f32.mrb[0].mxu0
    %v1381 = vadd.f32 0.0, %v1380
    %v1382 = vpop.f32.mrb[0].mxu0
    %1383 = vdwg.mxu0
    %v1384 = vadd.f32 %v253, %v1381
    %v1385 = vxor.u32 %v1384, 2147483648
    %v1386 = vmul.f32 %v1385, 1.442695
    %v1387 = vpow.pop %v1386
    %v1388 = vadd.f32 %v1387, 1.0
    %v1389 = vrcp.pop %v1388
    %v1390 = vmul.f32 1.0, %v1389
    %v1391 = vtanh.pop %v1384
    %v1392 = vmul.f32 %v1390, %v1098
    %1394 = vrot.lane.b32.xlu0 %v1391, 64
    %v1395 = vpop.permute.xlu0 %1394
    %v1397 = vmul.f32 %v1390, %v1395
    %1399 = vrot.lane.b32.xlu0 %v1397, 32
    %v1400 = vpop.permute.xlu0 %1399
    %v1402 = vadd.f32 %v1392, %v1400
    %v1403 = vtanh.pop %v1402
    %1405 = vrot.lane.b32.xlu0 %v1403, 64
    %v1406 = vpop.permute.xlu0 %1405
    %v1408 = vmul.f32 %v1390, %v1406
    %1410 = vrot.lane.b32.xlu0 %v1206, 64
    %v1411 = vpop.permute.xlu0 %1410
    %v1413 = vsel %vm287, %v1311, %v1411
    %v1415 = vsel %vm494, %v1413, 0
    %1417 = vmatprep.subr.mxu0 0.0
    %1418 = vmatpush1.msra.mxu0 %v273
    %1419 = vmatprep.subr.mxu0 0.0
    %1420 = vmatpush1.msra.mxu0 %v274
    %1421 = vmatprep.subr.mxu0 0.0
    %1422 = vmatpush1.msra.mxu0 %v275
    %1423 = vmatprep.subr.mxu0 0.0
    %1424 = vmatpush1.msra.mxu0 %v276
    %1425 = vmatprep.subr.mxu0 0.0
    %1426 = vmatpush1.msra.mxu0 %v277
    %1427 = vmatprep.subr.mxu0 0.0
    %1428 = vmatpush1.msra.mxu0 %v278
    %1429 = vmatprep.subr.mxu0 0.0
    %1430 = vmatpush1.msra.mxu0 %v279
    %1431 = vmatprep.subr.mxu0 0.0
    %1432 = vmatpush1.msra.mxu0 %v280
    %1433 = vmatprep.subr.mxu0 0.0
    %1434 = vmatpush1.msra.mxu0 0.0
    %1435 = vmatprep.subr.mxu0 0.0
    %1436 = vmatpush1.msra.mxu0 0.0
    %1437 = vmatprep.subr.mxu0 0.0
    %1438 = vmatpush1.msra.mxu0 0.0
    %1439 = vmatprep.subr.mxu0 0.0
    %1440 = vmatpush1.msra.mxu0 0.0
    %1441 = vmatprep.subr.mxu0 0.0
    %1442 = vmatpush1.msra.mxu0 0.0
    %1443 = vmatprep.subr.mxu0 0.0
    %1444 = vmatpush1.msra.mxu0 0.0
    %1445 = vmatprep.subr.mxu0 0.0
    %1446 = vmatpush1.msra.mxu0 0.0
    %1447 = vmatprep.subr.mxu0 0.0
    %1448 = vmatpush1.msra.mxu0 0.0
    %1449 = vmatprep.subr.mxu0 0.0
    %1450 = vmatpush1.msra.mxu0 0.0
    %1451 = vmatprep.subr.mxu0 0.0
    %1452 = vmatpush1.msra.mxu0 0.0
    %1453 = vmatprep.subr.mxu0 0.0
    %1454 = vmatpush1.msra.mxu0 0.0
    %1455 = vmatprep.subr.mxu0 0.0
    %1456 = vmatpush1.msra.mxu0 0.0
    %1457 = vmatprep.subr.mxu0 0.0
    %1458 = vmatpush1.msra.mxu0 0.0
    %1459 = vmatprep.subr.mxu0 0.0
    %1460 = vmatpush1.msra.mxu0 0.0
    %1461 = vmatprep.subr.mxu0 0.0
    %1462 = vmatpush1.msra.mxu0 0.0
    %1463 = vmatprep.subr.mxu0 0.0
    %1464 = vmatpush1.msra.mxu0 0.0
    %1465 = vmatprep.subr.mxu0 0.0
    %1466 = vmatpush1.msra.mxu0 0.0
    %1467 = vmatprep.subr.mxu0 0.0
    %1468 = vmatpush1.msra.mxu0 0.0
    %1469 = vmatprep.subr.mxu0 0.0
    %1470 = vmatpush1.msra.mxu0 0.0
    %1471 = vmatprep.subr.mxu0 0.0
    %1472 = vmatpush1.msra.mxu0 0.0
    %1473 = vmatprep.subr.mxu0 0.0
    %1474 = vmatpush1.msra.mxu0 0.0
    %1475 = vmatprep.subr.mxu0 0.0
    %1476 = vmatpush1.msra.mxu0 0.0
    %1477 = vmatprep.subr.mxu0 0.0
    %1478 = vmatpush1.msra.mxu0 0.0
    %1479 = vmatprep.subr.mxu0 0.0
    %1480 = vmatpush1.msra.mxu0 0.0
    %1481 = vmatprep.mubr.f32.mxu0 0.0
    %1482 = vmatmul.mubr.f32.gmra.mrb[0].mxu0 %v1415
    %v1483 = vpop.f32.mrb[0].mxu0
    %v1484 = vadd.f32 %v492, %v1483
    %v1485 = vpop.f32.mrb[0].mxu0
    %1486 = vdwg.mxu0
    %v1487 = vxor.u32 %v1484, 2147483648
    %v1488 = vmul.f32 %v1487, 1.442695
    %v1489 = vpow.pop %v1488
    %v1490 = vadd.f32 %v1489, 1.0
    %v1491 = vrcp.pop %v1490
    %v1492 = vmul.f32 1.0, %v1491
    %v1493 = vtanh.pop %v1484
    %v1494 = vmul.f32 %v1492, %v1200
    %1496 = vrot.lane.b32.xlu0 %v1493, 64
    %v1497 = vpop.permute.xlu0 %1496
    %v1499 = vmul.f32 %v1492, %v1497
    %1501 = vrot.lane.b32.xlu0 %v1499, 32
    %v1502 = vpop.permute.xlu0 %1501
    %v1504 = vadd.f32 %v1494, %v1502
    %v1505 = vtanh.pop %v1504
    %1507 = vrot.lane.b32.xlu0 %v1505, 64
    %v1508 = vpop.permute.xlu0 %1507
    %v1510 = vmul.f32 %v1492, %v1508
    %1512 = vrot.lane.b32.xlu0 %v1510, 32
    %v1513 = vpop.permute.xlu0 %1512
    %v1514 = vsel %vm287, %v1513, 0
    %1516 = vmatprep.subr.mxu0 0.0
    %1517 = vmatpush1.msra.mxu0 %v282
    %1518 = vmatprep.subr.mxu0 0.0
    %1519 = vmatpush1.msra.mxu0 %v283
    %1520 = vmatprep.subr.mxu0 0.0
    %1521 = vmatpush1.msra.mxu0 %v284
    %1522 = vmatprep.subr.mxu0 0.0
    %1523 = vmatpush1.msra.mxu0 %v285
    %1524 = vmatprep.subr.mxu0 0.0
    %1525 = vmatpush1.msra.mxu0 0.0
    %1526 = vmatprep.subr.mxu0 0.0
    %1527 = vmatpush1.msra.mxu0 0.0
    %1528 = vmatprep.subr.mxu0 0.0
    %1529 = vmatpush1.msra.mxu0 0.0
    %1530 = vmatprep.subr.mxu0 0.0
    %1531 = vmatpush1.msra.mxu0 0.0
    %1532 = vmatprep.subr.mxu0 0.0
    %1533 = vmatpush1.msra.mxu0 0.0
    %1534 = vmatprep.subr.mxu0 0.0
    %1535 = vmatpush1.msra.mxu0 0.0
    %1536 = vmatprep.subr.mxu0 0.0
    %1537 = vmatpush1.msra.mxu0 0.0
    %1538 = vmatprep.subr.mxu0 0.0
    %1539 = vmatpush1.msra.mxu0 0.0
    %1540 = vmatprep.subr.mxu0 0.0
    %1541 = vmatpush1.msra.mxu0 0.0
    %1542 = vmatprep.subr.mxu0 0.0
    %1543 = vmatpush1.msra.mxu0 0.0
    %1544 = vmatprep.subr.mxu0 0.0
    %1545 = vmatpush1.msra.mxu0 0.0
    %1546 = vmatprep.subr.mxu0 0.0
    %1547 = vmatpush1.msra.mxu0 0.0
    %1548 = vmatprep.subr.mxu0 0.0
    %1549 = vmatpush1.msra.mxu0 0.0
    %1550 = vmatprep.subr.mxu0 0.0
    %1551 = vmatpush1.msra.mxu0 0.0
    %1552 = vmatprep.subr.mxu0 0.0
    %1553 = vmatpush1.msra.mxu0 0.0
    %1554 = vmatprep.subr.mxu0 0.0
    %1555 = vmatpush1.msra.mxu0 0.0
    %1556 = vmatprep.subr.mxu0 0.0
    %1557 = vmatpush1.msra.mxu0 0.0
    %1558 = vmatprep.subr.mxu0 0.0
    %1559 = vmatpush1.msra.mxu0 0.0
    %1560 = vmatprep.subr.mxu0 0.0
    %1561 = vmatpush1.msra.mxu0 0.0
    %1562 = vmatprep.subr.mxu0 0.0
    %1563 = vmatpush1.msra.mxu0 0.0
    %1564 = vmatprep.subr.mxu0 0.0
    %1565 = vmatpush1.msra.mxu0 0.0
    %1566 = vmatprep.subr.mxu0 0.0
    %1567 = vmatpush1.msra.mxu0 0.0
    %1568 = vmatprep.subr.mxu0 0.0
    %1569 = vmatpush1.msra.mxu0 0.0
    %1570 = vmatprep.subr.mxu0 0.0
    %1571 = vmatpush1.msra.mxu0 0.0
    %1572 = vmatprep.subr.mxu0 0.0
    %1573 = vmatpush1.msra.mxu0 0.0
    %1574 = vmatprep.subr.mxu0 0.0
    %1575 = vmatpush1.msra.mxu0 0.0
    %1576 = vmatprep.subr.mxu0 0.0
    %1577 = vmatpush1.msra.mxu0 0.0
    %1578 = vmatprep.subr.mxu0 0.0
    %1579 = vmatpush1.msra.mxu0 0.0
    %1580 = vmatprep.mubr.f32.mxu0 0.0
    %1581 = vmatmul.mubr.f32.gmra.mrb[0].mxu0 %v1514
    %v1582 = vpop.f32.mrb[0].mxu0
    %v1583 = vadd.f32 %v596, %v1582
    %v1584 = vpop.f32.mrb[0].mxu0
    %1585 = vdwg.mxu0
    %v1588 = vunpack.c.l.s4 1966171168
    %v1589 = vunpack.c.0.s8 %v1588
    %v1590 = vlaneseq
    %v1591 = vshrl.u32 %v1590, 7
    %v1592 = vsub.s32 %v1589, %v1591
    %v1593 = vrot.slane %v1583, %v1592
    %v1594 = vcombine.high %v1593, %v1593
    %v1596 = vunpack.c.l.s4 1966171168
    %v1597 = vunpack.c.0.s8 %v1596
    %v1598 = vlaneseq
    %v1599 = vshrl.u32 %v1598, 7
    %v1600 = vsub.s32 %v1597, %v1599
    %v1601 = vrot.slane %v1593, %v1600
    %v1603 = vunpack.c.l.s4 1966171168
    %v1604 = vunpack.c.0.s8 %v1603
    %v1605 = vlaneseq
    %v1606 = vshrl.u32 %v1605, 7
    %v1607 = vsub.s32 %v1604, %v1606
    %v1608 = vrot.slane %v1594, %v1607
    %1611 = vst.msk [vmem:[#allocation8 + $0x3] sm:$0x1] %vm698, %v1601
    %1612 = vst.msk [vmem:[#allocation8 + $0xb] sm:$0x1] %vm698, %v1608
    %1614 = vrot.lane.b32.xlu0 %v1408, 32
    %v1615 = vpop.permute.xlu0 %1614
    %v1616 = vsel %vm287, %v1615, 0
    %1618 = vmatprep.subr.mxu0 0.0
    %1619 = vmatpush1.msra.mxu0 %v269
    %1620 = vmatprep.subr.mxu0 0.0
    %1621 = vmatpush1.msra.mxu0 %v270
    %1622 = vmatprep.subr.mxu0 0.0
    %1623 = vmatpush1.msra.mxu0 %v271
    %1624 = vmatprep.subr.mxu0 0.0
    %1625 = vmatpush1.msra.mxu0 %v272
    %1626 = vmatprep.subr.mxu0 0.0
    %1627 = vmatpush1.msra.mxu0 0.0
    %1628 = vmatprep.subr.mxu0 0.0
    %1629 = vmatpush1.msra.mxu0 0.0
    %1630 = vmatprep.subr.mxu0 0.0
    %1631 = vmatpush1.msra.mxu0 0.0
    %1632 = vmatprep.subr.mxu0 0.0
    %1633 = vmatpush1.msra.mxu0 0.0
    %1634 = vmatprep.subr.mxu0 0.0
    %1635 = vmatpush1.msra.mxu0 0.0
    %1636 = vmatprep.subr.mxu0 0.0
    %1637 = vmatpush1.msra.mxu0 0.0
    %1638 = vmatprep.subr.mxu0 0.0
    %1639 = vmatpush1.msra.mxu0 0.0
    %1640 = vmatprep.subr.mxu0 0.0
    %1641 = vmatpush1.msra.mxu0 0.0
    %1642 = vmatprep.subr.mxu0 0.0
    %1643 = vmatpush1.msra.mxu0 0.0
    %1644 = vmatprep.subr.mxu0 0.0
    %1645 = vmatpush1.msra.mxu0 0.0
    %1646 = vmatprep.subr.mxu0 0.0
    %1647 = vmatpush1.msra.mxu0 0.0
    %1648 = vmatprep.subr.mxu0 0.0
    %1649 = vmatpush1.msra.mxu0 0.0
    %1650 = vmatprep.subr.mxu0 0.0
    %1651 = vmatpush1.msra.mxu0 0.0
    %1652 = vmatprep.subr.mxu0 0.0
    %1653 = vmatpush1.msra.mxu0 0.0
    %1654 = vmatprep.subr.mxu0 0.0
    %1655 = vmatpush1.msra.mxu0 0.0
    %1656 = vmatprep.subr.mxu0 0.0
    %1657 = vmatpush1.msra.mxu0 0.0
    %1658 = vmatprep.subr.mxu0 0.0
    %1659 = vmatpush1.msra.mxu0 0.0
    %1660 = vmatprep.subr.mxu0 0.0
    %1661 = vmatpush1.msra.mxu0 0.0
    %1662 = vmatprep.subr.mxu0 0.0
    %1663 = vmatpush1.msra.mxu0 0.0
    %1664 = vmatprep.subr.mxu0 0.0
    %1665 = vmatpush1.msra.mxu0 0.0
    %1666 = vmatprep.subr.mxu0 0.0
    %1667 = vmatpush1.msra.mxu0 0.0
    %1668 = vmatprep.subr.mxu0 0.0
    %1669 = vmatpush1.msra.mxu0 0.0
    %1670 = vmatprep.subr.mxu0 0.0
    %1671 = vmatpush1.msra.mxu0 0.0
    %1672 = vmatprep.subr.mxu0 0.0
    %1673 = vmatpush1.msra.mxu0 0.0
    %1674 = vmatprep.subr.mxu0 0.0
    %1675 = vmatpush1.msra.mxu0 0.0
    %1676 = vmatprep.subr.mxu0 0.0
    %1677 = vmatpush1.msra.mxu0 0.0
    %1678 = vmatprep.subr.mxu0 0.0
    %1679 = vmatpush1.msra.mxu0 0.0
    %1680 = vmatprep.subr.mxu0 0.0
    %1681 = vmatpush1.msra.mxu0 0.0
    %1682 = vmatprep.mubr.f32.mxu0 0.0
    %1683 = vmatmul.mubr.f32.gmra.mrb[0].mxu0 %v1616
    %v1684 = vpop.f32.mrb[0].mxu0
    %v1685 = vadd.f32 0.0, %v1684
    %v1686 = vpop.f32.mrb[0].mxu0
    %1687 = vdwg.mxu0
    %v1688 = vadd.f32 %v258, %v1685
    %v1689 = vxor.u32 %v1688, 2147483648
    %v1690 = vmul.f32 %v1689, 1.442695
    %v1691 = vpow.pop %v1690
    %v1692 = vadd.f32 %v1691, 1.0
    %v1693 = vrcp.pop %v1692
    %v1694 = vmul.f32 1.0, %v1693
    %v1695 = vtanh.pop %v1688
    %v1696 = vmul.f32 %v1694, %v1402
    %1698 = vrot.lane.b32.xlu0 %v1695, 64
    %v1699 = vpop.permute.xlu0 %1698
    %v1701 = vmul.f32 %v1694, %v1699
    %1703 = vrot.lane.b32.xlu0 %v1701, 32
    %v1704 = vpop.permute.xlu0 %1703
    %v1706 = vadd.f32 %v1696, %v1704
    %v1707 = vtanh.pop %v1706
    %1709 = vrot.lane.b32.xlu0 %v1707, 64
    %v1710 = vpop.permute.xlu0 %1709
    %v1712 = vmul.f32 %v1694, %v1710
    %1714 = vrot.lane.b32.xlu0 %v1510, 64
    %v1715 = vpop.permute.xlu0 %1714
    %v1717 = vsel %vm287, %v1615, %v1715
    %v1719 = vsel %vm494, %v1717, 0
    %1721 = vmatprep.subr.mxu0 0.0
    %1722 = vmatpush1.msra.mxu0 %v273
    %1723 = vmatprep.subr.mxu0 0.0
    %1724 = vmatpush1.msra.mxu0 %v274
    %1725 = vmatprep.subr.mxu0 0.0
    %1726 = vmatpush1.msra.mxu0 %v275
    %1727 = vmatprep.subr.mxu0 0.0
    %1728 = vmatpush1.msra.mxu0 %v276
    %1729 = vmatprep.subr.mxu0 0.0
    %1730 = vmatpush1.msra.mxu0 %v277
    %1731 = vmatprep.subr.mxu0 0.0
    %1732 = vmatpush1.msra.mxu0 %v278
    %1733 = vmatprep.subr.mxu0 0.0
    %1734 = vmatpush1.msra.mxu0 %v279
    %1735 = vmatprep.subr.mxu0 0.0
    %1736 = vmatpush1.msra.mxu0 %v280
    %1737 = vmatprep.subr.mxu0 0.0
    %1738 = vmatpush1.msra.mxu0 0.0
    %1739 = vmatprep.subr.mxu0 0.0
    %1740 = vmatpush1.msra.mxu0 0.0
    %1741 = vmatprep.subr.mxu0 0.0
    %1742 = vmatpush1.msra.mxu0 0.0
    %1743 = vmatprep.subr.mxu0 0.0
    %1744 = vmatpush1.msra.mxu0 0.0
    %1745 = vmatprep.subr.mxu0 0.0
    %1746 = vmatpush1.msra.mxu0 0.0
    %1747 = vmatprep.subr.mxu0 0.0
    %1748 = vmatpush1.msra.mxu0 0.0
    %1749 = vmatprep.subr.mxu0 0.0
    %1750 = vmatpush1.msra.mxu0 0.0
    %1751 = vmatprep.subr.mxu0 0.0
    %1752 = vmatpush1.msra.mxu0 0.0
    %1753 = vmatprep.subr.mxu0 0.0
    %1754 = vmatpush1.msra.mxu0 0.0
    %1755 = vmatprep.subr.mxu0 0.0
    %1756 = vmatpush1.msra.mxu0 0.0
    %1757 = vmatprep.subr.mxu0 0.0
    %1758 = vmatpush1.msra.mxu0 0.0
    %1759 = vmatprep.subr.mxu0 0.0
    %1760 = vmatpush1.msra.mxu0 0.0
    %1761 = vmatprep.subr.mxu0 0.0
    %1762 = vmatpush1.msra.mxu0 0.0
    %1763 = vmatprep.subr.mxu0 0.0
    %1764 = vmatpush1.msra.mxu0 0.0
    %1765 = vmatprep.subr.mxu0 0.0
    %1766 = vmatpush1.msra.mxu0 0.0
    %1767 = vmatprep.subr.mxu0 0.0
    %1768 = vmatpush1.msra.mxu0 0.0
    %1769 = vmatprep.subr.mxu0 0.0
    %1770 = vmatpush1.msra.mxu0 0.0
    %1771 = vmatprep.subr.mxu0 0.0
    %1772 = vmatpush1.msra.mxu0 0.0
    %1773 = vmatprep.subr.mxu0 0.0
    %1774 = vmatpush1.msra.mxu0 0.0
    %1775 = vmatprep.subr.mxu0 0.0
    %1776 = vmatpush1.msra.mxu0 0.0
    %1777 = vmatprep.subr.mxu0 0.0
    %1778 = vmatpush1.msra.mxu0 0.0
    %1779 = vmatprep.subr.mxu0 0.0
    %1780 = vmatpush1.msra.mxu0 0.0
    %1781 = vmatprep.subr.mxu0 0.0
    %1782 = vmatpush1.msra.mxu0 0.0
    %1783 = vmatprep.subr.mxu0 0.0
    %1784 = vmatpush1.msra.mxu0 0.0
    %1785 = vmatprep.mubr.f32.mxu0 0.0
    %1786 = vmatmul.mubr.f32.gmra.mrb[0].mxu0 %v1719
    %v1787 = vpop.f32.mrb[0].mxu0
    %v1788 = vadd.f32 %v492, %v1787
    %v1789 = vpop.f32.mrb[0].mxu0
    %1790 = vdwg.mxu0
    %v1791 = vxor.u32 %v1788, 2147483648
    %v1792 = vmul.f32 %v1791, 1.442695
    %v1793 = vpow.pop %v1792
    %v1794 = vadd.f32 %v1793, 1.0
    %v1795 = vrcp.pop %v1794
    %v1796 = vmul.f32 1.0, %v1795
    %v1797 = vtanh.pop %v1788
    %v1798 = vmul.f32 %v1796, %v1504
    %1800 = vrot.lane.b32.xlu0 %v1797, 64
    %v1801 = vpop.permute.xlu0 %1800
    %v1803 = vmul.f32 %v1796, %v1801
    %1805 = vrot.lane.b32.xlu0 %v1803, 32
    %v1806 = vpop.permute.xlu0 %1805
    %v1808 = vadd.f32 %v1798, %v1806
    %v1809 = vtanh.pop %v1808
    %1811 = vrot.lane.b32.xlu0 %v1809, 64
    %v1812 = vpop.permute.xlu0 %1811
    %v1814 = vmul.f32 %v1796, %v1812
    %1816 = vrot.lane.b32.xlu0 %v1814, 32
    %v1817 = vpop.permute.xlu0 %1816
    %v1818 = vsel %vm287, %v1817, 0
    %1820 = vmatprep.subr.mxu0 0.0
    %1821 = vmatpush1.msra.mxu0 %v282
    %1822 = vmatprep.subr.mxu0 0.0
    %1823 = vmatpush1.msra.mxu0 %v283
    %1824 = vmatprep.subr.mxu0 0.0
    %1825 = vmatpush1.msra.mxu0 %v284
    %1826 = vmatprep.subr.mxu0 0.0
    %1827 = vmatpush1.msra.mxu0 %v285
    %1828 = vmatprep.subr.mxu0 0.0
    %1829 = vmatpush1.msra.mxu0 0.0
    %1830 = vmatprep.subr.mxu0 0.0
    %1831 = vmatpush1.msra.mxu0 0.0
    %1832 = vmatprep.subr.mxu0 0.0
    %1833 = vmatpush1.msra.mxu0 0.0
    %1834 = vmatprep.subr.mxu0 0.0
    %1835 = vmatpush1.msra.mxu0 0.0
    %1836 = vmatprep.subr.mxu0 0.0
    %1837 = vmatpush1.msra.mxu0 0.0
    %1838 = vmatprep.subr.mxu0 0.0
    %1839 = vmatpush1.msra.mxu0 0.0
    %1840 = vmatprep.subr.mxu0 0.0
    %1841 = vmatpush1.msra.mxu0 0.0
    %1842 = vmatprep.subr.mxu0 0.0
    %1843 = vmatpush1.msra.mxu0 0.0
    %1844 = vmatprep.subr.mxu0 0.0
    %1845 = vmatpush1.msra.mxu0 0.0
    %1846 = vmatprep.subr.mxu0 0.0
    %1847 = vmatpush1.msra.mxu0 0.0
    %1848 = vmatprep.subr.mxu0 0.0
    %1849 = vmatpush1.msra.mxu0 0.0
    %1850 = vmatprep.subr.mxu0 0.0
    %1851 = vmatpush1.msra.mxu0 0.0
    %1852 = vmatprep.subr.mxu0 0.0
    %1853 = vmatpush1.msra.mxu0 0.0
    %1854 = vmatprep.subr.mxu0 0.0
    %1855 = vmatpush1.msra.mxu0 0.0
    %1856 = vmatprep.subr.mxu0 0.0
    %1857 = vmatpush1.msra.mxu0 0.0
    %1858 = vmatprep.subr.mxu0 0.0
    %1859 = vmatpush1.msra.mxu0 0.0
    %1860 = vmatprep.subr.mxu0 0.0
    %1861 = vmatpush1.msra.mxu0 0.0
    %1862 = vmatprep.subr.mxu0 0.0
    %1863 = vmatpush1.msra.mxu0 0.0
    %1864 = vmatprep.subr.mxu0 0.0
    %1865 = vmatpush1.msra.mxu0 0.0
    %1866 = vmatprep.subr.mxu0 0.0
    %1867 = vmatpush1.msra.mxu0 0.0
    %1868 = vmatprep.subr.mxu0 0.0
    %1869 = vmatpush1.msra.mxu0 0.0
    %1870 = vmatprep.subr.mxu0 0.0
    %1871 = vmatpush1.msra.mxu0 0.0
    %1872 = vmatprep.subr.mxu0 0.0
    %1873 = vmatpush1.msra.mxu0 0.0
    %1874 = vmatprep.subr.mxu0 0.0
    %1875 = vmatpush1.msra.mxu0 0.0
    %1876 = vmatprep.subr.mxu0 0.0
    %1877 = vmatpush1.msra.mxu0 0.0
    %1878 = vmatprep.subr.mxu0 0.0
    %1879 = vmatpush1.msra.mxu0 0.0
    %1880 = vmatprep.subr.mxu0 0.0
    %1881 = vmatpush1.msra.mxu0 0.0
    %1882 = vmatprep.subr.mxu0 0.0
    %1883 = vmatpush1.msra.mxu0 0.0
    %1884 = vmatprep.mubr.f32.mxu0 0.0
    %1885 = vmatmul.mubr.f32.gmra.mrb[0].mxu0 %v1818
    %v1886 = vpop.f32.mrb[0].mxu0
    %v1887 = vadd.f32 %v596, %v1886
    %v1888 = vpop.f32.mrb[0].mxu0
    %1889 = vdwg.mxu0
    %v1892 = vunpack.c.l.s4 1966171168
    %v1893 = vunpack.c.0.s8 %v1892
    %v1894 = vlaneseq
    %v1895 = vshrl.u32 %v1894, 7
    %v1896 = vsub.s32 %v1893, %v1895
    %v1897 = vrot.slane %v1887, %v1896
    %v1898 = vcombine.high %v1897, %v1897
    %v1900 = vunpack.c.l.s4 1966171168
    %v1901 = vunpack.c.0.s8 %v1900
    %v1902 = vlaneseq
    %v1903 = vshrl.u32 %v1902, 7
    %v1904 = vsub.s32 %v1901, %v1903
    %v1905 = vrot.slane %v1897, %v1904
    %v1907 = vunpack.c.l.s4 1966171168
    %v1908 = vunpack.c.0.s8 %v1907
    %v1909 = vlaneseq
    %v1910 = vshrl.u32 %v1909, 7
    %v1911 = vsub.s32 %v1908, %v1910
    %v1912 = vrot.slane %v1898, %v1911
    %1915 = vst.msk [vmem:[#allocation8 + $0x4] sm:$0x1] %vm698, %v1905
    %1916 = vst.msk [vmem:[#allocation8 + $0xc] sm:$0x1] %vm698, %v1912
    %1918 = vrot.lane.b32.xlu0 %v1712, 32
    %v1919 = vpop.permute.xlu0 %1918
    %v1920 = vsel %vm287, %v1919, 0
    %1922 = vmatprep.subr.mxu0 0.0
    %1923 = vmatpush1.msra.mxu0 %v269
    %1924 = vmatprep.subr.mxu0 0.0
    %1925 = vmatpush1.msra.mxu0 %v270
    %1926 = vmatprep.subr.mxu0 0.0
    %1927 = vmatpush1.msra.mxu0 %v271
    %1928 = vmatprep.subr.mxu0 0.0
    %1929 = vmatpush1.msra.mxu0 %v272
    %1930 = vmatprep.subr.mxu0 0.0
    %1931 = vmatpush1.msra.mxu0 0.0
    %1932 = vmatprep.subr.mxu0 0.0
    %1933 = vmatpush1.msra.mxu0 0.0
    %1934 = vmatprep.subr.mxu0 0.0
    %1935 = vmatpush1.msra.mxu0 0.0
    %1936 = vmatprep.subr.mxu0 0.0
    %1937 = vmatpush1.msra.mxu0 0.0
    %1938 = vmatprep.subr.mxu0 0.0
    %1939 = vmatpush1.msra.mxu0 0.0
    %1940 = vmatprep.subr.mxu0 0.0
    %1941 = vmatpush1.msra.mxu0 0.0
    %1942 = vmatprep.subr.mxu0 0.0
    %1943 = vmatpush1.msra.mxu0 0.0
    %1944 = vmatprep.subr.mxu0 0.0
    %1945 = vmatpush1.msra.mxu0 0.0
    %1946 = vmatprep.subr.mxu0 0.0
    %1947 = vmatpush1.msra.mxu0 0.0
    %1948 = vmatprep.subr.mxu0 0.0
    %1949 = vmatpush1.msra.mxu0 0.0
    %1950 = vmatprep.subr.mxu0 0.0
    %1951 = vmatpush1.msra.mxu0 0.0
    %1952 = vmatprep.subr.mxu0 0.0
    %1953 = vmatpush1.msra.mxu0 0.0
    %1954 = vmatprep.subr.mxu0 0.0
    %1955 = vmatpush1.msra.mxu0 0.0
    %1956 = vmatprep.subr.mxu0 0.0
    %1957 = vmatpush1.msra.mxu0 0.0
    %1958 = vmatprep.subr.mxu0 0.0
    %1959 = vmatpush1.msra.mxu0 0.0
    %1960 = vmatprep.subr.mxu0 0.0
    %1961 = vmatpush1.msra.mxu0 0.0
    %1962 = vmatprep.subr.mxu0 0.0
    %1963 = vmatpush1.msra.mxu0 0.0
    %1964 = vmatprep.subr.mxu0 0.0
    %1965 = vmatpush1.msra.mxu0 0.0
    %1966 = vmatprep.subr.mxu0 0.0
    %1967 = vmatpush1.msra.mxu0 0.0
    %1968 = vmatprep.subr.mxu0 0.0
    %1969 = vmatpush1.msra.mxu0 0.0
    %1970 = vmatprep.subr.mxu0 0.0
    %1971 = vmatpush1.msra.mxu0 0.0
    %1972 = vmatprep.subr.mxu0 0.0
    %1973 = vmatpush1.msra.mxu0 0.0
    %1974 = vmatprep.subr.mxu0 0.0
    %1975 = vmatpush1.msra.mxu0 0.0
    %1976 = vmatprep.subr.mxu0 0.0
    %1977 = vmatpush1.msra.mxu0 0.0
    %1978 = vmatprep.subr.mxu0 0.0
    %1979 = vmatpush1.msra.mxu0 0.0
    %1980 = vmatprep.subr.mxu0 0.0
    %1981 = vmatpush1.msra.mxu0 0.0
    %1982 = vmatprep.subr.mxu0 0.0
    %1983 = vmatpush1.msra.mxu0 0.0
    %1984 = vmatprep.subr.mxu0 0.0
    %1985 = vmatpush1.msra.mxu0 0.0
    %1986 = vmatprep.mubr.f32.mxu0 0.0
    %1987 = vmatmul.mubr.f32.gmra.mrb[0].mxu0 %v1920
    %v1988 = vpop.f32.mrb[0].mxu0
    %v1989 = vadd.f32 0.0, %v1988
    %v1990 = vpop.f32.mrb[0].mxu0
    %1991 = vdwg.mxu0
    %v1992 = vadd.f32 %v263, %v1989
    %v1993 = vxor.u32 %v1992, 2147483648
    %v1994 = vmul.f32 %v1993, 1.442695
    %v1995 = vpow.pop %v1994
    %v1996 = vadd.f32 %v1995, 1.0
    %v1997 = vrcp.pop %v1996
    %v1998 = vmul.f32 1.0, %v1997
    %v1999 = vtanh.pop %v1992
    %v2000 = vmul.f32 %v1998, %v1706
    %2002 = vrot.lane.b32.xlu0 %v1999, 64
    %v2003 = vpop.permute.xlu0 %2002
    %v2005 = vmul.f32 %v1998, %v2003
    %2007 = vrot.lane.b32.xlu0 %v2005, 32
    %v2008 = vpop.permute.xlu0 %2007
    %v2010 = vadd.f32 %v2000, %v2008
    %v2011 = vtanh.pop %v2010
    %2013 = vrot.lane.b32.xlu0 %v2011, 64
    %v2014 = vpop.permute.xlu0 %2013
    %v2016 = vmul.f32 %v1998, %v2014
    %2018 = vrot.lane.b32.xlu0 %v1814, 64
    %v2019 = vpop.permute.xlu0 %2018
    %v2021 = vsel %vm287, %v1919, %v2019
    %v2023 = vsel %vm494, %v2021, 0
    %2025 = vmatprep.subr.mxu0 0.0
    %2026 = vmatpush1.msra.mxu0 %v273
    %2027 = vmatprep.subr.mxu0 0.0
    %2028 = vmatpush1.msra.mxu0 %v274
    %2029 = vmatprep.subr.mxu0 0.0
    %2030 = vmatpush1.msra.mxu0 %v275
    %2031 = vmatprep.subr.mxu0 0.0
    %2032 = vmatpush1.msra.mxu0 %v276
    %2033 = vmatprep.subr.mxu0 0.0
    %2034 = vmatpush1.msra.mxu0 %v277
    %2035 = vmatprep.subr.mxu0 0.0
    %2036 = vmatpush1.msra.mxu0 %v278
    %2037 = vmatprep.subr.mxu0 0.0
    %2038 = vmatpush1.msra.mxu0 %v279
    %2039 = vmatprep.subr.mxu0 0.0
    %2040 = vmatpush1.msra.mxu0 %v280
    %2041 = vmatprep.subr.mxu0 0.0
    %2042 = vmatpush1.msra.mxu0 0.0
    %2043 = vmatprep.subr.mxu0 0.0
    %2044 = vmatpush1.msra.mxu0 0.0
    %2045 = vmatprep.subr.mxu0 0.0
    %2046 = vmatpush1.msra.mxu0 0.0
    %2047 = vmatprep.subr.mxu0 0.0
    %2048 = vmatpush1.msra.mxu0 0.0
    %2049 = vmatprep.subr.mxu0 0.0
    %2050 = vmatpush1.msra.mxu0 0.0
    %2051 = vmatprep.subr.mxu0 0.0
    %2052 = vmatpush1.msra.mxu0 0.0
    %2053 = vmatprep.subr.mxu0 0.0
    %2054 = vmatpush1.msra.mxu0 0.0
    %2055 = vmatprep.subr.mxu0 0.0
    %2056 = vmatpush1.msra.mxu0 0.0
    %2057 = vmatprep.subr.mxu0 0.0
    %2058 = vmatpush1.msra.mxu0 0.0
    %2059 = vmatprep.subr.mxu0 0.0
    %2060 = vmatpush1.msra.mxu0 0.0
    %2061 = vmatprep.subr.mxu0 0.0
    %2062 = vmatpush1.msra.mxu0 0.0
    %2063 = vmatprep.subr.mxu0 0.0
    %2064 = vmatpush1.msra.mxu0 0.0
    %2065 = vmatprep.subr.mxu0 0.0
    %2066 = vmatpush1.msra.mxu0 0.0
    %2067 = vmatprep.subr.mxu0 0.0
    %2068 = vmatpush1.msra.mxu0 0.0
    %2069 = vmatprep.subr.mxu0 0.0
    %2070 = vmatpush1.msra.mxu0 0.0
    %2071 = vmatprep.subr.mxu0 0.0
    %2072 = vmatpush1.msra.mxu0 0.0
    %2073 = vmatprep.subr.mxu0 0.0
    %2074 = vmatpush1.msra.mxu0 0.0
    %2075 = vmatprep.subr.mxu0 0.0
    %2076 = vmatpush1.msra.mxu0 0.0
    %2077 = vmatprep.subr.mxu0 0.0
    %2078 = vmatpush1.msra.mxu0 0.0
    %2079 = vmatprep.subr.mxu0 0.0
    %2080 = vmatpush1.msra.mxu0 0.0
    %2081 = vmatprep.subr.mxu0 0.0
    %2082 = vmatpush1.msra.mxu0 0.0
    %2083 = vmatprep.subr.mxu0 0.0
    %2084 = vmatpush1.msra.mxu0 0.0
    %2085 = vmatprep.subr.mxu0 0.0
    %2086 = vmatpush1.msra.mxu0 0.0
    %2087 = vmatprep.subr.mxu0 0.0
    %2088 = vmatpush1.msra.mxu0 0.0
    %2089 = vmatprep.mubr.f32.mxu0 0.0
    %2090 = vmatmul.mubr.f32.gmra.mrb[0].mxu0 %v2023
    %v2091 = vpop.f32.mrb[0].mxu0
    %v2092 = vadd.f32 %v492, %v2091
    %v2093 = vpop.f32.mrb[0].mxu0
    %2094 = vdwg.mxu0
    %v2095 = vxor.u32 %v2092, 2147483648
    %v2096 = vmul.f32 %v2095, 1.442695
    %v2097 = vpow.pop %v2096
    %v2098 = vadd.f32 %v2097, 1.0
    %v2099 = vrcp.pop %v2098
    %v2100 = vmul.f32 1.0, %v2099
    %v2101 = vtanh.pop %v2092
    %v2102 = vmul.f32 %v2100, %v1808
    %2104 = vrot.lane.b32.xlu0 %v2101, 64
    %v2105 = vpop.permute.xlu0 %2104
    %v2107 = vmul.f32 %v2100, %v2105
    %2109 = vrot.lane.b32.xlu0 %v2107, 32
    %v2110 = vpop.permute.xlu0 %2109
    %v2112 = vadd.f32 %v2102, %v2110
    %v2113 = vtanh.pop %v2112
    %2115 = vrot.lane.b32.xlu0 %v2113, 64
    %v2116 = vpop.permute.xlu0 %2115
    %v2118 = vmul.f32 %v2100, %v2116
    %2120 = vrot.lane.b32.xlu0 %v2118, 32
    %v2121 = vpop.permute.xlu0 %2120
    %v2122 = vsel %vm287, %v2121, 0
    %2124 = vmatprep.subr.mxu0 0.0
    %2125 = vmatpush1.msra.mxu0 %v282
    %2126 = vmatprep.subr.mxu0 0.0
    %2127 = vmatpush1.msra.mxu0 %v283
    %2128 = vmatprep.subr.mxu0 0.0
    %2129 = vmatpush1.msra.mxu0 %v284
    %2130 = vmatprep.subr.mxu0 0.0
    %2131 = vmatpush1.msra.mxu0 %v285
    %2132 = vmatprep.subr.mxu0 0.0
    %2133 = vmatpush1.msra.mxu0 0.0
    %2134 = vmatprep.subr.mxu0 0.0
    %2135 = vmatpush1.msra.mxu0 0.0
    %2136 = vmatprep.subr.mxu0 0.0
    %2137 = vmatpush1.msra.mxu0 0.0
    %2138 = vmatprep.subr.mxu0 0.0
    %2139 = vmatpush1.msra.mxu0 0.0
    %2140 = vmatprep.subr.mxu0 0.0
    %2141 = vmatpush1.msra.mxu0 0.0
    %2142 = vmatprep.subr.mxu0 0.0
    %2143 = vmatpush1.msra.mxu0 0.0
    %2144 = vmatprep.subr.mxu0 0.0
    %2145 = vmatpush1.msra.mxu0 0.0
    %2146 = vmatprep.subr.mxu0 0.0
    %2147 = vmatpush1.msra.mxu0 0.0
    %2148 = vmatprep.subr.mxu0 0.0
    %2149 = vmatpush1.msra.mxu0 0.0
    %2150 = vmatprep.subr.mxu0 0.0
    %2151 = vmatpush1.msra.mxu0 0.0
    %2152 = vmatprep.subr.mxu0 0.0
    %2153 = vmatpush1.msra.mxu0 0.0
    %2154 = vmatprep.subr.mxu0 0.0
    %2155 = vmatpush1.msra.mxu0 0.0
    %2156 = vmatprep.subr.mxu0 0.0
    %2157 = vmatpush1.msra.mxu0 0.0
    %2158 = vmatprep.subr.mxu0 0.0
    %2159 = vmatpush1.msra.mxu0 0.0
    %2160 = vmatprep.subr.mxu0 0.0
    %2161 = vmatpush1.msra.mxu0 0.0
    %2162 = vmatprep.subr.mxu0 0.0
    %2163 = vmatpush1.msra.mxu0 0.0
    %2164 = vmatprep.subr.mxu0 0.0
    %2165 = vmatpush1.msra.mxu0 0.0
    %2166 = vmatprep.subr.mxu0 0.0
    %2167 = vmatpush1.msra.mxu0 0.0
    %2168 = vmatprep.subr.mxu0 0.0
    %2169 = vmatpush1.msra.mxu0 0.0
    %2170 = vmatprep.subr.mxu0 0.0
    %2171 = vmatpush1.msra.mxu0 0.0
    %2172 = vmatprep.subr.mxu0 0.0
    %2173 = vmatpush1.msra.mxu0 0.0
    %2174 = vmatprep.subr.mxu0 0.0
    %2175 = vmatpush1.msra.mxu0 0.0
    %2176 = vmatprep.subr.mxu0 0.0
    %2177 = vmatpush1.msra.mxu0 0.0
    %2178 = vmatprep.subr.mxu0 0.0
    %2179 = vmatpush1.msra.mxu0 0.0
    %2180 = vmatprep.subr.mxu0 0.0
    %2181 = vmatpush1.msra.mxu0 0.0
    %2182 = vmatprep.subr.mxu0 0.0
    %2183 = vmatpush1.msra.mxu0 0.0
    %2184 = vmatprep.subr.mxu0 0.0
    %2185 = vmatpush1.msra.mxu0 0.0
    %2186 = vmatprep.subr.mxu0 0.0
    %2187 = vmatpush1.msra.mxu0 0.0
    %2188 = vmatprep.mubr.f32.mxu0 0.0
    %2189 = vmatmul.mubr.f32.gmra.mrb[0].mxu0 %v2122
    %v2190 = vpop.f32.mrb[0].mxu0
    %v2191 = vadd.f32 %v596, %v2190
    %v2192 = vpop.f32.mrb[0].mxu0
    %2193 = vdwg.mxu0
    %v2196 = vunpack.c.l.s4 1966171168
    %v2197 = vunpack.c.0.s8 %v2196
    %v2198 = vlaneseq
    %v2199 = vshrl.u32 %v2198, 7
    %v2200 = vsub.s32 %v2197, %v2199
    %v2201 = vrot.slane %v2191, %v2200
    %v2202 = vcombine.high %v2201, %v2201
    %v2204 = vunpack.c.l.s4 1966171168
    %v2205 = vunpack.c.0.s8 %v2204
    %v2206 = vlaneseq
    %v2207 = vshrl.u32 %v2206, 7
    %v2208 = vsub.s32 %v2205, %v2207
    %v2209 = vrot.slane %v2201, %v2208
    %v2211 = vunpack.c.l.s4 1966171168
    %v2212 = vunpack.c.0.s8 %v2211
    %v2213 = vlaneseq
    %v2214 = vshrl.u32 %v2213, 7
    %v2215 = vsub.s32 %v2212, %v2214
    %v2216 = vrot.slane %v2202, %v2215
    %2219 = vst.msk [vmem:[#allocation8 + $0x5] sm:$0x1] %vm698, %v2209
    %2220 = vst.msk [vmem:[#allocation8 + $0xd] sm:$0x1] %vm698, %v2216
    %2222 = vrot.lane.b32.xlu0 %v2016, 32
    %v2223 = vpop.permute.xlu0 %2222
    %v2224 = vsel %vm287, %v2223, 0
    %2226 = vmatprep.subr.mxu0 0.0
    %2227 = vmatpush1.msra.mxu0 %v269
    %2228 = vmatprep.subr.mxu0 0.0
    %2229 = vmatpush1.msra.mxu0 %v270
    %2230 = vmatprep.subr.mxu0 0.0
    %2231 = vmatpush1.msra.mxu0 %v271
    %2232 = vmatprep.subr.mxu0 0.0
    %2233 = vmatpush1.msra.mxu0 %v272
    %2234 = vmatprep.subr.mxu0 0.0
    %2235 = vmatpush1.msra.mxu0 0.0
    %2236 = vmatprep.subr.mxu0 0.0
    %2237 = vmatpush1.msra.mxu0 0.0
    %2238 = vmatprep.subr.mxu0 0.0
    %2239 = vmatpush1.msra.mxu0 0.0
    %2240 = vmatprep.subr.mxu0 0.0
    %2241 = vmatpush1.msra.mxu0 0.0
    %2242 = vmatprep.subr.mxu0 0.0
    %2243 = vmatpush1.msra.mxu0 0.0
    %2244 = vmatprep.subr.mxu0 0.0
    %2245 = vmatpush1.msra.mxu0 0.0
    %2246 = vmatprep.subr.mxu0 0.0
    %2247 = vmatpush1.msra.mxu0 0.0
    %2248 = vmatprep.subr.mxu0 0.0
    %2249 = vmatpush1.msra.mxu0 0.0
    %2250 = vmatprep.subr.mxu0 0.0
    %2251 = vmatpush1.msra.mxu0 0.0
    %2252 = vmatprep.subr.mxu0 0.0
    %2253 = vmatpush1.msra.mxu0 0.0
    %2254 = vmatprep.subr.mxu0 0.0
    %2255 = vmatpush1.msra.mxu0 0.0
    %2256 = vmatprep.subr.mxu0 0.0
    %2257 = vmatpush1.msra.mxu0 0.0
    %2258 = vmatprep.subr.mxu0 0.0
    %2259 = vmatpush1.msra.mxu0 0.0
    %2260 = vmatprep.subr.mxu0 0.0
    %2261 = vmatpush1.msra.mxu0 0.0
    %2262 = vmatprep.subr.mxu0 0.0
    %2263 = vmatpush1.msra.mxu0 0.0
    %2264 = vmatprep.subr.mxu0 0.0
    %2265 = vmatpush1.msra.mxu0 0.0
    %2266 = vmatprep.subr.mxu0 0.0
    %2267 = vmatpush1.msra.mxu0 0.0
    %2268 = vmatprep.subr.mxu0 0.0
    %2269 = vmatpush1.msra.mxu0 0.0
    %2270 = vmatprep.subr.mxu0 0.0
    %2271 = vmatpush1.msra.mxu0 0.0
    %2272 = vmatprep.subr.mxu0 0.0
    %2273 = vmatpush1.msra.mxu0 0.0
    %2274 = vmatprep.subr.mxu0 0.0
    %2275 = vmatpush1.msra.mxu0 0.0
    %2276 = vmatprep.subr.mxu0 0.0
    %2277 = vmatpush1.msra.mxu0 0.0
    %2278 = vmatprep.subr.mxu0 0.0
    %2279 = vmatpush1.msra.mxu0 0.0
    %2280 = vmatprep.subr.mxu0 0.0
    %2281 = vmatpush1.msra.mxu0 0.0
    %2282 = vmatprep.subr.mxu0 0.0
    %2283 = vmatpush1.msra.mxu0 0.0
    %2284 = vmatprep.subr.mxu0 0.0
    %2285 = vmatpush1.msra.mxu0 0.0
    %2286 = vmatprep.subr.mxu0 0.0
    %2287 = vmatpush1.msra.mxu0 0.0
    %2288 = vmatprep.subr.mxu0 0.0
    %2289 = vmatpush1.msra.mxu0 0.0
    %2290 = vmatprep.mubr.f32.mxu0 0.0
    %2291 = vmatmul.mubr.f32.gmra.mrb[0].mxu0 %v2224
    %v2292 = vpop.f32.mrb[0].mxu0
    %v2293 = vadd.f32 0.0, %v2292
    %v2294 = vpop.f32.mrb[0].mxu0
    %2295 = vdwg.mxu0
    %v2296 = vadd.f32 %v268, %v2293
    %v2297 = vxor.u32 %v2296, 2147483648
    %v2298 = vmul.f32 %v2297, 1.442695
    %v2299 = vpow.pop %v2298
    %v2300 = vadd.f32 %v2299, 1.0
    %v2301 = vrcp.pop %v2300
    %v2302 = vmul.f32 1.0, %v2301
    %v2303 = vtanh.pop %v2296
    %v2304 = vmul.f32 %v2302, %v2010
    %2306 = vrot.lane.b32.xlu0 %v2303, 64
    %v2307 = vpop.permute.xlu0 %2306
    %v2309 = vmul.f32 %v2302, %v2307
    %2311 = vrot.lane.b32.xlu0 %v2309, 32
    %v2312 = vpop.permute.xlu0 %2311
    %v2314 = vadd.f32 %v2304, %v2312
    %v2315 = vtanh.pop %v2314
    %2317 = vrot.lane.b32.xlu0 %v2315, 64
    %v2318 = vpop.permute.xlu0 %2317
    %v2320 = vmul.f32 %v2302, %v2318
    %2322 = vrot.lane.b32.xlu0 %v2118, 64
    %v2323 = vpop.permute.xlu0 %2322
    %v2325 = vsel %vm287, %v2223, %v2323
    %v2327 = vsel %vm494, %v2325, 0
    %2329 = vmatprep.subr.mxu0 0.0
    %2330 = vmatpush1.msra.mxu0 %v273
    %2331 = vmatprep.subr.mxu0 0.0
    %2332 = vmatpush1.msra.mxu0 %v274
    %2333 = vmatprep.subr.mxu0 0.0
    %2334 = vmatpush1.msra.mxu0 %v275
    %2335 = vmatprep.subr.mxu0 0.0
    %2336 = vmatpush1.msra.mxu0 %v276
    %2337 = vmatprep.subr.mxu0 0.0
    %2338 = vmatpush1.msra.mxu0 %v277
    %2339 = vmatprep.subr.mxu0 0.0
    %2340 = vmatpush1.msra.mxu0 %v278
    %2341 = vmatprep.subr.mxu0 0.0
    %2342 = vmatpush1.msra.mxu0 %v279
    %2343 = vmatprep.subr.mxu0 0.0
    %2344 = vmatpush1.msra.mxu0 %v280
    %2345 = vmatprep.subr.mxu0 0.0
    %2346 = vmatpush1.msra.mxu0 0.0
    %2347 = vmatprep.subr.mxu0 0.0
    %2348 = vmatpush1.msra.mxu0 0.0
    %2349 = vmatprep.subr.mxu0 0.0
    %2350 = vmatpush1.msra.mxu0 0.0
    %2351 = vmatprep.subr.mxu0 0.0
    %2352 = vmatpush1.msra.mxu0 0.0
    %2353 = vmatprep.subr.mxu0 0.0
    %2354 = vmatpush1.msra.mxu0 0.0
    %2355 = vmatprep.subr.mxu0 0.0
    %2356 = vmatpush1.msra.mxu0 0.0
    %2357 = vmatprep.subr.mxu0 0.0
    %2358 = vmatpush1.msra.mxu0 0.0
    %2359 = vmatprep.subr.mxu0 0.0
    %2360 = vmatpush1.msra.mxu0 0.0
    %2361 = vmatprep.subr.mxu0 0.0
    %2362 = vmatpush1.msra.mxu0 0.0
    %2363 = vmatprep.subr.mxu0 0.0
    %2364 = vmatpush1.msra.mxu0 0.0
    %2365 = vmatprep.subr.mxu0 0.0
    %2366 = vmatpush1.msra.mxu0 0.0
    %2367 = vmatprep.subr.mxu0 0.0
    %2368 = vmatpush1.msra.mxu0 0.0
    %2369 = vmatprep.subr.mxu0 0.0
    %2370 = vmatpush1.msra.mxu0 0.0
    %2371 = vmatprep.subr.mxu0 0.0
    %2372 = vmatpush1.msra.mxu0 0.0
    %2373 = vmatprep.subr.mxu0 0.0
    %2374 = vmatpush1.msra.mxu0 0.0
    %2375 = vmatprep.subr.mxu0 0.0
    %2376 = vmatpush1.msra.mxu0 0.0
    %2377 = vmatprep.subr.mxu0 0.0
    %2378 = vmatpush1.msra.mxu0 0.0
    %2379 = vmatprep.subr.mxu0 0.0
    %2380 = vmatpush1.msra.mxu0 0.0
    %2381 = vmatprep.subr.mxu0 0.0
    %2382 = vmatpush1.msra.mxu0 0.0
    %2383 = vmatprep.subr.mxu0 0.0
    %2384 = vmatpush1.msra.mxu0 0.0
    %2385 = vmatprep.subr.mxu0 0.0
    %2386 = vmatpush1.msra.mxu0 0.0
    %2387 = vmatprep.subr.mxu0 0.0
    %2388 = vmatpush1.msra.mxu0 0.0
    %2389 = vmatprep.subr.mxu0 0.0
    %2390 = vmatpush1.msra.mxu0 0.0
    %2391 = vmatprep.subr.mxu0 0.0
    %2392 = vmatpush1.msra.mxu0 0.0
    %2393 = vmatprep.mubr.f32.mxu0 0.0
    %2394 = vmatmul.mubr.f32.gmra.mrb[0].mxu0 %v2327
    %v2395 = vpop.f32.mrb[0].mxu0
    %v2396 = vadd.f32 %v492, %v2395
    %v2397 = vpop.f32.mrb[0].mxu0
    %2398 = vdwg.mxu0
    %v2399 = vxor.u32 %v2396, 2147483648
    %v2400 = vmul.f32 %v2399, 1.442695
    %v2401 = vpow.pop %v2400
    %v2402 = vadd.f32 %v2401, 1.0
    %v2403 = vrcp.pop %v2402
    %v2404 = vmul.f32 1.0, %v2403
    %v2405 = vtanh.pop %v2396
    %v2406 = vmul.f32 %v2404, %v2112
    %2408 = vrot.lane.b32.xlu0 %v2405, 64
    %v2409 = vpop.permute.xlu0 %2408
    %v2411 = vmul.f32 %v2404, %v2409
    %2413 = vrot.lane.b32.xlu0 %v2411, 32
    %v2414 = vpop.permute.xlu0 %2413
    %v2416 = vadd.f32 %v2406, %v2414
    %v2417 = vtanh.pop %v2416
    %2419 = vrot.lane.b32.xlu0 %v2417, 64
    %v2420 = vpop.permute.xlu0 %2419
    %v2422 = vmul.f32 %v2404, %v2420
    %2424 = vrot.lane.b32.xlu0 %v2422, 32
    %v2425 = vpop.permute.xlu0 %2424
    %v2426 = vsel %vm287, %v2425, 0
    %2428 = vmatprep.subr.mxu0 0.0
    %2429 = vmatpush1.msra.mxu0 %v282
    %2430 = vmatprep.subr.mxu0 0.0
    %2431 = vmatpush1.msra.mxu0 %v283
    %2432 = vmatprep.subr.mxu0 0.0
    %2433 = vmatpush1.msra.mxu0 %v284
    %2434 = vmatprep.subr.mxu0 0.0
    %2435 = vmatpush1.msra.mxu0 %v285
    %2436 = vmatprep.subr.mxu0 0.0
    %2437 = vmatpush1.msra.mxu0 0.0
    %2438 = vmatprep.subr.mxu0 0.0
    %2439 = vmatpush1.msra.mxu0 0.0
    %2440 = vmatprep.subr.mxu0 0.0
    %2441 = vmatpush1.msra.mxu0 0.0
    %2442 = vmatprep.subr.mxu0 0.0
    %2443 = vmatpush1.msra.mxu0 0.0
    %2444 = vmatprep.subr.mxu0 0.0
    %2445 = vmatpush1.msra.mxu0 0.0
    %2446 = vmatprep.subr.mxu0 0.0
    %2447 = vmatpush1.msra.mxu0 0.0
    %2448 = vmatprep.subr.mxu0 0.0
    %2449 = vmatpush1.msra.mxu0 0.0
    %2450 = vmatprep.subr.mxu0 0.0
    %2451 = vmatpush1.msra.mxu0 0.0
    %2452 = vmatprep.subr.mxu0 0.0
    %2453 = vmatpush1.msra.mxu0 0.0
    %2454 = vmatprep.subr.mxu0 0.0
    %2455 = vmatpush1.msra.mxu0 0.0
    %2456 = vmatprep.subr.mxu0 0.0
    %2457 = vmatpush1.msra.mxu0 0.0
    %2458 = vmatprep.subr.mxu0 0.0
    %2459 = vmatpush1.msra.mxu0 0.0
    %2460 = vmatprep.subr.mxu0 0.0
    %2461 = vmatpush1.msra.mxu0 0.0
    %2462 = vmatprep.subr.mxu0 0.0
    %2463 = vmatpush1.msra.mxu0 0.0
    %2464 = vmatprep.subr.mxu0 0.0
    %2465 = vmatpush1.msra.mxu0 0.0
    %2466 = vmatprep.subr.mxu0 0.0
    %2467 = vmatpush1.msra.mxu0 0.0
    %2468 = vmatprep.subr.mxu0 0.0
    %2469 = vmatpush1.msra.mxu0 0.0
    %2470 = vmatprep.subr.mxu0 0.0
    %2471 = vmatpush1.msra.mxu0 0.0
    %2472 = vmatprep.subr.mxu0 0.0
    %2473 = vmatpush1.msra.mxu0 0.0
    %2474 = vmatprep.subr.mxu0 0.0
    %2475 = vmatpush1.msra.mxu0 0.0
    %2476 = vmatprep.subr.mxu0 0.0
    %2477 = vmatpush1.msra.mxu0 0.0
    %2478 = vmatprep.subr.mxu0 0.0
    %2479 = vmatpush1.msra.mxu0 0.0
    %2480 = vmatprep.subr.mxu0 0.0
    %2481 = vmatpush1.msra.mxu0 0.0
    %2482 = vmatprep.subr.mxu0 0.0
    %2483 = vmatpush1.msra.mxu0 0.0
    %2484 = vmatprep.subr.mxu0 0.0
    %2485 = vmatpush1.msra.mxu0 0.0
    %2486 = vmatprep.subr.mxu0 0.0
    %2487 = vmatpush1.msra.mxu0 0.0
    %2488 = vmatprep.subr.mxu0 0.0
    %2489 = vmatpush1.msra.mxu0 0.0
    %2490 = vmatprep.subr.mxu0 0.0
    %2491 = vmatpush1.msra.mxu0 0.0
    %2492 = vmatprep.mubr.f32.mxu0 0.0
    %2493 = vmatmul.mubr.f32.gmra.mrb[0].mxu0 %v2426
    %v2494 = vpop.f32.mrb[0].mxu0
    %v2495 = vadd.f32 %v596, %v2494
    %v2496 = vpop.f32.mrb[0].mxu0
    %2497 = vdwg.mxu0
    %v2500 = vunpack.c.l.s4 1966171168
    %v2501 = vunpack.c.0.s8 %v2500
    %v2502 = vlaneseq
    %v2503 = vshrl.u32 %v2502, 7
    %v2504 = vsub.s32 %v2501, %v2503
    %v2505 = vrot.slane %v2495, %v2504
    %v2506 = vcombine.high %v2505, %v2505
    %v2508 = vunpack.c.l.s4 1966171168
    %v2509 = vunpack.c.0.s8 %v2508
    %v2510 = vlaneseq
    %v2511 = vshrl.u32 %v2510, 7
    %v2512 = vsub.s32 %v2509, %v2511
    %v2513 = vrot.slane %v2505, %v2512
    %v2515 = vunpack.c.l.s4 1966171168
    %v2516 = vunpack.c.0.s8 %v2515
    %v2517 = vlaneseq
    %v2518 = vshrl.u32 %v2517, 7
    %v2519 = vsub.s32 %v2516, %v2518
    %v2520 = vrot.slane %v2506, %v2519
    %2523 = vst.msk [vmem:[#allocation8 + $0x6] sm:$0x1] %vm698, %v2513
    %2524 = vst.msk [vmem:[#allocation8 + $0xe] sm:$0x1] %vm698, %v2520
    %2526 = vrot.lane.b32.xlu0 %v2320, 32
    %v2527 = vpop.permute.xlu0 %2526
    %2529 = vrot.lane.b32.xlu0 %v2422, 64
    %v2530 = vpop.permute.xlu0 %2529
    %v2532 = vsel %vm287, %v2527, %v2530
    %v2534 = vsel %vm494, %v2532, 0
    %2536 = vmatprep.subr.mxu0 0.0
    %2537 = vmatpush1.msra.mxu0 %v273
    %2538 = vmatprep.subr.mxu0 0.0
    %2539 = vmatpush1.msra.mxu0 %v274
    %2540 = vmatprep.subr.mxu0 0.0
    %2541 = vmatpush1.msra.mxu0 %v275
    %2542 = vmatprep.subr.mxu0 0.0
    %2543 = vmatpush1.msra.mxu0 %v276
    %2544 = vmatprep.subr.mxu0 0.0
    %2545 = vmatpush1.msra.mxu0 %v277
    %2546 = vmatprep.subr.mxu0 0.0
    %2547 = vmatpush1.msra.mxu0 %v278
    %2548 = vmatprep.subr.mxu0 0.0
    %2549 = vmatpush1.msra.mxu0 %v279
    %2550 = vmatprep.subr.mxu0 0.0
    %2551 = vmatpush1.msra.mxu0 %v280
    %2552 = vmatprep.subr.mxu0 0.0
    %2553 = vmatpush1.msra.mxu0 0.0
    %2554 = vmatprep.subr.mxu0 0.0
    %2555 = vmatpush1.msra.mxu0 0.0
    %2556 = vmatprep.subr.mxu0 0.0
    %2557 = vmatpush1.msra.mxu0 0.0
    %2558 = vmatprep.subr.mxu0 0.0
    %2559 = vmatpush1.msra.mxu0 0.0
    %2560 = vmatprep.subr.mxu0 0.0
    %2561 = vmatpush1.msra.mxu0 0.0
    %2562 = vmatprep.subr.mxu0 0.0
    %2563 = vmatpush1.msra.mxu0 0.0
    %2564 = vmatprep.subr.mxu0 0.0
    %2565 = vmatpush1.msra.mxu0 0.0
    %2566 = vmatprep.subr.mxu0 0.0
    %2567 = vmatpush1.msra.mxu0 0.0
    %2568 = vmatprep.subr.mxu0 0.0
    %2569 = vmatpush1.msra.mxu0 0.0
    %2570 = vmatprep.subr.mxu0 0.0
    %2571 = vmatpush1.msra.mxu0 0.0
    %2572 = vmatprep.subr.mxu0 0.0
    %2573 = vmatpush1.msra.mxu0 0.0
    %2574 = vmatprep.subr.mxu0 0.0
    %2575 = vmatpush1.msra.mxu0 0.0
    %2576 = vmatprep.subr.mxu0 0.0
    %2577 = vmatpush1.msra.mxu0 0.0
    %2578 = vmatprep.subr.mxu0 0.0
    %2579 = vmatpush1.msra.mxu0 0.0
    %2580 = vmatprep.subr.mxu0 0.0
    %2581 = vmatpush1.msra.mxu0 0.0
    %2582 = vmatprep.subr.mxu0 0.0
    %2583 = vmatpush1.msra.mxu0 0.0
    %2584 = vmatprep.subr.mxu0 0.0
    %2585 = vmatpush1.msra.mxu0 0.0
    %2586 = vmatprep.subr.mxu0 0.0
    %2587 = vmatpush1.msra.mxu0 0.0
    %2588 = vmatprep.subr.mxu0 0.0
    %2589 = vmatpush1.msra.mxu0 0.0
    %2590 = vmatprep.subr.mxu0 0.0
    %2591 = vmatpush1.msra.mxu0 0.0
    %2592 = vmatprep.subr.mxu0 0.0
    %2593 = vmatpush1.msra.mxu0 0.0
    %2594 = vmatprep.subr.mxu0 0.0
    %2595 = vmatpush1.msra.mxu0 0.0
    %2596 = vmatprep.subr.mxu0 0.0
    %2597 = vmatpush1.msra.mxu0 0.0
    %2598 = vmatprep.subr.mxu0 0.0
    %2599 = vmatpush1.msra.mxu0 0.0
    %2600 = vmatprep.mubr.f32.mxu0 0.0
    %2601 = vmatmul.mubr.f32.gmra.mrb[0].mxu0 %v2534
    %v2602 = vpop.f32.mrb[0].mxu0
    %v2603 = vadd.f32 %v492, %v2602
    %v2604 = vpop.f32.mrb[0].mxu0
    %2605 = vdwg.mxu0
    %v2606 = vxor.u32 %v2603, 2147483648
    %v2607 = vmul.f32 %v2606, 1.442695
    %v2608 = vpow.pop %v2607
    %v2609 = vadd.f32 %v2608, 1.0
    %v2610 = vrcp.pop %v2609
    %v2611 = vmul.f32 1.0, %v2610
    %v2612 = vtanh.pop %v2603
    %v2613 = vmul.f32 %v2611, %v2416
    %2615 = vrot.lane.b32.xlu0 %v2612, 64
    %v2616 = vpop.permute.xlu0 %2615
    %v2618 = vmul.f32 %v2611, %v2616
    %2620 = vrot.lane.b32.xlu0 %v2618, 32
    %v2621 = vpop.permute.xlu0 %2620
    %v2623 = vadd.f32 %v2613, %v2621
    %v2624 = vtanh.pop %v2623
    %2626 = vrot.lane.b32.xlu0 %v2624, 64
    %v2627 = vpop.permute.xlu0 %2626
    %v2629 = vmul.f32 %v2611, %v2627
    %2631 = vrot.lane.b32.xlu0 %v2629, 32
    %v2632 = vpop.permute.xlu0 %2631
    %v2633 = vsel %vm287, %v2632, 0
    %2635 = vmatprep.subr.mxu0 0.0
    %2636 = vmatpush1.msra.mxu0 %v282
    %2637 = vmatprep.subr.mxu0 0.0
    %2638 = vmatpush1.msra.mxu0 %v283
    %2639 = vmatprep.subr.mxu0 0.0
    %2640 = vmatpush1.msra.mxu0 %v284
    %2641 = vmatprep.subr.mxu0 0.0
    %2642 = vmatpush1.msra.mxu0 %v285
    %2643 = vmatprep.subr.mxu0 0.0
    %2644 = vmatpush1.msra.mxu0 0.0
    %2645 = vmatprep.subr.mxu0 0.0
    %2646 = vmatpush1.msra.mxu0 0.0
    %2647 = vmatprep.subr.mxu0 0.0
    %2648 = vmatpush1.msra.mxu0 0.0
    %2649 = vmatprep.subr.mxu0 0.0
    %2650 = vmatpush1.msra.mxu0 0.0
    %2651 = vmatprep.subr.mxu0 0.0
    %2652 = vmatpush1.msra.mxu0 0.0
    %2653 = vmatprep.subr.mxu0 0.0
    %2654 = vmatpush1.msra.mxu0 0.0
    %2655 = vmatprep.subr.mxu0 0.0
    %2656 = vmatpush1.msra.mxu0 0.0
    %2657 = vmatprep.subr.mxu0 0.0
    %2658 = vmatpush1.msra.mxu0 0.0
    %2659 = vmatprep.subr.mxu0 0.0
    %2660 = vmatpush1.msra.mxu0 0.0
    %2661 = vmatprep.subr.mxu0 0.0
    %2662 = vmatpush1.msra.mxu0 0.0
    %2663 = vmatprep.subr.mxu0 0.0
    %2664 = vmatpush1.msra.mxu0 0.0
    %2665 = vmatprep.subr.mxu0 0.0
    %2666 = vmatpush1.msra.mxu0 0.0
    %2667 = vmatprep.subr.mxu0 0.0
    %2668 = vmatpush1.msra.mxu0 0.0
    %2669 = vmatprep.subr.mxu0 0.0
    %2670 = vmatpush1.msra.mxu0 0.0
    %2671 = vmatprep.subr.mxu0 0.0
    %2672 = vmatpush1.msra.mxu0 0.0
    %2673 = vmatprep.subr.mxu0 0.0
    %2674 = vmatpush1.msra.mxu0 0.0
    %2675 = vmatprep.subr.mxu0 0.0
    %2676 = vmatpush1.msra.mxu0 0.0
    %2677 = vmatprep.subr.mxu0 0.0
    %2678 = vmatpush1.msra.mxu0 0.0
    %2679 = vmatprep.subr.mxu0 0.0
    %2680 = vmatpush1.msra.mxu0 0.0
    %2681 = vmatprep.subr.mxu0 0.0
    %2682 = vmatpush1.msra.mxu0 0.0
    %2683 = vmatprep.subr.mxu0 0.0
    %2684 = vmatpush1.msra.mxu0 0.0
    %2685 = vmatprep.subr.mxu0 0.0
    %2686 = vmatpush1.msra.mxu0 0.0
    %2687 = vmatprep.subr.mxu0 0.0
    %2688 = vmatpush1.msra.mxu0 0.0
    %2689 = vmatprep.subr.mxu0 0.0
    %2690 = vmatpush1.msra.mxu0 0.0
    %2691 = vmatprep.subr.mxu0 0.0
    %2692 = vmatpush1.msra.mxu0 0.0
    %2693 = vmatprep.subr.mxu0 0.0
    %2694 = vmatpush1.msra.mxu0 0.0
    %2695 = vmatprep.subr.mxu0 0.0
    %2696 = vmatpush1.msra.mxu0 0.0
    %2697 = vmatprep.subr.mxu0 0.0
    %2698 = vmatpush1.msra.mxu0 0.0
    %2699 = vmatprep.mubr.f32.mxu0 0.0
    %2700 = vmatmul.mubr.f32.gmra.mrb[0].mxu0 %v2633
    %v2701 = vpop.f32.mrb[0].mxu0
    %v2702 = vadd.f32 %v596, %v2701
    %v2703 = vpop.f32.mrb[0].mxu0
    %2704 = vdwg.mxu0
    %v2707 = vunpack.c.l.s4 1966171168
    %v2708 = vunpack.c.0.s8 %v2707
    %v2709 = vlaneseq
    %v2710 = vshrl.u32 %v2709, 7
    %v2711 = vsub.s32 %v2708, %v2710
    %v2712 = vrot.slane %v2702, %v2711
    %v2713 = vcombine.high %v2712, %v2712
    %v2715 = vunpack.c.l.s4 1966171168
    %v2716 = vunpack.c.0.s8 %v2715
    %v2717 = vlaneseq
    %v2718 = vshrl.u32 %v2717, 7
    %v2719 = vsub.s32 %v2716, %v2718
    %v2720 = vrot.slane %v2712, %v2719
    %v2722 = vunpack.c.l.s4 1966171168
    %v2723 = vunpack.c.0.s8 %v2722
    %v2724 = vlaneseq
    %v2725 = vshrl.u32 %v2724, 7
    %v2726 = vsub.s32 %v2723, %v2725
    %v2727 = vrot.slane %v2713, %v2726
    %2730 = vst.msk [vmem:[#allocation8 + $0x7] sm:$0x1] %vm698, %v2720
    %2731 = vst.msk [vmem:[#allocation8 + $0xf] sm:$0x1] %vm698, %v2727
    // Predicated region
    $region46: #{music_rnn_forward.1} parent=1 // pred_check
      _
    $region47: #{music_rnn_forward.1} parent=1 // pred_check_branch
      %2733 = sbr.rel (0) target = $region49
    $region48: #{music_rnn_forward.1} parent=1 // pred_region
      %s2735 = ssub.s32 256, 256
      %2736 = vsyncadd [#allocation4], %s2735
      %s2737 = sshll.u32 [#allocation8], 4
      %s2738 = int_to_ptr.vmem [resolvable:$true] %s2737
      %2743 = dma.vmem_to_hbm [thread:$0]  %s2738, 256, %s8, [#allocation4], 128, 128, 8
    $region49: #{music_rnn_forward.1} parent=1 // pred_fallthru
      _
    // Predicated region
    $region50: #{music_rnn_forward.1} parent=1 // pred_check
      _
    $region51: #{music_rnn_forward.1} parent=1 // pred_check_branch
      %2745 = sbr.rel (0) target = $region53
    $region52: #{music_rnn_forward.1} parent=1 // pred_region
      %2746 = dma.done [#allocation4], 256
    $region53: #{music_rnn_forward.1} parent=1 // pred_fallthru
      _
    %2747 = vsyncpa [#allocation3], 1
    %2748 = vsyncpa [#allocation6], 1
    %2749 = vsyncpa [#allocation4], 1

</llo_original>
